<compile_context>
chip_gen: v6e
topology: v6e:2x2x1
jax: 0.10.0
libtpu: 0.0.40
codegen_flags: <defaults>
</compile_context>

<pallas_src>
import jax
import jax.numpy as jnp
from jax.experimental import pallas as pl
from jax.experimental.pallas import tpu as pltpu

FEAT_DIM = 2048            # backbone feature channels (fixed by the module)
POSE_DIM = 12              # 6 root pose + 6 jaw pose
SHAPE_PARAM_DIM = 100      # flame.shape_param_dim (synthetic, typical FLAME value)
EXPR_CODE_DIM = 50         # flame.expr_code_dim  (synthetic, typical FLAME value)
CAM_DIM = 3
TOTAL_OUT = POSE_DIM + SHAPE_PARAM_DIM + EXPR_CODE_DIM + CAM_DIM  # 165
OUT_PAD = 256              # fused head width padded to a multiple of 128 (lane-dense stores)

_SUBLANE = 8
_LANE = 128


def _round_up(x, m):
    return (x + m - 1) // m * m


def _vmem_limit_bytes():
    """Generation-aware scoped-VMEM request: ~75% of per-core VMEM, clamped."""
    cap = 64 << 20  # conservative fallback == v7x per-TensorCore VMEM
    try:
        info = pltpu.get_tpu_info()
        cap = int(getattr(info, "vmem_capacity_bytes", cap)) or cap
    except Exception:
        pass
    # v7x (64 MiB/TC) -> 48 MiB; v5e/v6e (128 MiB) -> 96 MiB.  Never request all of VMEM.
    return int(max(32 << 20, min(100 << 20, (cap * 3) // 4)))


def _face_regressor_kernel(x_ref, w_ref, b_ref, out_ref, acc_ref):
    # x_ref:   (bt, tc, HW)     activation tile; spatial on the lane axis, channels on sublanes
    # w_ref:   (tc, OUT_PAD)    fused heads (zero-padded), 1/(H*W) already folded in
    # b_ref:   (1, OUT_PAD)     fused bias (zero-padded), f32
    # out_ref: (1, bt, OUT_PAD) f32, lane-dense full-block store
    # acc_ref: (bt, OUT_PAD)    f32 accumulator across the channel (reduction) grid axis
    k = pl.program_id(1)

    @pl.when(k == 0)
    def _init():
        acc_ref[...] = jnp.zeros_like(acc_ref)

    # Spatial pool accumulated in f32 (input may be bf16 from the producer).
    # NOTE: this is an XLU lane-reduce; on v5e/v6e it hides under the HBM DMA.  If a v7x
    # bundle dump shows it binding, the follow-up is to fold the pool into the idle MXU.
    pooled = jnp.sum(x_ref[...].astype(jnp.float32), axis=-1)          # (bt, tc)
    acc_ref[...] += jnp.dot(pooled.astype(w_ref.dtype), w_ref[...],
                            preferred_element_type=jnp.float32)        # fused heads on the MXU

    @pl.when(k == pl.num_programs(1) - 1)
    def _finalize():
        out_ref[...] = (acc_ref[...] + b_ref[...])[None, :, :]


def init_params(key):
    """Deterministic synthetic parameters matching the nn.Linear shapes."""
    ks = jax.random.split(key, 8)
    scale = 1.0 / jnp.sqrt(jnp.float32(FEAT_DIM))

    def lin(kw, kb, out_dim):
        w = jax.random.normal(kw, (FEAT_DIM, out_dim), jnp.float32) * scale
        b = jax.random.normal(kb, (out_dim,), jnp.float32) * 0.01
        return w, b

    pose_w, pose_b = lin(ks[0], ks[1], POSE_DIM)
    shape_w, shape_b = lin(ks[2], ks[3], SHAPE_PARAM_DIM)
    expr_w, expr_b = lin(ks[4], ks[5], EXPR_CODE_DIM)
    cam_w, cam_b = lin(ks[6], ks[7], CAM_DIM)
    return dict(
        pose_w=pose_w, pose_b=pose_b,
        shape_w=shape_w, shape_b=shape_b,
        expr_w=expr_w, expr_b=expr_b,
        cam_w=cam_w, cam_b=cam_b,
    )


def prepare_fused_params(params, spatial_size, *, param_dtype=jnp.float32):
    """Fuse + zero-pad the four heads, fold the 1/(H*W) mean scale, cast once.

    Done once per parameter set / deployment (spatial_size = H*W is static), never per call.
    """
    w_all = jnp.concatenate(
        [params["pose_w"], params["shape_w"], params["expr_w"], params["cam_w"]], axis=1
    )  # (C, TOTAL_OUT)
    b_all = jnp.concatenate(
        [params["pose_b"], params["shape_b"], params["expr_b"], params["cam_b"]], axis=0
    )  # (TOTAL_OUT,)
    inv_hw = 1.0 / float(spatial_size)
    # mean(x) @ W + b == sum(x) @ (W/HW) + b  -> fold 1/HW into the weights only.
    w_pad = jnp.zeros((FEAT_DIM, OUT_PAD), jnp.float32).at[:, :TOTAL_OUT].set(w_all * inv_hw)
    b_pad = jnp.zeros((1, OUT_PAD), jnp.float32).at[:, :TOTAL_OUT].set(b_all)
    return {"w": w_pad.astype(param_dtype), "b": b_pad, "hw": int(spatial_size)}


def face_regressor_forward(img_feat, fused):
    """img_feat: (B, 2048, H, W), NCHW as in PyTorch (any float dtype; bf16 halves HBM traffic).

    Returns (root_pose, jaw_pose, shape_param, expr_param, cam_param).
    """
    B, C, H, W = img_feat.shape
    assert C == FEAT_DIM
    HW = H * W
    assert fused["hw"] == HW, "prepare_fused_params was built for a different spatial size"

    # FREE reshape (contiguous, no HBM pass): NCHW -> (B, C, HW).  No dtype cast here.
    x = img_feat.reshape(B, C, HW)
    w = fused["w"]
    b = fused["b"]

    itemsize = int(jnp.dtype(x.dtype).itemsize)
    w_itemsize = int(jnp.dtype(w.dtype).itemsize)
    hw_pad = _round_up(HW, _LANE)          # VMEM stores the last block dim lane-padded to 128

    vmem_limit = _vmem_limit_bytes()
    # Fixed reserve: double-buffered weights (worst case tc = C), bias, output block,
    # accumulator scratch and compiler-internal slack.
    reserve = (2 * FEAT_DIM * OUT_PAD * w_itemsize
               + 2 * _SUBLANE * OUT_PAD * 4
               + (2 << 20))
    x_budget = max(1 << 20, vmem_limit - reserve)

    # --- batch tiling: >= 2 "parallel" tiles when B >= 2 so both v7x TCs get work ---
    bt_target = -(-B // 2) if B >= 2 else 1                    # ceil(B / 2)
    full_row = 2 * FEAT_DIM * hw_pad * itemsize                # double-buffered bytes / batch row
    bt_cap_full = x_budget // full_row

    if bt_cap_full >= 1:
        # Whole channel dim fits: single reduction step, batch-only tiling.
        bt = int(max(1, min(bt_target, bt_cap_full)))
        tc = FEAT_DIM
    else:
        # Large spatial maps: tile the channel (reduction) axis so every block fits VMEM.
        bt = 1
        tc = _SUBLANE
        for cand in (1024, 512, 256, 128, 64, 32, 16, 8):
            if 2 * bt * cand * hw_pad * itemsize <= x_budget:
                tc = cand
                break

    n_b = -(-B // bt)                     # partial last batch tile: garbage rows sliced off below
    n_c = FEAT_DIM // tc
    grid = (n_b, n_c)

    cost = pl.CostEstimate(
        flops=int(2 * B * FEAT_DIM * OUT_PAD + B * FEAT_DIM * HW),
        transcendentals=0,
        bytes_accessed=int(B * FEAT_DIM * HW * itemsize
                           + FEAT_DIM * OUT_PAD * w_itemsize
                           + n_b * bt * OUT_PAD * 4),
    )

    out = pl.pallas_call(
        _face_regressor_kernel,
        out_shape=jax.ShapeDtypeStruct((n_b, bt, OUT_PAD), jnp.float32),
        grid=grid,
        in_specs=[
            pl.BlockSpec((bt, tc, HW), lambda i, k: (i, k, 0)),      # streamed activation tiles
            pl.BlockSpec((tc, OUT_PAD), lambda i, k: (k, 0)),        # fused weights (chunked on C)
            pl.BlockSpec((1, OUT_PAD), lambda i, k: (0, 0)),         # fused bias
        ],
        out_specs=pl.BlockSpec((1, bt, OUT_PAD), lambda i, k: (i, 0, 0)),
        scratch_shapes=[pltpu.VMEM((bt, OUT_PAD), jnp.float32)],     # f32 accumulator
        compiler_params=pltpu.CompilerParams(
            dimension_semantics=("parallel", "arbitrary"),
            vmem_limit_bytes=int(vmem_limit),
        ),
        cost_estimate=cost,
    )(x, w, b)

    # Drop batch-tile padding rows and the zero-padded head columns.
    out = out.reshape(n_b * bt, OUT_PAD)[:B, :TOTAL_OUT]

    # Split the fused output back into the module's five return values.
    pose_param = out[:, :POSE_DIM]
    root_pose = pose_param[:, :6]
    jaw_pose = pose_param[:, 6:]
    o = POSE_DIM
    shape_param = out[:, o:o + SHAPE_PARAM_DIM]
    o += SHAPE_PARAM_DIM
    expr_param = out[:, o:o + EXPR_CODE_DIM]
    o += EXPR_CODE_DIM
    cam_param = out[:, o:o + CAM_DIM]
    return root_pose, jaw_pose, shape_param, expr_param, cam_param


def _reference_forward(img_feat, params):
    feat = jnp.mean(img_feat.astype(jnp.float32), axis=(2, 3))
    pose = feat @ params["pose_w"] + params["pose_b"]
    return (
        pose[:, :6],
        pose[:, 6:],
        feat @ params["shape_w"] + params["shape_b"],
        feat @ params["expr_w"] + params["expr_b"],
        feat @ params["cam_w"] + params["cam_b"],
    )


if __name__ == "__main__":
    key = jax.random.PRNGKey(0)
    k_in, k_par = jax.random.split(key)

    # Small shapes consistent with the module: channels must be 2048 (linear layer input),
    # so keep batch/spatial small instead.
    B, H, W = 2, 8, 8
    img_feat = jax.random.normal(k_in, (B, FEAT_DIM, H, W), jnp.float32)
    params = init_params(k_par)
    fused = prepare_fused_params(params, H * W)   # fused / padded / scaled weights built once

    outs = face_regressor_forward(img_feat, fused)
    outs = jax.block_until_ready(outs)

    refs = _reference_forward(img_feat, params)
    for got, ref in zip(outs, refs):
        assert got.shape == ref.shape
        assert jnp.max(jnp.abs(got - ref)) < 1e-3

    print("KERNEL_OK")
</pallas_src>

<mosaic_0001>
module attributes {stable_mosaic.version = 11 : i64} {
  func.func @_face_regressor_kernel(%arg0: i32, %arg1: i32, %arg2: memref<1x2048x64xf32, #tpu.memory_space<vmem>>, %arg3: memref<2048x256xf32, #tpu.memory_space<vmem>>, %arg4: memref<1x256xf32, #tpu.memory_space<vmem>>, %arg5: memref<1x1x256xf32, #tpu.memory_space<vmem>>, %arg6: memref<1x256xf32, #tpu.memory_space<vmem>>) attributes {dimension_semantics = [#tpu.dimension_semantics<parallel>, #tpu.dimension_semantics<arbitrary>], iteration_bounds = array<i64: 2, 1>, scalar_prefetch = 0 : i64, scratch_operands = 1 : i64, tpu.core_type = #tpu.core_type<tc>, window_params = [{transform_indices = @transform_0, window_bounds = array<i64: 1, 2048, 64>}, {transform_indices = @transform_1, window_bounds = array<i64: 2048, 256>}, {pipeline_mode = #tpu.pipeline_mode<synchronous>, transform_indices = @transform_2, window_bounds = array<i64: 1, 256>}, {transform_indices = @transform_3, window_bounds = array<i64: 1, 1, 256>}]} {
    %c0_i32 = arith.constant 0 : i32
    %0 = arith.cmpi eq, %arg1, %c0_i32 : i32
    %1 = arith.extui %0 : i1 to i32
    %c0_i32_0 = arith.constant 0 : i32
    %2 = arith.cmpi ne, %1, %c0_i32_0 : i32
    scf.if %2 {
      %cst_12 = arith.constant 0.000000e+00 : f32
      %13 = vector.broadcast %cst_12 : f32 to vector<1x256xf32>
      %c0_13 = arith.constant 0 : index
      %c0_14 = arith.constant 0 : index
      %14 = vector.load %arg6[%c0_13, %c0_14] : memref<1x256xf32, #tpu.memory_space<vmem>>, vector<1x256xf32>
      tpu.vector_store %arg6[%c0_13, %c0_14], %13 {strides = array<i32>} : memref<1x256xf32, #tpu.memory_space<vmem>>, vector<1x256xf32>,
    } else {
    }
    %c0 = arith.constant 0 : index
    %c0_1 = arith.constant 0 : index
    %c0_2 = arith.constant 0 : index
    %3 = vector.load %arg2[%c0, %c0_1, %c0_2] : memref<1x2048x64xf32, #tpu.memory_space<vmem>>, vector<1x2048x64xf32>
    %cst = arith.constant dense<0.000000e+00> : vector<1x2048xf32>
    %4 = vector.multi_reduction <add>, %3, %cst [2] : vector<1x2048x64xf32> to vector<1x2048xf32>
    %c0_3 = arith.constant 0 : index
    %c0_4 = arith.constant 0 : index
    %5 = vector.load %arg6[%c0_3, %c0_4] : memref<1x256xf32, #tpu.memory_space<vmem>>, vector<1x256xf32>
    %c0_5 = arith.constant 0 : index
    %c0_6 = arith.constant 0 : index
    %6 = vector.load %arg3[%c0_5, %c0_6] : memref<2048x256xf32, #tpu.memory_space<vmem>>, vector<2048x256xf32>
    %cst_7 = arith.constant dense<0.000000e+00> : vector<1x256xf32>
    %7 = tpu.matmul %4, %6, %cst_7 {dimension_numbers = #tpu.dot_dimension_numbers<[1], [0], [0], [1], [0, 0, 1, 1], [], []>} : vector<1x2048xf32>, vector<2048x256xf32>, vector<1x256xf32> -> vector<1x256xf32>
    %8 = arith.addf %5, %7 : vector<1x256xf32>
    %c0_8 = arith.constant 0 : index
    %c0_9 = arith.constant 0 : index
    %9 = vector.load %arg6[%c0_8, %c0_9] : memref<1x256xf32, #tpu.memory_space<vmem>>, vector<1x256xf32>
    tpu.vector_store %arg6[%c0_8, %c0_9], %8 {strides = array<i32>} : memref<1x256xf32, #tpu.memory_space<vmem>>, vector<1x256xf32>,
    %c0_i32_10 = arith.constant 0 : i32
    %10 = arith.cmpi eq, %arg1, %c0_i32_10 : i32
    %11 = arith.extui %10 : i1 to i32
    %c0_i32_11 = arith.constant 0 : i32
    %12 = arith.cmpi ne, %11, %c0_i32_11 : i32
    scf.if %12 {
      %c0_12 = arith.constant 0 : index
      %c0_13 = arith.constant 0 : index
      %13 = vector.load %arg6[%c0_12, %c0_13] : memref<1x256xf32, #tpu.memory_space<vmem>>, vector<1x256xf32>
      %c0_14 = arith.constant 0 : index
      %c0_15 = arith.constant 0 : index
      %14 = vector.load %arg4[%c0_14, %c0_15] : memref<1x256xf32, #tpu.memory_space<vmem>>, vector<1x256xf32>
      %15 = arith.addf %13, %14 : vector<1x256xf32>
      %16 = vector.shape_cast %15 : vector<1x256xf32> to vector<1x1x256xf32>
      %c0_16 = arith.constant 0 : index
      %c0_17 = arith.constant 0 : index
      %c0_18 = arith.constant 0 : index
      %17 = vector.load %arg5[%c0_16, %c0_17, %c0_18] : memref<1x1x256xf32, #tpu.memory_space<vmem>>, vector<1x1x256xf32>
      tpu.vector_store %arg5[%c0_16, %c0_17, %c0_18], %16 {strides = array<i32>} : memref<1x1x256xf32, #tpu.memory_space<vmem>>, vector<1x1x256xf32>,
    } else {
    }
    return
  }
  func.func @transform_0(%arg0: i32, %arg1: i32) -> (i32, i32, i32) {
    %c0_i32 = arith.constant 0 : i32
    %c0_i32_0 = arith.constant 0 : i32
    return %arg0, %arg1, %c0_i32 : i32, i32, i32
  }
  func.func @transform_1(%arg0: i32, %arg1: i32) -> (i32, i32) {
    %c0_i32 = arith.constant 0 : i32
    %c0_i32_0 = arith.constant 0 : i32
    return %arg1, %c0_i32 : i32, i32
  }
  func.func @transform_2(%arg0: i32, %arg1: i32) -> (i32, i32) {
    %c0_i32 = arith.constant 0 : i32
    %c0_i32_0 = arith.constant 0 : i32
    %c0_i32_1 = arith.constant 0 : i32
    return %c0_i32, %c0_i32_0 : i32, i32
  }
  func.func @transform_3(%arg0: i32, %arg1: i32) -> (i32, i32, i32) {
    %c0_i32 = arith.constant 0 : i32
    %c0_i32_0 = arith.constant 0 : i32
    %c0_i32_1 = arith.constant 0 : i32
    return %arg0, %c0_i32, %c0_i32_0 : i32, i32, i32
  }
}

</mosaic_0001>

<llo_original>
// kernel: tpu_custom_call.1
$region0: #{tpu_custom_call.1}
  #allocation0 [shape = 'u32[]', space=smem, size = 0x4, offset = 0x4, fixed_abs, tag = 'smem constant byte address 0x4 - core index']
  #allocation1 [shape = 'u32[144,128]{1,0:T(1,128)}', space=vmem, size = 0x12000, scoped, tag = 'internal scratch']
  #allocation2 [shape = 'f32[1,256]{1,0:T(1,128)}', space=vmem, size = 0x400, scoped, tag = 'scratch operand']
  %s0 = inlined_call_operand.vmem [shape: f32[2,2048,64], index: 0, kind: input, shape index: {}]
  %s1 = inlined_call_operand.vmem [shape: f32[2048,256], index: 1, kind: input, shape index: {}]
  %s2 = inlined_call_operand.vmem [shape: f32[1,256], index: 2, kind: input, shape index: {}]
  %s3 = inlined_call_operand.hbm [shape: f32[2,1,256], index: 3, kind: output, shape index: {}]
  %s4 = sld [smem:[#allocation0]]
  $region53: #{tpu_custom_call.1} parent=0
    _
  %s6 = ssub.s32 1, %s4
  %s7 = scalar_select 0, %s6, %s4
  $region1: #{tpu_custom_call.1} parent=0
    #allocation3 [shape = 'u8[2048]{0}', space=vmem, size = 0x800, scoped, tag = 'output window, operand 0']
    #allocation4 [shape = 's32[2]{0}', space=sflag, size = 0x8, scoped, tag = 'scoped memory for tpu_custom_call.1']
    %8 = vsyncpa [#allocation4], 0
    %s9 = scalar_lea.sflag [#allocation4], 1
    %10 = vsyncpa %s9, 0
    loop: start=0, step=1, limit=4
    $region2: #{tpu_custom_call.1} parent=1 // loop_pre_header
      _
    $region3: #{tpu_custom_call.1} parent=1 // loop_header
      %s12 = sphi 0, %s16
      %p13 = scmp.ge.s32.totalorder %s12, 4
      %s19 = sphi 0, %s31
      %s20 = sphi 0, %s27
      %s21 = sphi 0, %s19
      %s22 = sphi 0, %s20
      %s23 = sphi 0, %s21
      %s24 = sphi 0, %s22
      %s36 = sphi 0, %s38
      %s39 = sphi 0, %s36
      %s40 = sphi 0, %s39
      %s56 = sphi 0, %s40
      %s62 = sphi 0, %s64
      %s65 = sphi 0, %s62
      %s66 = sphi 0, %s65
      %s82 = sphi 0, %s66
      %s86 = sphi 0, %s86
      %s88 = sphi 0, %s86
      %s89 = sphi 0, %s88
      %s103 = sphi 0, %s89
      %s109 = sphi 0, %s111
      %s112 = sphi 0, %s109
      %s113 = sphi 0, %s112
      %s129 = sphi 0, %s113
    $region4: #{tpu_custom_call.1} parent=1 // loop_header_branch
      %15 = sbr.rel (%p13) target = $region8
    $region5: #{tpu_custom_call.1} parent=1 // loop_body
      %s17 = ssub.s32 %s12, 1
      %s18 = ssub.s32 %s12, 2
      %s25 = sadd.s32 1, %s20
      %p26 = scmp.ge.s32.totalorder %s25, 1
      %s27 = scalar_select %p26, 0, %s25
      %s28 = sadd.s32 1, %s19
      %s29 = scalar_select %p26, %s28, %s19
      %p30 = scmp.ge.s32.totalorder %s29, 2
      %s31 = scalar_select %p30, 0, %s29
      %s32 = ssub.s32 %s19, %s31
      %s33 = ssub.s32 %s20, %s27
      %s34 = sor.u32 %s32, %s33
      %p35 = scmp.eq.s32.totalorder %s34, 0
      %s37 = sadd.s32 %s36, 1
      %s38 = scalar_select %p35, %s36, %s37
      %p41 = pneg %p35
      %p42 = scmp.eq.s32.totalorder %s12, 1
      %p43 = por %p41, %p42
      %p44 = scmp.ne.s32.totalorder %s36, %s39
      %p45 = scmp.eq.s32.totalorder %s12, 0
      %p46 = por %p44, %p45
      %p47 = scmp.ne.s32.totalorder %s36, %s39
      %p48 = scmp.eq.s32.totalorder %s17, 1
      %p49 = por %p47, %p48
      %p50 = scmp.ne.s32.totalorder %s39, %s40
      %p51 = scmp.eq.s32.totalorder %s17, 0
      %p52 = por %p50, %p51
      %p53 = scmp.ne.s32.totalorder %s39, %s40
      %p54 = scmp.eq.s32.totalorder %s18, 1
      %p55 = por %p53, %p54
      %p57 = scmp.ne.s32.totalorder %s40, %s56
      %p58 = scmp.eq.s32.totalorder %s18, 0
      %p59 = por %p57, %p58
      %s60 = ssub.s32 %s20, %s27
      %p61 = scmp.eq.s32.totalorder %s60, 0
      %s63 = sadd.s32 %s62, 1
      %s64 = scalar_select %p61, %s62, %s63
      %p67 = pneg %p61
      %p68 = scmp.eq.s32.totalorder %s12, 1
      %p69 = por %p67, %p68
      %p70 = scmp.ne.s32.totalorder %s62, %s65
      %p71 = scmp.eq.s32.totalorder %s12, 0
      %p72 = por %p70, %p71
      %p73 = scmp.ne.s32.totalorder %s62, %s65
      %p74 = scmp.eq.s32.totalorder %s17, 1
      %p75 = por %p73, %p74
      %p76 = scmp.ne.s32.totalorder %s65, %s66
      %p77 = scmp.eq.s32.totalorder %s17, 0
      %p78 = por %p76, %p77
      %p79 = scmp.ne.s32.totalorder %s65, %s66
      %p80 = scmp.eq.s32.totalorder %s18, 1
      %p81 = por %p79, %p80
      %p83 = scmp.ne.s32.totalorder %s66, %s82
      %p84 = scmp.eq.s32.totalorder %s18, 0
      %p85 = por %p83, %p84
      %s87 = sadd.s32 %s86, 1
      %p90 = scmp.eq.s32.totalorder %s12, 1
      %p91 = scmp.ne.s32.totalorder %s86, %s88
      %p92 = scmp.eq.s32.totalorder %s12, 0
      %p93 = por %p91, %p92
      %p94 = scmp.ne.s32.totalorder %s86, %s88
      %p95 = scmp.eq.s32.totalorder %s17, 1
      %p96 = por %p94, %p95
      %p97 = scmp.ne.s32.totalorder %s88, %s89
      %p98 = scmp.eq.s32.totalorder %s17, 0
      %p99 = por %p97, %p98
      %p100 = scmp.ne.s32.totalorder %s88, %s89
      %p101 = scmp.eq.s32.totalorder %s18, 1
      %p102 = por %p100, %p101
      %p104 = scmp.ne.s32.totalorder %s89, %s103
      %p105 = scmp.eq.s32.totalorder %s18, 0
      %p106 = por %p104, %p105
      %s107 = ssub.s32 %s19, %s31
      %p108 = scmp.eq.s32.totalorder %s107, 0
      %s110 = sadd.s32 %s109, 1
      %s111 = scalar_select %p108, %s109, %s110
      %p114 = pneg %p108
      %p115 = scmp.eq.s32.totalorder %s12, 1
      %p116 = por %p114, %p115
      %p117 = scmp.ne.s32.totalorder %s109, %s112
      %p118 = scmp.eq.s32.totalorder %s12, 0
      %p119 = por %p117, %p118
      %p120 = scmp.ne.s32.totalorder %s109, %s112
      %p121 = scmp.eq.s32.totalorder %s17, 1
      %p122 = por %p120, %p121
      %p123 = scmp.ne.s32.totalorder %s112, %s113
      %p124 = scmp.eq.s32.totalorder %s17, 0
      %p125 = por %p123, %p124
      %p126 = scmp.ne.s32.totalorder %s112, %s113
      %p127 = scmp.eq.s32.totalorder %s18, 1
      %p128 = por %p126, %p127
      %p130 = scmp.ne.s32.totalorder %s113, %s129
      %p131 = scmp.eq.s32.totalorder %s18, 0
      %p132 = por %p130, %p131
      %p133 = scmp.le.s32.totalorder 1, %s12
      %p134 = scmp.lt.s32.totalorder %s12, 3
      %p135 = pnand %p133, %p134
      %p136 = pneg %p135
      // Predicated region
      $region9: #{tpu_custom_call.1} parent=5 // pred_check
        _
      $region10: #{tpu_custom_call.1} parent=5 // pred_check_branch
        %138 = sbr.rel (%p135) target = $region12
      $region11: #{tpu_custom_call.1} parent=5 // pred_region
        %s139 = ssub.s32 %s12, 1
        // Predicated region
        $region13: #{tpu_custom_call.1} parent=11 // pred_check
          %p140 = pneg %p78
        $region14: #{tpu_custom_call.1} parent=11 // pred_check_branch
          %142 = sbr.rel (%p140) target = $region16
        $region15: #{tpu_custom_call.1} parent=11 // pred_region
          %s143 = smul.u32 256, %s22
          %p144 = scmp.lt.s32.totalorder %s143, 255
          %s145 = scalar_select %p144, %s143, 255
          %s146 = smul.addr %s145, 2
          %s147 = smul.addr %s146, 8
          %s148 = scalar_lea.vmem %s1, %s147
          %s149 = smul.u32 256, %s22
        $region16: #{tpu_custom_call.1} parent=11 // pred_fallthru
          _
        // Predicated region
        $region17: #{tpu_custom_call.1} parent=11 // pred_check
          %p150 = pneg %p99
        $region18: #{tpu_custom_call.1} parent=11 // pred_check_branch
          %152 = sbr.rel (%p150) target = $region20
        $region19: #{tpu_custom_call.1} parent=11 // pred_region
          _
        $region20: #{tpu_custom_call.1} parent=11 // pred_fallthru
          _
      $region12: #{tpu_custom_call.1} parent=5 // pred_fallthru
        _
      %p153 = scmp.lt.s32.totalorder %s12, 2
      // Predicated region
      $region21: #{tpu_custom_call.1} parent=5 // pred_check
        %p154 = pneg %p153
      $region22: #{tpu_custom_call.1} parent=5 // pred_check_branch
        %156 = sbr.rel (%p154) target = $region24
      $region23: #{tpu_custom_call.1} parent=5 // pred_region
        // Predicated region
        $region25: #{tpu_custom_call.1} parent=23 // pred_check
          %p157 = pneg %p46
        $region26: #{tpu_custom_call.1} parent=23 // pred_check_branch
          %159 = sbr.rel (%p157) target = $region28
        $region27: #{tpu_custom_call.1} parent=23 // pred_region
          %s160 = smul.u32 256, %s20
          %p161 = scmp.lt.s32.totalorder %s19, 1
          %s162 = scalar_select %p161, %s19, 1
          %p163 = scmp.lt.s32.totalorder %s160, 255
          %s164 = scalar_select %p163, %s160, 255
          %s165 = smul.addr %s162, 256
          %s166 = sadd.s32 %s164, %s165
          %s167 = smul.addr %s166, 8
          %s168 = scalar_lea.vmem %s0, %s167
          %s169 = smul.u32 256, %s20
        $region28: #{tpu_custom_call.1} parent=23 // pred_fallthru
          _
      $region24: #{tpu_custom_call.1} parent=5 // pred_fallthru
        _
      %p170 = scmp.le.s32.totalorder 1, %s12
      %p171 = scmp.lt.s32.totalorder %s12, 3
      %p172 = pnand %p170, %p171
      %p173 = pneg %p172
      // Predicated region
      $region29: #{tpu_custom_call.1} parent=5 // pred_check
        _
      $region30: #{tpu_custom_call.1} parent=5 // pred_check_branch
        %175 = sbr.rel (%p172) target = $region32
      $region31: #{tpu_custom_call.1} parent=5 // pred_region
        %s176 = ssub.s32 %s12, 1
        %s177 = smul.u32 256, %s22
        %p178 = scmp.lt.s32.totalorder %s21, 1
        %s179 = scalar_select %p178, %s21, 1
        %p180 = scmp.lt.s32.totalorder %s177, 255
        %s181 = scalar_select %p180, %s177, 255
        %s182 = smul.addr %s179, 256
        %s183 = sadd.s32 %s181, %s182
        %s184 = smul.addr %s183, 8
        %s185 = scalar_lea.vmem %s0, %s184
        %p186 = pneg %p52
        %p187 = pneg %p49
        %s188 = smul.u32 256, %s22
        %p189 = scmp.lt.s32.totalorder %s188, 255
        %s190 = scalar_select %p189, %s188, 255
        %s191 = smul.addr %s190, 2
        %s192 = smul.addr %s191, 8
        %s193 = scalar_lea.vmem %s1, %s192
        %p194 = pneg %p78
        %p195 = pneg %p75
        %p196 = pneg %p99
        %p197 = pneg %p96
        %p198 = pneg %p125
        %p199 = pneg %p122
        %s200 = sand.u32 %s112, 1
        %s201 = scalar_lea.sflag [#allocation4], %s200
        %s202 = sand.u32 %s112, 1
        %s203 = smul.addr %s202, 2
        %s204 = scalar_lea.vmem [#allocation3], %s203
        %s205 = smul.u32 256, %s22
        %p206 = scmp.lt.s32.totalorder %s21, 1
        %s207 = scalar_select %p206, %s21, 1
        %p208 = scmp.lt.s32.totalorder %s205, 255
        %s209 = scalar_select %p208, %s205, 255
        %s210 = smul.addr %s207, 256
        %s211 = sadd.s32 %s209, %s210
        %s212 = smul.addr %s211, 8
        %s213 = scalar_lea.vmem %s0, %s212
        %s214 = smul.u32 256, %s22
        %s215 = smul.u32 256, %s22
        %p216 = scmp.lt.s32.totalorder %s215, 255
        %s217 = scalar_select %p216, %s215, 255
        %s218 = smul.addr %s217, 2
        %s219 = smul.addr %s218, 8
        %s220 = scalar_lea.vmem %s1, %s219
        %s221 = smul.u32 256, %s22
        %p222 = scmp.eq.s32.totalorder %s22, 0
        // Predicated region
        $region33: #{tpu_custom_call.1} parent=31 // pred_check
          %p223 = pneg %p222
        $region34: #{tpu_custom_call.1} parent=31 // pred_check_branch
          %225 = sbr.rel (%p223) target = $region36
        $region35: #{tpu_custom_call.1} parent=31 // pred_region
          %v226 = vlaneseq
          %vm227 = vcmp.ge.s32.totalorder %v226, 0
          %vm228 = vcmp.lt.s32.totalorder %v226, 256
          %vm229 = vmand %vm227, %vm228
          %230 = vst.msk [vmem:[#allocation2] sm:$0x3] %vm229, 0.0
        $region36: #{tpu_custom_call.1} parent=31 // pred_fallthru
          _
        %v231 = vld [vmem:[%s213] sm:$0xff]
        %v232 = vld [vmem:[%s213 + $0x8] sm:$0xff]
        %v233 = vld [vmem:[%s213 + $0x10] sm:$0xff]
        %v234 = vld [vmem:[%s213 + $0x18] sm:$0xff]
        %v235 = vld [vmem:[%s213 + $0x20] sm:$0xff]
        %v236 = vld [vmem:[%s213 + $0x28] sm:$0xff]
        %v237 = vld [vmem:[%s213 + $0x30] sm:$0xff]
        %v238 = vld [vmem:[%s213 + $0x38] sm:$0xff]
        %v239 = vld [vmem:[%s213 + $0x40] sm:$0xff]
        %v240 = vld [vmem:[%s213 + $0x48] sm:$0xff]
        %v241 = vld [vmem:[%s213 + $0x50] sm:$0xff]
        %v242 = vld [vmem:[%s213 + $0x58] sm:$0xff]
        %v243 = vld [vmem:[%s213 + $0x60] sm:$0xff]
        %v244 = vld [vmem:[%s213 + $0x68] sm:$0xff]
        %v245 = vld [vmem:[%s213 + $0x70] sm:$0xff]
        %v246 = vld [vmem:[%s213 + $0x78] sm:$0xff]
        %v247 = vld [vmem:[%s213 + $0x80] sm:$0xff]
        %v248 = vld [vmem:[%s213 + $0x88] sm:$0xff]
        %v249 = vld [vmem:[%s213 + $0x90] sm:$0xff]
        %v250 = vld [vmem:[%s213 + $0x98] sm:$0xff]
        %v251 = vld [vmem:[%s213 + $0xa0] sm:$0xff]
        %v252 = vld [vmem:[%s213 + $0xa8] sm:$0xff]
        %v253 = vld [vmem:[%s213 + $0xb0] sm:$0xff]
        %v254 = vld [vmem:[%s213 + $0xb8] sm:$0xff]
        %v255 = vld [vmem:[%s213 + $0xc0] sm:$0xff]
        %v256 = vld [vmem:[%s213 + $0xc8] sm:$0xff]
        %v257 = vld [vmem:[%s213 + $0xd0] sm:$0xff]
        %v258 = vld [vmem:[%s213 + $0xd8] sm:$0xff]
        %v259 = vld [vmem:[%s213 + $0xe0] sm:$0xff]
        %v260 = vld [vmem:[%s213 + $0xe8] sm:$0xff]
        %v261 = vld [vmem:[%s213 + $0xf0] sm:$0xff]
        %v262 = vld [vmem:[%s213 + $0xf8] sm:$0xff]
        %v263 = vld [vmem:[%s213 + $0x100] sm:$0xff]
        %v264 = vld [vmem:[%s213 + $0x108] sm:$0xff]
        %v265 = vld [vmem:[%s213 + $0x110] sm:$0xff]
        %v266 = vld [vmem:[%s213 + $0x118] sm:$0xff]
        %v267 = vld [vmem:[%s213 + $0x120] sm:$0xff]
        %v268 = vld [vmem:[%s213 + $0x128] sm:$0xff]
        %v269 = vld [vmem:[%s213 + $0x130] sm:$0xff]
        %v270 = vld [vmem:[%s213 + $0x138] sm:$0xff]
        %v271 = vld [vmem:[%s213 + $0x140] sm:$0xff]
        %v272 = vld [vmem:[%s213 + $0x148] sm:$0xff]
        %v273 = vld [vmem:[%s213 + $0x150] sm:$0xff]
        %v274 = vld [vmem:[%s213 + $0x158] sm:$0xff]
        %v275 = vld [vmem:[%s213 + $0x160] sm:$0xff]
        %v276 = vld [vmem:[%s213 + $0x168] sm:$0xff]
        %v277 = vld [vmem:[%s213 + $0x170] sm:$0xff]
        %v278 = vld [vmem:[%s213 + $0x178] sm:$0xff]
        %v279 = vld [vmem:[%s213 + $0x180] sm:$0xff]
        %v280 = vld [vmem:[%s213 + $0x188] sm:$0xff]
        %v281 = vld [vmem:[%s213 + $0x190] sm:$0xff]
        %v282 = vld [vmem:[%s213 + $0x198] sm:$0xff]
        %v283 = vld [vmem:[%s213 + $0x1a0] sm:$0xff]
        %v284 = vld [vmem:[%s213 + $0x1a8] sm:$0xff]
        %v285 = vld [vmem:[%s213 + $0x1b0] sm:$0xff]
        %v286 = vld [vmem:[%s213 + $0x1b8] sm:$0xff]
        %v287 = vld [vmem:[%s213 + $0x1c0] sm:$0xff]
        %v288 = vld [vmem:[%s213 + $0x1c8] sm:$0xff]
        %v289 = vld [vmem:[%s213 + $0x1d0] sm:$0xff]
        %v290 = vld [vmem:[%s213 + $0x1d8] sm:$0xff]
        %v291 = vld [vmem:[%s213 + $0x1e0] sm:$0xff]
        %v292 = vld [vmem:[%s213 + $0x1e8] sm:$0xff]
        %v293 = vld [vmem:[%s213 + $0x1f0] sm:$0xff]
        %v294 = vld [vmem:[%s213 + $0x1f8] sm:$0xff]
        %v295 = vld [vmem:[%s213 + $0x200] sm:$0xff]
        %v296 = vld [vmem:[%s213 + $0x208] sm:$0xff]
        %v297 = vld [vmem:[%s213 + $0x210] sm:$0xff]
        %v298 = vld [vmem:[%s213 + $0x218] sm:$0xff]
        %v299 = vld [vmem:[%s213 + $0x220] sm:$0xff]
        %v300 = vld [vmem:[%s213 + $0x228] sm:$0xff]
        %v301 = vld [vmem:[%s213 + $0x230] sm:$0xff]
        %v302 = vld [vmem:[%s213 + $0x238] sm:$0xff]
        %v303 = vld [vmem:[%s213 + $0x240] sm:$0xff]
        %v304 = vld [vmem:[%s213 + $0x248] sm:$0xff]
        %v305 = vld [vmem:[%s213 + $0x250] sm:$0xff]
        %v306 = vld [vmem:[%s213 + $0x258] sm:$0xff]
        %v307 = vld [vmem:[%s213 + $0x260] sm:$0xff]
        %v308 = vld [vmem:[%s213 + $0x268] sm:$0xff]
        %v309 = vld [vmem:[%s213 + $0x270] sm:$0xff]
        %v310 = vld [vmem:[%s213 + $0x278] sm:$0xff]
        %v311 = vld [vmem:[%s213 + $0x280] sm:$0xff]
        %v312 = vld [vmem:[%s213 + $0x288] sm:$0xff]
        %v313 = vld [vmem:[%s213 + $0x290] sm:$0xff]
        %v314 = vld [vmem:[%s213 + $0x298] sm:$0xff]
        %v315 = vld [vmem:[%s213 + $0x2a0] sm:$0xff]
        %v316 = vld [vmem:[%s213 + $0x2a8] sm:$0xff]
        %v317 = vld [vmem:[%s213 + $0x2b0] sm:$0xff]
        %v318 = vld [vmem:[%s213 + $0x2b8] sm:$0xff]
        %v319 = vld [vmem:[%s213 + $0x2c0] sm:$0xff]
        %v320 = vld [vmem:[%s213 + $0x2c8] sm:$0xff]
        %v321 = vld [vmem:[%s213 + $0x2d0] sm:$0xff]
        %v322 = vld [vmem:[%s213 + $0x2d8] sm:$0xff]
        %v323 = vld [vmem:[%s213 + $0x2e0] sm:$0xff]
        %v324 = vld [vmem:[%s213 + $0x2e8] sm:$0xff]
        %v325 = vld [vmem:[%s213 + $0x2f0] sm:$0xff]
        %v326 = vld [vmem:[%s213 + $0x2f8] sm:$0xff]
        %v327 = vld [vmem:[%s213 + $0x300] sm:$0xff]
        %v328 = vld [vmem:[%s213 + $0x308] sm:$0xff]
        %v329 = vld [vmem:[%s213 + $0x310] sm:$0xff]
        %v330 = vld [vmem:[%s213 + $0x318] sm:$0xff]
        %v331 = vld [vmem:[%s213 + $0x320] sm:$0xff]
        %v332 = vld [vmem:[%s213 + $0x328] sm:$0xff]
        %v333 = vld [vmem:[%s213 + $0x330] sm:$0xff]
        %v334 = vld [vmem:[%s213 + $0x338] sm:$0xff]
        %v335 = vld [vmem:[%s213 + $0x340] sm:$0xff]
        %v336 = vld [vmem:[%s213 + $0x348] sm:$0xff]
        %v337 = vld [vmem:[%s213 + $0x350] sm:$0xff]
        %v338 = vld [vmem:[%s213 + $0x358] sm:$0xff]
        %v339 = vld [vmem:[%s213 + $0x360] sm:$0xff]
        %v340 = vld [vmem:[%s213 + $0x368] sm:$0xff]
        %v341 = vld [vmem:[%s213 + $0x370] sm:$0xff]
        %v342 = vld [vmem:[%s213 + $0x378] sm:$0xff]
        %v343 = vld [vmem:[%s213 + $0x380] sm:$0xff]
        %v344 = vld [vmem:[%s213 + $0x388] sm:$0xff]
        %v345 = vld [vmem:[%s213 + $0x390] sm:$0xff]
        %v346 = vld [vmem:[%s213 + $0x398] sm:$0xff]
        %v347 = vld [vmem:[%s213 + $0x3a0] sm:$0xff]
        %v348 = vld [vmem:[%s213 + $0x3a8] sm:$0xff]
        %v349 = vld [vmem:[%s213 + $0x3b0] sm:$0xff]
        %v350 = vld [vmem:[%s213 + $0x3b8] sm:$0xff]
        %v351 = vld [vmem:[%s213 + $0x3c0] sm:$0xff]
        %v352 = vld [vmem:[%s213 + $0x3c8] sm:$0xff]
        %v353 = vld [vmem:[%s213 + $0x3d0] sm:$0xff]
        %v354 = vld [vmem:[%s213 + $0x3d8] sm:$0xff]
        %v355 = vld [vmem:[%s213 + $0x3e0] sm:$0xff]
        %v356 = vld [vmem:[%s213 + $0x3e8] sm:$0xff]
        %v357 = vld [vmem:[%s213 + $0x3f0] sm:$0xff]
        %v358 = vld [vmem:[%s213 + $0x3f8] sm:$0xff]
        %v359 = vld [vmem:[%s213 + $0x400] sm:$0xff]
        %v360 = vld [vmem:[%s213 + $0x408] sm:$0xff]
        %v361 = vld [vmem:[%s213 + $0x410] sm:$0xff]
        %v362 = vld [vmem:[%s213 + $0x418] sm:$0xff]
        %v363 = vld [vmem:[%s213 + $0x420] sm:$0xff]
        %v364 = vld [vmem:[%s213 + $0x428] sm:$0xff]
        %v365 = vld [vmem:[%s213 + $0x430] sm:$0xff]
        %v366 = vld [vmem:[%s213 + $0x438] sm:$0xff]
        %v367 = vld [vmem:[%s213 + $0x440] sm:$0xff]
        %v368 = vld [vmem:[%s213 + $0x448] sm:$0xff]
        %v369 = vld [vmem:[%s213 + $0x450] sm:$0xff]
        %v370 = vld [vmem:[%s213 + $0x458] sm:$0xff]
        %v371 = vld [vmem:[%s213 + $0x460] sm:$0xff]
        %v372 = vld [vmem:[%s213 + $0x468] sm:$0xff]
        %v373 = vld [vmem:[%s213 + $0x470] sm:$0xff]
        %v374 = vld [vmem:[%s213 + $0x478] sm:$0xff]
        %v375 = vld [vmem:[%s213 + $0x480] sm:$0xff]
        %v376 = vld [vmem:[%s213 + $0x488] sm:$0xff]
        %v377 = vld [vmem:[%s213 + $0x490] sm:$0xff]
        %v378 = vld [vmem:[%s213 + $0x498] sm:$0xff]
        %v379 = vld [vmem:[%s213 + $0x4a0] sm:$0xff]
        %v380 = vld [vmem:[%s213 + $0x4a8] sm:$0xff]
        %v381 = vld [vmem:[%s213 + $0x4b0] sm:$0xff]
        %v382 = vld [vmem:[%s213 + $0x4b8] sm:$0xff]
        %v383 = vld [vmem:[%s213 + $0x4c0] sm:$0xff]
        %v384 = vld [vmem:[%s213 + $0x4c8] sm:$0xff]
        %v385 = vld [vmem:[%s213 + $0x4d0] sm:$0xff]
        %v386 = vld [vmem:[%s213 + $0x4d8] sm:$0xff]
        %v387 = vld [vmem:[%s213 + $0x4e0] sm:$0xff]
        %v388 = vld [vmem:[%s213 + $0x4e8] sm:$0xff]
        %v389 = vld [vmem:[%s213 + $0x4f0] sm:$0xff]
        %v390 = vld [vmem:[%s213 + $0x4f8] sm:$0xff]
        %v391 = vld [vmem:[%s213 + $0x500] sm:$0xff]
        %v392 = vld [vmem:[%s213 + $0x508] sm:$0xff]
        %v393 = vld [vmem:[%s213 + $0x510] sm:$0xff]
        %v394 = vld [vmem:[%s213 + $0x518] sm:$0xff]
        %v395 = vld [vmem:[%s213 + $0x520] sm:$0xff]
        %v396 = vld [vmem:[%s213 + $0x528] sm:$0xff]
        %v397 = vld [vmem:[%s213 + $0x530] sm:$0xff]
        %v398 = vld [vmem:[%s213 + $0x538] sm:$0xff]
        %v399 = vld [vmem:[%s213 + $0x540] sm:$0xff]
        %v400 = vld [vmem:[%s213 + $0x548] sm:$0xff]
        %v401 = vld [vmem:[%s213 + $0x550] sm:$0xff]
        %v402 = vld [vmem:[%s213 + $0x558] sm:$0xff]
        %v403 = vld [vmem:[%s213 + $0x560] sm:$0xff]
        %v404 = vld [vmem:[%s213 + $0x568] sm:$0xff]
        %v405 = vld [vmem:[%s213 + $0x570] sm:$0xff]
        %v406 = vld [vmem:[%s213 + $0x578] sm:$0xff]
        %v407 = vld [vmem:[%s213 + $0x580] sm:$0xff]
        %v408 = vld [vmem:[%s213 + $0x588] sm:$0xff]
        %v409 = vld [vmem:[%s213 + $0x590] sm:$0xff]
        %v410 = vld [vmem:[%s213 + $0x598] sm:$0xff]
        %v411 = vld [vmem:[%s213 + $0x5a0] sm:$0xff]
        %v412 = vld [vmem:[%s213 + $0x5a8] sm:$0xff]
        %v413 = vld [vmem:[%s213 + $0x5b0] sm:$0xff]
        %v414 = vld [vmem:[%s213 + $0x5b8] sm:$0xff]
        %v415 = vld [vmem:[%s213 + $0x5c0] sm:$0xff]
        %v416 = vld [vmem:[%s213 + $0x5c8] sm:$0xff]
        %v417 = vld [vmem:[%s213 + $0x5d0] sm:$0xff]
        %v418 = vld [vmem:[%s213 + $0x5d8] sm:$0xff]
        %v419 = vld [vmem:[%s213 + $0x5e0] sm:$0xff]
        %v420 = vld [vmem:[%s213 + $0x5e8] sm:$0xff]
        %v421 = vld [vmem:[%s213 + $0x5f0] sm:$0xff]
        %v422 = vld [vmem:[%s213 + $0x5f8] sm:$0xff]
        %v423 = vld [vmem:[%s213 + $0x600] sm:$0xff]
        %v424 = vld [vmem:[%s213 + $0x608] sm:$0xff]
        %v425 = vld [vmem:[%s213 + $0x610] sm:$0xff]
        %v426 = vld [vmem:[%s213 + $0x618] sm:$0xff]
        %v427 = vld [vmem:[%s213 + $0x620] sm:$0xff]
        %v428 = vld [vmem:[%s213 + $0x628] sm:$0xff]
        %v429 = vld [vmem:[%s213 + $0x630] sm:$0xff]
        %v430 = vld [vmem:[%s213 + $0x638] sm:$0xff]
        %v431 = vld [vmem:[%s213 + $0x640] sm:$0xff]
        %v432 = vld [vmem:[%s213 + $0x648] sm:$0xff]
        %v433 = vld [vmem:[%s213 + $0x650] sm:$0xff]
        %v434 = vld [vmem:[%s213 + $0x658] sm:$0xff]
        %v435 = vld [vmem:[%s213 + $0x660] sm:$0xff]
        %v436 = vld [vmem:[%s213 + $0x668] sm:$0xff]
        %v437 = vld [vmem:[%s213 + $0x670] sm:$0xff]
        %v438 = vld [vmem:[%s213 + $0x678] sm:$0xff]
        %v439 = vld [vmem:[%s213 + $0x680] sm:$0xff]
        %v440 = vld [vmem:[%s213 + $0x688] sm:$0xff]
        %v441 = vld [vmem:[%s213 + $0x690] sm:$0xff]
        %v442 = vld [vmem:[%s213 + $0x698] sm:$0xff]
        %v443 = vld [vmem:[%s213 + $0x6a0] sm:$0xff]
        %v444 = vld [vmem:[%s213 + $0x6a8] sm:$0xff]
        %v445 = vld [vmem:[%s213 + $0x6b0] sm:$0xff]
        %v446 = vld [vmem:[%s213 + $0x6b8] sm:$0xff]
        %v447 = vld [vmem:[%s213 + $0x6c0] sm:$0xff]
        %v448 = vld [vmem:[%s213 + $0x6c8] sm:$0xff]
        %v449 = vld [vmem:[%s213 + $0x6d0] sm:$0xff]
        %v450 = vld [vmem:[%s213 + $0x6d8] sm:$0xff]
        %v451 = vld [vmem:[%s213 + $0x6e0] sm:$0xff]
        %v452 = vld [vmem:[%s213 + $0x6e8] sm:$0xff]
        %v453 = vld [vmem:[%s213 + $0x6f0] sm:$0xff]
        %v454 = vld [vmem:[%s213 + $0x6f8] sm:$0xff]
        %v455 = vld [vmem:[%s213 + $0x700] sm:$0xff]
        %v456 = vld [vmem:[%s213 + $0x708] sm:$0xff]
        %v457 = vld [vmem:[%s213 + $0x710] sm:$0xff]
        %v458 = vld [vmem:[%s213 + $0x718] sm:$0xff]
        %v459 = vld [vmem:[%s213 + $0x720] sm:$0xff]
        %v460 = vld [vmem:[%s213 + $0x728] sm:$0xff]
        %v461 = vld [vmem:[%s213 + $0x730] sm:$0xff]
        %v462 = vld [vmem:[%s213 + $0x738] sm:$0xff]
        %v463 = vld [vmem:[%s213 + $0x740] sm:$0xff]
        %v464 = vld [vmem:[%s213 + $0x748] sm:$0xff]
        %v465 = vld [vmem:[%s213 + $0x750] sm:$0xff]
        %v466 = vld [vmem:[%s213 + $0x758] sm:$0xff]
        %v467 = vld [vmem:[%s213 + $0x760] sm:$0xff]
        %v468 = vld [vmem:[%s213 + $0x768] sm:$0xff]
        %v469 = vld [vmem:[%s213 + $0x770] sm:$0xff]
        %v470 = vld [vmem:[%s213 + $0x778] sm:$0xff]
        %v471 = vld [vmem:[%s213 + $0x780] sm:$0xff]
        %v472 = vld [vmem:[%s213 + $0x788] sm:$0xff]
        %v473 = vld [vmem:[%s213 + $0x790] sm:$0xff]
        %v474 = vld [vmem:[%s213 + $0x798] sm:$0xff]
        %v475 = vld [vmem:[%s213 + $0x7a0] sm:$0xff]
        %v476 = vld [vmem:[%s213 + $0x7a8] sm:$0xff]
        %v477 = vld [vmem:[%s213 + $0x7b0] sm:$0xff]
        %v478 = vld [vmem:[%s213 + $0x7b8] sm:$0xff]
        %v479 = vld [vmem:[%s213 + $0x7c0] sm:$0xff]
        %v480 = vld [vmem:[%s213 + $0x7c8] sm:$0xff]
        %v481 = vld [vmem:[%s213 + $0x7d0] sm:$0xff]
        %v482 = vld [vmem:[%s213 + $0x7d8] sm:$0xff]
        %v483 = vld [vmem:[%s213 + $0x7e0] sm:$0xff]
        %v484 = vld [vmem:[%s213 + $0x7e8] sm:$0xff]
        %v485 = vld [vmem:[%s213 + $0x7f0] sm:$0xff]
        %v486 = vld [vmem:[%s213 + $0x7f8] sm:$0xff]
        %vm487 = vcmask 523264
        %v488 = vsel %vm487, %v231, 0.0
        %489 = vadd.xlane.f32.xlu0 %v488
        %v490 = vpop.xlane.xlu0 %489
        %v491 = vsel %vm487, %v232, 0.0
        %492 = vadd.xlane.f32.xlu0 %v491
        %v493 = vpop.xlane.xlu0 %492
        %v494 = vsel %vm487, %v233, 0.0
        %495 = vadd.xlane.f32.xlu0 %v494
        %v496 = vpop.xlane.xlu0 %495
        %v497 = vsel %vm487, %v234, 0.0
        %498 = vadd.xlane.f32.xlu0 %v497
        %v499 = vpop.xlane.xlu0 %498
        %v500 = vsel %vm487, %v235, 0.0
        %501 = vadd.xlane.f32.xlu0 %v500
        %v502 = vpop.xlane.xlu0 %501
        %v503 = vsel %vm487, %v236, 0.0
        %504 = vadd.xlane.f32.xlu0 %v503
        %v505 = vpop.xlane.xlu0 %504
        %v506 = vsel %vm487, %v237, 0.0
        %507 = vadd.xlane.f32.xlu0 %v506
        %v508 = vpop.xlane.xlu0 %507
        %v509 = vsel %vm487, %v238, 0.0
        %510 = vadd.xlane.f32.xlu0 %v509
        %v511 = vpop.xlane.xlu0 %510
        %v512 = vsel %vm487, %v239, 0.0
        %513 = vadd.xlane.f32.xlu0 %v512
        %v514 = vpop.xlane.xlu0 %513
        %v515 = vsel %vm487, %v240, 0.0
        %516 = vadd.xlane.f32.xlu0 %v515
        %v517 = vpop.xlane.xlu0 %516
        %v518 = vsel %vm487, %v241, 0.0
        %519 = vadd.xlane.f32.xlu0 %v518
        %v520 = vpop.xlane.xlu0 %519
        %v521 = vsel %vm487, %v242, 0.0
        %522 = vadd.xlane.f32.xlu0 %v521
        %v523 = vpop.xlane.xlu0 %522
        %v524 = vsel %vm487, %v243, 0.0
        %525 = vadd.xlane.f32.xlu0 %v524
        %v526 = vpop.xlane.xlu0 %525
        %v527 = vsel %vm487, %v244, 0.0
        %528 = vadd.xlane.f32.xlu0 %v527
        %v529 = vpop.xlane.xlu0 %528
        %v530 = vsel %vm487, %v245, 0.0
        %531 = vadd.xlane.f32.xlu0 %v530
        %v532 = vpop.xlane.xlu0 %531
        %v533 = vsel %vm487, %v246, 0.0
        %534 = vadd.xlane.f32.xlu0 %v533
        %v535 = vpop.xlane.xlu0 %534
        %v536 = vsel %vm487, %v247, 0.0
        %537 = vadd.xlane.f32.xlu0 %v536
        %v538 = vpop.xlane.xlu0 %537
        %v539 = vsel %vm487, %v248, 0.0
        %540 = vadd.xlane.f32.xlu0 %v539
        %v541 = vpop.xlane.xlu0 %540
        %v542 = vsel %vm487, %v249, 0.0
        %543 = vadd.xlane.f32.xlu0 %v542
        %v544 = vpop.xlane.xlu0 %543
        %v545 = vsel %vm487, %v250, 0.0
        %546 = vadd.xlane.f32.xlu0 %v545
        %v547 = vpop.xlane.xlu0 %546
        %v548 = vsel %vm487, %v251, 0.0
        %549 = vadd.xlane.f32.xlu0 %v548
        %v550 = vpop.xlane.xlu0 %549
        %v551 = vsel %vm487, %v252, 0.0
        %552 = vadd.xlane.f32.xlu0 %v551
        %v553 = vpop.xlane.xlu0 %552
        %v554 = vsel %vm487, %v253, 0.0
        %555 = vadd.xlane.f32.xlu0 %v554
        %v556 = vpop.xlane.xlu0 %555
        %v557 = vsel %vm487, %v254, 0.0
        %558 = vadd.xlane.f32.xlu0 %v557
        %v559 = vpop.xlane.xlu0 %558
        %v560 = vsel %vm487, %v255, 0.0
        %561 = vadd.xlane.f32.xlu0 %v560
        %v562 = vpop.xlane.xlu0 %561
        %v563 = vsel %vm487, %v256, 0.0
        %564 = vadd.xlane.f32.xlu0 %v563
        %v565 = vpop.xlane.xlu0 %564
        %v566 = vsel %vm487, %v257, 0.0
        %567 = vadd.xlane.f32.xlu0 %v566
        %v568 = vpop.xlane.xlu0 %567
        %v569 = vsel %vm487, %v258, 0.0
        %570 = vadd.xlane.f32.xlu0 %v569
        %v571 = vpop.xlane.xlu0 %570
        %v572 = vsel %vm487, %v259, 0.0
        %573 = vadd.xlane.f32.xlu0 %v572
        %v574 = vpop.xlane.xlu0 %573
        %v575 = vsel %vm487, %v260, 0.0
        %576 = vadd.xlane.f32.xlu0 %v575
        %v577 = vpop.xlane.xlu0 %576
        %v578 = vsel %vm487, %v261, 0.0
        %579 = vadd.xlane.f32.xlu0 %v578
        %v580 = vpop.xlane.xlu0 %579
        %v581 = vsel %vm487, %v262, 0.0
        %582 = vadd.xlane.f32.xlu0 %v581
        %v583 = vpop.xlane.xlu0 %582
        %v584 = vsel %vm487, %v263, 0.0
        %585 = vadd.xlane.f32.xlu0 %v584
        %v586 = vpop.xlane.xlu0 %585
        %v587 = vsel %vm487, %v264, 0.0
        %588 = vadd.xlane.f32.xlu0 %v587
        %v589 = vpop.xlane.xlu0 %588
        %v590 = vsel %vm487, %v265, 0.0
        %591 = vadd.xlane.f32.xlu0 %v590
        %v592 = vpop.xlane.xlu0 %591
        %v593 = vsel %vm487, %v266, 0.0
        %594 = vadd.xlane.f32.xlu0 %v593
        %v595 = vpop.xlane.xlu0 %594
        %v596 = vsel %vm487, %v267, 0.0
        %597 = vadd.xlane.f32.xlu0 %v596
        %v598 = vpop.xlane.xlu0 %597
        %v599 = vsel %vm487, %v268, 0.0
        %600 = vadd.xlane.f32.xlu0 %v599
        %v601 = vpop.xlane.xlu0 %600
        %v602 = vsel %vm487, %v269, 0.0
        %603 = vadd.xlane.f32.xlu0 %v602
        %v604 = vpop.xlane.xlu0 %603
        %v605 = vsel %vm487, %v270, 0.0
        %606 = vadd.xlane.f32.xlu0 %v605
        %v607 = vpop.xlane.xlu0 %606
        %v608 = vsel %vm487, %v271, 0.0
        %609 = vadd.xlane.f32.xlu0 %v608
        %v610 = vpop.xlane.xlu0 %609
        %v611 = vsel %vm487, %v272, 0.0
        %612 = vadd.xlane.f32.xlu0 %v611
        %v613 = vpop.xlane.xlu0 %612
        %v614 = vsel %vm487, %v273, 0.0
        %615 = vadd.xlane.f32.xlu0 %v614
        %v616 = vpop.xlane.xlu0 %615
        %v617 = vsel %vm487, %v274, 0.0
        %618 = vadd.xlane.f32.xlu0 %v617
        %v619 = vpop.xlane.xlu0 %618
        %v620 = vsel %vm487, %v275, 0.0
        %621 = vadd.xlane.f32.xlu0 %v620
        %v622 = vpop.xlane.xlu0 %621
        %v623 = vsel %vm487, %v276, 0.0
        %624 = vadd.xlane.f32.xlu0 %v623
        %v625 = vpop.xlane.xlu0 %624
        %v626 = vsel %vm487, %v277, 0.0
        %627 = vadd.xlane.f32.xlu0 %v626
        %v628 = vpop.xlane.xlu0 %627
        %v629 = vsel %vm487, %v278, 0.0
        %630 = vadd.xlane.f32.xlu0 %v629
        %v631 = vpop.xlane.xlu0 %630
        %v632 = vsel %vm487, %v279, 0.0
        %633 = vadd.xlane.f32.xlu0 %v632
        %v634 = vpop.xlane.xlu0 %633
        %v635 = vsel %vm487, %v280, 0.0
        %636 = vadd.xlane.f32.xlu0 %v635
        %v637 = vpop.xlane.xlu0 %636
        %v638 = vsel %vm487, %v281, 0.0
        %639 = vadd.xlane.f32.xlu0 %v638
        %v640 = vpop.xlane.xlu0 %639
        %v641 = vsel %vm487, %v282, 0.0
        %642 = vadd.xlane.f32.xlu0 %v641
        %v643 = vpop.xlane.xlu0 %642
        %v644 = vsel %vm487, %v283, 0.0
        %645 = vadd.xlane.f32.xlu0 %v644
        %v646 = vpop.xlane.xlu0 %645
        %v647 = vsel %vm487, %v284, 0.0
        %648 = vadd.xlane.f32.xlu0 %v647
        %v649 = vpop.xlane.xlu0 %648
        %v650 = vsel %vm487, %v285, 0.0
        %651 = vadd.xlane.f32.xlu0 %v650
        %v652 = vpop.xlane.xlu0 %651
        %v653 = vsel %vm487, %v286, 0.0
        %654 = vadd.xlane.f32.xlu0 %v653
        %v655 = vpop.xlane.xlu0 %654
        %v656 = vsel %vm487, %v287, 0.0
        %657 = vadd.xlane.f32.xlu0 %v656
        %v658 = vpop.xlane.xlu0 %657
        %v659 = vsel %vm487, %v288, 0.0
        %660 = vadd.xlane.f32.xlu0 %v659
        %v661 = vpop.xlane.xlu0 %660
        %v662 = vsel %vm487, %v289, 0.0
        %663 = vadd.xlane.f32.xlu0 %v662
        %v664 = vpop.xlane.xlu0 %663
        %v665 = vsel %vm487, %v290, 0.0
        %666 = vadd.xlane.f32.xlu0 %v665
        %v667 = vpop.xlane.xlu0 %666
        %v668 = vsel %vm487, %v291, 0.0
        %669 = vadd.xlane.f32.xlu0 %v668
        %v670 = vpop.xlane.xlu0 %669
        %v671 = vsel %vm487, %v292, 0.0
        %672 = vadd.xlane.f32.xlu0 %v671
        %v673 = vpop.xlane.xlu0 %672
        %v674 = vsel %vm487, %v293, 0.0
        %675 = vadd.xlane.f32.xlu0 %v674
        %v676 = vpop.xlane.xlu0 %675
        %v677 = vsel %vm487, %v294, 0.0
        %678 = vadd.xlane.f32.xlu0 %v677
        %v679 = vpop.xlane.xlu0 %678
        %v680 = vsel %vm487, %v295, 0.0
        %681 = vadd.xlane.f32.xlu0 %v680
        %v682 = vpop.xlane.xlu0 %681
        %v683 = vsel %vm487, %v296, 0.0
        %684 = vadd.xlane.f32.xlu0 %v683
        %v685 = vpop.xlane.xlu0 %684
        %v686 = vsel %vm487, %v297, 0.0
        %687 = vadd.xlane.f32.xlu0 %v686
        %v688 = vpop.xlane.xlu0 %687
        %v689 = vsel %vm487, %v298, 0.0
        %690 = vadd.xlane.f32.xlu0 %v689
        %v691 = vpop.xlane.xlu0 %690
        %v692 = vsel %vm487, %v299, 0.0
        %693 = vadd.xlane.f32.xlu0 %v692
        %v694 = vpop.xlane.xlu0 %693
        %v695 = vsel %vm487, %v300, 0.0
        %696 = vadd.xlane.f32.xlu0 %v695
        %v697 = vpop.xlane.xlu0 %696
        %v698 = vsel %vm487, %v301, 0.0
        %699 = vadd.xlane.f32.xlu0 %v698
        %v700 = vpop.xlane.xlu0 %699
        %v701 = vsel %vm487, %v302, 0.0
        %702 = vadd.xlane.f32.xlu0 %v701
        %v703 = vpop.xlane.xlu0 %702
        %v704 = vsel %vm487, %v303, 0.0
        %705 = vadd.xlane.f32.xlu0 %v704
        %v706 = vpop.xlane.xlu0 %705
        %v707 = vsel %vm487, %v304, 0.0
        %708 = vadd.xlane.f32.xlu0 %v707
        %v709 = vpop.xlane.xlu0 %708
        %v710 = vsel %vm487, %v305, 0.0
        %711 = vadd.xlane.f32.xlu0 %v710
        %v712 = vpop.xlane.xlu0 %711
        %v713 = vsel %vm487, %v306, 0.0
        %714 = vadd.xlane.f32.xlu0 %v713
        %v715 = vpop.xlane.xlu0 %714
        %v716 = vsel %vm487, %v307, 0.0
        %717 = vadd.xlane.f32.xlu0 %v716
        %v718 = vpop.xlane.xlu0 %717
        %v719 = vsel %vm487, %v308, 0.0
        %720 = vadd.xlane.f32.xlu0 %v719
        %v721 = vpop.xlane.xlu0 %720
        %v722 = vsel %vm487, %v309, 0.0
        %723 = vadd.xlane.f32.xlu0 %v722
        %v724 = vpop.xlane.xlu0 %723
        %v725 = vsel %vm487, %v310, 0.0
        %726 = vadd.xlane.f32.xlu0 %v725
        %v727 = vpop.xlane.xlu0 %726
        %v728 = vsel %vm487, %v311, 0.0
        %729 = vadd.xlane.f32.xlu0 %v728
        %v730 = vpop.xlane.xlu0 %729
        %v731 = vsel %vm487, %v312, 0.0
        %732 = vadd.xlane.f32.xlu0 %v731
        %v733 = vpop.xlane.xlu0 %732
        %v734 = vsel %vm487, %v313, 0.0
        %735 = vadd.xlane.f32.xlu0 %v734
        %v736 = vpop.xlane.xlu0 %735
        %v737 = vsel %vm487, %v314, 0.0
        %738 = vadd.xlane.f32.xlu0 %v737
        %v739 = vpop.xlane.xlu0 %738
        %v740 = vsel %vm487, %v315, 0.0
        %741 = vadd.xlane.f32.xlu0 %v740
        %v742 = vpop.xlane.xlu0 %741
        %v743 = vsel %vm487, %v316, 0.0
        %744 = vadd.xlane.f32.xlu0 %v743
        %v745 = vpop.xlane.xlu0 %744
        %v746 = vsel %vm487, %v317, 0.0
        %747 = vadd.xlane.f32.xlu0 %v746
        %v748 = vpop.xlane.xlu0 %747
        %v749 = vsel %vm487, %v318, 0.0
        %750 = vadd.xlane.f32.xlu0 %v749
        %v751 = vpop.xlane.xlu0 %750
        %v752 = vsel %vm487, %v319, 0.0
        %753 = vadd.xlane.f32.xlu0 %v752
        %v754 = vpop.xlane.xlu0 %753
        %v755 = vsel %vm487, %v320, 0.0
        %756 = vadd.xlane.f32.xlu0 %v755
        %v757 = vpop.xlane.xlu0 %756
        %v758 = vsel %vm487, %v321, 0.0
        %759 = vadd.xlane.f32.xlu0 %v758
        %v760 = vpop.xlane.xlu0 %759
        %v761 = vsel %vm487, %v322, 0.0
        %762 = vadd.xlane.f32.xlu0 %v761
        %v763 = vpop.xlane.xlu0 %762
        %v764 = vsel %vm487, %v323, 0.0
        %765 = vadd.xlane.f32.xlu0 %v764
        %v766 = vpop.xlane.xlu0 %765
        %v767 = vsel %vm487, %v324, 0.0
        %768 = vadd.xlane.f32.xlu0 %v767
        %v769 = vpop.xlane.xlu0 %768
        %v770 = vsel %vm487, %v325, 0.0
        %771 = vadd.xlane.f32.xlu0 %v770
        %v772 = vpop.xlane.xlu0 %771
        %v773 = vsel %vm487, %v326, 0.0
        %774 = vadd.xlane.f32.xlu0 %v773
        %v775 = vpop.xlane.xlu0 %774
        %v776 = vsel %vm487, %v327, 0.0
        %777 = vadd.xlane.f32.xlu0 %v776
        %v778 = vpop.xlane.xlu0 %777
        %v779 = vsel %vm487, %v328, 0.0
        %780 = vadd.xlane.f32.xlu0 %v779
        %v781 = vpop.xlane.xlu0 %780
        %v782 = vsel %vm487, %v329, 0.0
        %783 = vadd.xlane.f32.xlu0 %v782
        %v784 = vpop.xlane.xlu0 %783
        %v785 = vsel %vm487, %v330, 0.0
        %786 = vadd.xlane.f32.xlu0 %v785
        %v787 = vpop.xlane.xlu0 %786
        %v788 = vsel %vm487, %v331, 0.0
        %789 = vadd.xlane.f32.xlu0 %v788
        %v790 = vpop.xlane.xlu0 %789
        %v791 = vsel %vm487, %v332, 0.0
        %792 = vadd.xlane.f32.xlu0 %v791
        %v793 = vpop.xlane.xlu0 %792
        %v794 = vsel %vm487, %v333, 0.0
        %795 = vadd.xlane.f32.xlu0 %v794
        %v796 = vpop.xlane.xlu0 %795
        %v797 = vsel %vm487, %v334, 0.0
        %798 = vadd.xlane.f32.xlu0 %v797
        %v799 = vpop.xlane.xlu0 %798
        %v800 = vsel %vm487, %v335, 0.0
        %801 = vadd.xlane.f32.xlu0 %v800
        %v802 = vpop.xlane.xlu0 %801
        %v803 = vsel %vm487, %v336, 0.0
        %804 = vadd.xlane.f32.xlu0 %v803
        %v805 = vpop.xlane.xlu0 %804
        %v806 = vsel %vm487, %v337, 0.0
        %807 = vadd.xlane.f32.xlu0 %v806
        %v808 = vpop.xlane.xlu0 %807
        %v809 = vsel %vm487, %v338, 0.0
        %810 = vadd.xlane.f32.xlu0 %v809
        %v811 = vpop.xlane.xlu0 %810
        %v812 = vsel %vm487, %v339, 0.0
        %813 = vadd.xlane.f32.xlu0 %v812
        %v814 = vpop.xlane.xlu0 %813
        %v815 = vsel %vm487, %v340, 0.0
        %816 = vadd.xlane.f32.xlu0 %v815
        %v817 = vpop.xlane.xlu0 %816
        %v818 = vsel %vm487, %v341, 0.0
        %819 = vadd.xlane.f32.xlu0 %v818
        %v820 = vpop.xlane.xlu0 %819
        %v821 = vsel %vm487, %v342, 0.0
        %822 = vadd.xlane.f32.xlu0 %v821
        %v823 = vpop.xlane.xlu0 %822
        %v824 = vsel %vm487, %v343, 0.0
        %825 = vadd.xlane.f32.xlu0 %v824
        %v826 = vpop.xlane.xlu0 %825
        %v827 = vsel %vm487, %v344, 0.0
        %828 = vadd.xlane.f32.xlu0 %v827
        %v829 = vpop.xlane.xlu0 %828
        %v830 = vsel %vm487, %v345, 0.0
        %831 = vadd.xlane.f32.xlu0 %v830
        %v832 = vpop.xlane.xlu0 %831
        %v833 = vsel %vm487, %v346, 0.0
        %834 = vadd.xlane.f32.xlu0 %v833
        %v835 = vpop.xlane.xlu0 %834
        %v836 = vsel %vm487, %v347, 0.0
        %837 = vadd.xlane.f32.xlu0 %v836
        %v838 = vpop.xlane.xlu0 %837
        %v839 = vsel %vm487, %v348, 0.0
        %840 = vadd.xlane.f32.xlu0 %v839
        %v841 = vpop.xlane.xlu0 %840
        %v842 = vsel %vm487, %v349, 0.0
        %843 = vadd.xlane.f32.xlu0 %v842
        %v844 = vpop.xlane.xlu0 %843
        %v845 = vsel %vm487, %v350, 0.0
        %846 = vadd.xlane.f32.xlu0 %v845
        %v847 = vpop.xlane.xlu0 %846
        %v848 = vsel %vm487, %v351, 0.0
        %849 = vadd.xlane.f32.xlu0 %v848
        %v850 = vpop.xlane.xlu0 %849
        %v851 = vsel %vm487, %v352, 0.0
        %852 = vadd.xlane.f32.xlu0 %v851
        %v853 = vpop.xlane.xlu0 %852
        %v854 = vsel %vm487, %v353, 0.0
        %855 = vadd.xlane.f32.xlu0 %v854
        %v856 = vpop.xlane.xlu0 %855
        %v857 = vsel %vm487, %v354, 0.0
        %858 = vadd.xlane.f32.xlu0 %v857
        %v859 = vpop.xlane.xlu0 %858
        %v860 = vsel %vm487, %v355, 0.0
        %861 = vadd.xlane.f32.xlu0 %v860
        %v862 = vpop.xlane.xlu0 %861
        %v863 = vsel %vm487, %v356, 0.0
        %864 = vadd.xlane.f32.xlu0 %v863
        %v865 = vpop.xlane.xlu0 %864
        %v866 = vsel %vm487, %v357, 0.0
        %867 = vadd.xlane.f32.xlu0 %v866
        %v868 = vpop.xlane.xlu0 %867
        %v869 = vsel %vm487, %v358, 0.0
        %870 = vadd.xlane.f32.xlu0 %v869
        %v871 = vpop.xlane.xlu0 %870
        %v872 = vsel %vm487, %v359, 0.0
        %873 = vadd.xlane.f32.xlu0 %v872
        %v874 = vpop.xlane.xlu0 %873
        %v875 = vsel %vm487, %v360, 0.0
        %876 = vadd.xlane.f32.xlu0 %v875
        %v877 = vpop.xlane.xlu0 %876
        %v878 = vsel %vm487, %v361, 0.0
        %879 = vadd.xlane.f32.xlu0 %v878
        %v880 = vpop.xlane.xlu0 %879
        %v881 = vsel %vm487, %v362, 0.0
        %882 = vadd.xlane.f32.xlu0 %v881
        %v883 = vpop.xlane.xlu0 %882
        %v884 = vsel %vm487, %v363, 0.0
        %885 = vadd.xlane.f32.xlu0 %v884
        %v886 = vpop.xlane.xlu0 %885
        %v887 = vsel %vm487, %v364, 0.0
        %888 = vadd.xlane.f32.xlu0 %v887
        %v889 = vpop.xlane.xlu0 %888
        %v890 = vsel %vm487, %v365, 0.0
        %891 = vadd.xlane.f32.xlu0 %v890
        %v892 = vpop.xlane.xlu0 %891
        %v893 = vsel %vm487, %v366, 0.0
        %894 = vadd.xlane.f32.xlu0 %v893
        %v895 = vpop.xlane.xlu0 %894
        %v896 = vsel %vm487, %v367, 0.0
        %897 = vadd.xlane.f32.xlu0 %v896
        %v898 = vpop.xlane.xlu0 %897
        %v899 = vsel %vm487, %v368, 0.0
        %900 = vadd.xlane.f32.xlu0 %v899
        %v901 = vpop.xlane.xlu0 %900
        %v902 = vsel %vm487, %v369, 0.0
        %903 = vadd.xlane.f32.xlu0 %v902
        %v904 = vpop.xlane.xlu0 %903
        %v905 = vsel %vm487, %v370, 0.0
        %906 = vadd.xlane.f32.xlu0 %v905
        %v907 = vpop.xlane.xlu0 %906
        %v908 = vsel %vm487, %v371, 0.0
        %909 = vadd.xlane.f32.xlu0 %v908
        %v910 = vpop.xlane.xlu0 %909
        %v911 = vsel %vm487, %v372, 0.0
        %912 = vadd.xlane.f32.xlu0 %v911
        %v913 = vpop.xlane.xlu0 %912
        %v914 = vsel %vm487, %v373, 0.0
        %915 = vadd.xlane.f32.xlu0 %v914
        %v916 = vpop.xlane.xlu0 %915
        %v917 = vsel %vm487, %v374, 0.0
        %918 = vadd.xlane.f32.xlu0 %v917
        %v919 = vpop.xlane.xlu0 %918
        %v920 = vsel %vm487, %v375, 0.0
        %921 = vadd.xlane.f32.xlu0 %v920
        %v922 = vpop.xlane.xlu0 %921
        %v923 = vsel %vm487, %v376, 0.0
        %924 = vadd.xlane.f32.xlu0 %v923
        %v925 = vpop.xlane.xlu0 %924
        %v926 = vsel %vm487, %v377, 0.0
        %927 = vadd.xlane.f32.xlu0 %v926
        %v928 = vpop.xlane.xlu0 %927
        %v929 = vsel %vm487, %v378, 0.0
        %930 = vadd.xlane.f32.xlu0 %v929
        %v931 = vpop.xlane.xlu0 %930
        %v932 = vsel %vm487, %v379, 0.0
        %933 = vadd.xlane.f32.xlu0 %v932
        %v934 = vpop.xlane.xlu0 %933
        %v935 = vsel %vm487, %v380, 0.0
        %936 = vadd.xlane.f32.xlu0 %v935
        %v937 = vpop.xlane.xlu0 %936
        %v938 = vsel %vm487, %v381, 0.0
        %939 = vadd.xlane.f32.xlu0 %v938
        %v940 = vpop.xlane.xlu0 %939
        %v941 = vsel %vm487, %v382, 0.0
        %942 = vadd.xlane.f32.xlu0 %v941
        %v943 = vpop.xlane.xlu0 %942
        %v944 = vsel %vm487, %v383, 0.0
        %945 = vadd.xlane.f32.xlu0 %v944
        %v946 = vpop.xlane.xlu0 %945
        %v947 = vsel %vm487, %v384, 0.0
        %948 = vadd.xlane.f32.xlu0 %v947
        %v949 = vpop.xlane.xlu0 %948
        %v950 = vsel %vm487, %v385, 0.0
        %951 = vadd.xlane.f32.xlu0 %v950
        %v952 = vpop.xlane.xlu0 %951
        %v953 = vsel %vm487, %v386, 0.0
        %954 = vadd.xlane.f32.xlu0 %v953
        %v955 = vpop.xlane.xlu0 %954
        %v956 = vsel %vm487, %v387, 0.0
        %957 = vadd.xlane.f32.xlu0 %v956
        %v958 = vpop.xlane.xlu0 %957
        %v959 = vsel %vm487, %v388, 0.0
        %960 = vadd.xlane.f32.xlu0 %v959
        %v961 = vpop.xlane.xlu0 %960
        %v962 = vsel %vm487, %v389, 0.0
        %963 = vadd.xlane.f32.xlu0 %v962
        %v964 = vpop.xlane.xlu0 %963
        %v965 = vsel %vm487, %v390, 0.0
        %966 = vadd.xlane.f32.xlu0 %v965
        %v967 = vpop.xlane.xlu0 %966
        %v968 = vsel %vm487, %v391, 0.0
        %969 = vadd.xlane.f32.xlu0 %v968
        %v970 = vpop.xlane.xlu0 %969
        %v971 = vsel %vm487, %v392, 0.0
        %972 = vadd.xlane.f32.xlu0 %v971
        %v973 = vpop.xlane.xlu0 %972
        %v974 = vsel %vm487, %v393, 0.0
        %975 = vadd.xlane.f32.xlu0 %v974
        %v976 = vpop.xlane.xlu0 %975
        %v977 = vsel %vm487, %v394, 0.0
        %978 = vadd.xlane.f32.xlu0 %v977
        %v979 = vpop.xlane.xlu0 %978
        %v980 = vsel %vm487, %v395, 0.0
        %981 = vadd.xlane.f32.xlu0 %v980
        %v982 = vpop.xlane.xlu0 %981
        %v983 = vsel %vm487, %v396, 0.0
        %984 = vadd.xlane.f32.xlu0 %v983
        %v985 = vpop.xlane.xlu0 %984
        %v986 = vsel %vm487, %v397, 0.0
        %987 = vadd.xlane.f32.xlu0 %v986
        %v988 = vpop.xlane.xlu0 %987
        %v989 = vsel %vm487, %v398, 0.0
        %990 = vadd.xlane.f32.xlu0 %v989
        %v991 = vpop.xlane.xlu0 %990
        %v992 = vsel %vm487, %v399, 0.0
        %993 = vadd.xlane.f32.xlu0 %v992
        %v994 = vpop.xlane.xlu0 %993
        %v995 = vsel %vm487, %v400, 0.0
        %996 = vadd.xlane.f32.xlu0 %v995
        %v997 = vpop.xlane.xlu0 %996
        %v998 = vsel %vm487, %v401, 0.0
        %999 = vadd.xlane.f32.xlu0 %v998
        %v1000 = vpop.xlane.xlu0 %999
        %v1001 = vsel %vm487, %v402, 0.0
        %1002 = vadd.xlane.f32.xlu0 %v1001
        %v1003 = vpop.xlane.xlu0 %1002
        %v1004 = vsel %vm487, %v403, 0.0
        %1005 = vadd.xlane.f32.xlu0 %v1004
        %v1006 = vpop.xlane.xlu0 %1005
        %v1007 = vsel %vm487, %v404, 0.0
        %1008 = vadd.xlane.f32.xlu0 %v1007
        %v1009 = vpop.xlane.xlu0 %1008
        %v1010 = vsel %vm487, %v405, 0.0
        %1011 = vadd.xlane.f32.xlu0 %v1010
        %v1012 = vpop.xlane.xlu0 %1011
        %v1013 = vsel %vm487, %v406, 0.0
        %1014 = vadd.xlane.f32.xlu0 %v1013
        %v1015 = vpop.xlane.xlu0 %1014
        %v1016 = vsel %vm487, %v407, 0.0
        %1017 = vadd.xlane.f32.xlu0 %v1016
        %v1018 = vpop.xlane.xlu0 %1017
        %v1019 = vsel %vm487, %v408, 0.0
        %1020 = vadd.xlane.f32.xlu0 %v1019
        %v1021 = vpop.xlane.xlu0 %1020
        %v1022 = vsel %vm487, %v409, 0.0
        %1023 = vadd.xlane.f32.xlu0 %v1022
        %v1024 = vpop.xlane.xlu0 %1023
        %v1025 = vsel %vm487, %v410, 0.0
        %1026 = vadd.xlane.f32.xlu0 %v1025
        %v1027 = vpop.xlane.xlu0 %1026
        %v1028 = vsel %vm487, %v411, 0.0
        %1029 = vadd.xlane.f32.xlu0 %v1028
        %v1030 = vpop.xlane.xlu0 %1029
        %v1031 = vsel %vm487, %v412, 0.0
        %1032 = vadd.xlane.f32.xlu0 %v1031
        %v1033 = vpop.xlane.xlu0 %1032
        %v1034 = vsel %vm487, %v413, 0.0
        %1035 = vadd.xlane.f32.xlu0 %v1034
        %v1036 = vpop.xlane.xlu0 %1035
        %v1037 = vsel %vm487, %v414, 0.0
        %1038 = vadd.xlane.f32.xlu0 %v1037
        %v1039 = vpop.xlane.xlu0 %1038
        %v1040 = vsel %vm487, %v415, 0.0
        %1041 = vadd.xlane.f32.xlu0 %v1040
        %v1042 = vpop.xlane.xlu0 %1041
        %v1043 = vsel %vm487, %v416, 0.0
        %1044 = vadd.xlane.f32.xlu0 %v1043
        %v1045 = vpop.xlane.xlu0 %1044
        %v1046 = vsel %vm487, %v417, 0.0
        %1047 = vadd.xlane.f32.xlu0 %v1046
        %v1048 = vpop.xlane.xlu0 %1047
        %v1049 = vsel %vm487, %v418, 0.0
        %1050 = vadd.xlane.f32.xlu0 %v1049
        %v1051 = vpop.xlane.xlu0 %1050
        %v1052 = vsel %vm487, %v419, 0.0
        %1053 = vadd.xlane.f32.xlu0 %v1052
        %v1054 = vpop.xlane.xlu0 %1053
        %v1055 = vsel %vm487, %v420, 0.0
        %1056 = vadd.xlane.f32.xlu0 %v1055
        %v1057 = vpop.xlane.xlu0 %1056
        %v1058 = vsel %vm487, %v421, 0.0
        %1059 = vadd.xlane.f32.xlu0 %v1058
        %v1060 = vpop.xlane.xlu0 %1059
        %v1061 = vsel %vm487, %v422, 0.0
        %1062 = vadd.xlane.f32.xlu0 %v1061
        %v1063 = vpop.xlane.xlu0 %1062
        %v1064 = vsel %vm487, %v423, 0.0
        %1065 = vadd.xlane.f32.xlu0 %v1064
        %v1066 = vpop.xlane.xlu0 %1065
        %v1067 = vsel %vm487, %v424, 0.0
        %1068 = vadd.xlane.f32.xlu0 %v1067
        %v1069 = vpop.xlane.xlu0 %1068
        %v1070 = vsel %vm487, %v425, 0.0
        %1071 = vadd.xlane.f32.xlu0 %v1070
        %v1072 = vpop.xlane.xlu0 %1071
        %v1073 = vsel %vm487, %v426, 0.0
        %1074 = vadd.xlane.f32.xlu0 %v1073
        %v1075 = vpop.xlane.xlu0 %1074
        %v1076 = vsel %vm487, %v427, 0.0
        %1077 = vadd.xlane.f32.xlu0 %v1076
        %v1078 = vpop.xlane.xlu0 %1077
        %v1079 = vsel %vm487, %v428, 0.0
        %1080 = vadd.xlane.f32.xlu0 %v1079
        %v1081 = vpop.xlane.xlu0 %1080
        %v1082 = vsel %vm487, %v429, 0.0
        %1083 = vadd.xlane.f32.xlu0 %v1082
        %v1084 = vpop.xlane.xlu0 %1083
        %v1085 = vsel %vm487, %v430, 0.0
        %1086 = vadd.xlane.f32.xlu0 %v1085
        %v1087 = vpop.xlane.xlu0 %1086
        %v1088 = vsel %vm487, %v431, 0.0
        %1089 = vadd.xlane.f32.xlu0 %v1088
        %v1090 = vpop.xlane.xlu0 %1089
        %v1091 = vsel %vm487, %v432, 0.0
        %1092 = vadd.xlane.f32.xlu0 %v1091
        %v1093 = vpop.xlane.xlu0 %1092
        %v1094 = vsel %vm487, %v433, 0.0
        %1095 = vadd.xlane.f32.xlu0 %v1094
        %v1096 = vpop.xlane.xlu0 %1095
        %v1097 = vsel %vm487, %v434, 0.0
        %1098 = vadd.xlane.f32.xlu0 %v1097
        %v1099 = vpop.xlane.xlu0 %1098
        %v1100 = vsel %vm487, %v435, 0.0
        %1101 = vadd.xlane.f32.xlu0 %v1100
        %v1102 = vpop.xlane.xlu0 %1101
        %v1103 = vsel %vm487, %v436, 0.0
        %1104 = vadd.xlane.f32.xlu0 %v1103
        %v1105 = vpop.xlane.xlu0 %1104
        %v1106 = vsel %vm487, %v437, 0.0
        %1107 = vadd.xlane.f32.xlu0 %v1106
        %v1108 = vpop.xlane.xlu0 %1107
        %v1109 = vsel %vm487, %v438, 0.0
        %1110 = vadd.xlane.f32.xlu0 %v1109
        %v1111 = vpop.xlane.xlu0 %1110
        %v1112 = vsel %vm487, %v439, 0.0
        %1113 = vadd.xlane.f32.xlu0 %v1112
        %v1114 = vpop.xlane.xlu0 %1113
        %v1115 = vsel %vm487, %v440, 0.0
        %1116 = vadd.xlane.f32.xlu0 %v1115
        %v1117 = vpop.xlane.xlu0 %1116
        %v1118 = vsel %vm487, %v441, 0.0
        %1119 = vadd.xlane.f32.xlu0 %v1118
        %v1120 = vpop.xlane.xlu0 %1119
        %v1121 = vsel %vm487, %v442, 0.0
        %1122 = vadd.xlane.f32.xlu0 %v1121
        %v1123 = vpop.xlane.xlu0 %1122
        %v1124 = vsel %vm487, %v443, 0.0
        %1125 = vadd.xlane.f32.xlu0 %v1124
        %v1126 = vpop.xlane.xlu0 %1125
        %v1127 = vsel %vm487, %v444, 0.0
        %1128 = vadd.xlane.f32.xlu0 %v1127
        %v1129 = vpop.xlane.xlu0 %1128
        %v1130 = vsel %vm487, %v445, 0.0
        %1131 = vadd.xlane.f32.xlu0 %v1130
        %v1132 = vpop.xlane.xlu0 %1131
        %v1133 = vsel %vm487, %v446, 0.0
        %1134 = vadd.xlane.f32.xlu0 %v1133
        %v1135 = vpop.xlane.xlu0 %1134
        %v1136 = vsel %vm487, %v447, 0.0
        %1137 = vadd.xlane.f32.xlu0 %v1136
        %v1138 = vpop.xlane.xlu0 %1137
        %v1139 = vsel %vm487, %v448, 0.0
        %1140 = vadd.xlane.f32.xlu0 %v1139
        %v1141 = vpop.xlane.xlu0 %1140
        %v1142 = vsel %vm487, %v449, 0.0
        %1143 = vadd.xlane.f32.xlu0 %v1142
        %v1144 = vpop.xlane.xlu0 %1143
        %v1145 = vsel %vm487, %v450, 0.0
        %1146 = vadd.xlane.f32.xlu0 %v1145
        %v1147 = vpop.xlane.xlu0 %1146
        %v1148 = vsel %vm487, %v451, 0.0
        %1149 = vadd.xlane.f32.xlu0 %v1148
        %v1150 = vpop.xlane.xlu0 %1149
        %v1151 = vsel %vm487, %v452, 0.0
        %1152 = vadd.xlane.f32.xlu0 %v1151
        %v1153 = vpop.xlane.xlu0 %1152
        %v1154 = vsel %vm487, %v453, 0.0
        %1155 = vadd.xlane.f32.xlu0 %v1154
        %v1156 = vpop.xlane.xlu0 %1155
        %v1157 = vsel %vm487, %v454, 0.0
        %1158 = vadd.xlane.f32.xlu0 %v1157
        %v1159 = vpop.xlane.xlu0 %1158
        %v1160 = vsel %vm487, %v455, 0.0
        %1161 = vadd.xlane.f32.xlu0 %v1160
        %v1162 = vpop.xlane.xlu0 %1161
        %v1163 = vsel %vm487, %v456, 0.0
        %1164 = vadd.xlane.f32.xlu0 %v1163
        %v1165 = vpop.xlane.xlu0 %1164
        %v1166 = vsel %vm487, %v457, 0.0
        %1167 = vadd.xlane.f32.xlu0 %v1166
        %v1168 = vpop.xlane.xlu0 %1167
        %v1169 = vsel %vm487, %v458, 0.0
        %1170 = vadd.xlane.f32.xlu0 %v1169
        %v1171 = vpop.xlane.xlu0 %1170
        %v1172 = vsel %vm487, %v459, 0.0
        %1173 = vadd.xlane.f32.xlu0 %v1172
        %v1174 = vpop.xlane.xlu0 %1173
        %v1175 = vsel %vm487, %v460, 0.0
        %1176 = vadd.xlane.f32.xlu0 %v1175
        %v1177 = vpop.xlane.xlu0 %1176
        %v1178 = vsel %vm487, %v461, 0.0
        %1179 = vadd.xlane.f32.xlu0 %v1178
        %v1180 = vpop.xlane.xlu0 %1179
        %v1181 = vsel %vm487, %v462, 0.0
        %1182 = vadd.xlane.f32.xlu0 %v1181
        %v1183 = vpop.xlane.xlu0 %1182
        %v1184 = vsel %vm487, %v463, 0.0
        %1185 = vadd.xlane.f32.xlu0 %v1184
        %v1186 = vpop.xlane.xlu0 %1185
        %v1187 = vsel %vm487, %v464, 0.0
        %1188 = vadd.xlane.f32.xlu0 %v1187
        %v1189 = vpop.xlane.xlu0 %1188
        %v1190 = vsel %vm487, %v465, 0.0
        %1191 = vadd.xlane.f32.xlu0 %v1190
        %v1192 = vpop.xlane.xlu0 %1191
        %v1193 = vsel %vm487, %v466, 0.0
        %1194 = vadd.xlane.f32.xlu0 %v1193
        %v1195 = vpop.xlane.xlu0 %1194
        %v1196 = vsel %vm487, %v467, 0.0
        %1197 = vadd.xlane.f32.xlu0 %v1196
        %v1198 = vpop.xlane.xlu0 %1197
        %v1199 = vsel %vm487, %v468, 0.0
        %1200 = vadd.xlane.f32.xlu0 %v1199
        %v1201 = vpop.xlane.xlu0 %1200
        %v1202 = vsel %vm487, %v469, 0.0
        %1203 = vadd.xlane.f32.xlu0 %v1202
        %v1204 = vpop.xlane.xlu0 %1203
        %v1205 = vsel %vm487, %v470, 0.0
        %1206 = vadd.xlane.f32.xlu0 %v1205
        %v1207 = vpop.xlane.xlu0 %1206
        %v1208 = vsel %vm487, %v471, 0.0
        %1209 = vadd.xlane.f32.xlu0 %v1208
        %v1210 = vpop.xlane.xlu0 %1209
        %v1211 = vsel %vm487, %v472, 0.0
        %1212 = vadd.xlane.f32.xlu0 %v1211
        %v1213 = vpop.xlane.xlu0 %1212
        %v1214 = vsel %vm487, %v473, 0.0
        %1215 = vadd.xlane.f32.xlu0 %v1214
        %v1216 = vpop.xlane.xlu0 %1215
        %v1217 = vsel %vm487, %v474, 0.0
        %1218 = vadd.xlane.f32.xlu0 %v1217
        %v1219 = vpop.xlane.xlu0 %1218
        %v1220 = vsel %vm487, %v475, 0.0
        %1221 = vadd.xlane.f32.xlu0 %v1220
        %v1222 = vpop.xlane.xlu0 %1221
        %v1223 = vsel %vm487, %v476, 0.0
        %1224 = vadd.xlane.f32.xlu0 %v1223
        %v1225 = vpop.xlane.xlu0 %1224
        %v1226 = vsel %vm487, %v477, 0.0
        %1227 = vadd.xlane.f32.xlu0 %v1226
        %v1228 = vpop.xlane.xlu0 %1227
        %v1229 = vsel %vm487, %v478, 0.0
        %1230 = vadd.xlane.f32.xlu0 %v1229
        %v1231 = vpop.xlane.xlu0 %1230
        %v1232 = vsel %vm487, %v479, 0.0
        %1233 = vadd.xlane.f32.xlu0 %v1232
        %v1234 = vpop.xlane.xlu0 %1233
        %v1235 = vsel %vm487, %v480, 0.0
        %1236 = vadd.xlane.f32.xlu0 %v1235
        %v1237 = vpop.xlane.xlu0 %1236
        %v1238 = vsel %vm487, %v481, 0.0
        %1239 = vadd.xlane.f32.xlu0 %v1238
        %v1240 = vpop.xlane.xlu0 %1239
        %v1241 = vsel %vm487, %v482, 0.0
        %1242 = vadd.xlane.f32.xlu0 %v1241
        %v1243 = vpop.xlane.xlu0 %1242
        %v1244 = vsel %vm487, %v483, 0.0
        %1245 = vadd.xlane.f32.xlu0 %v1244
        %v1246 = vpop.xlane.xlu0 %1245
        %v1247 = vsel %vm487, %v484, 0.0
        %1248 = vadd.xlane.f32.xlu0 %v1247
        %v1249 = vpop.xlane.xlu0 %1248
        %v1250 = vsel %vm487, %v485, 0.0
        %1251 = vadd.xlane.f32.xlu0 %v1250
        %v1252 = vpop.xlane.xlu0 %1251
        %v1253 = vsel %vm487, %v486, 0.0
        %1254 = vadd.xlane.f32.xlu0 %v1253
        %v1255 = vpop.xlane.xlu0 %1254
        %v1256 = vld [vmem:[#allocation2] sm:$0x3]
        %v1257 = vld [vmem:[%s220] sm:$0xff]
        %v1258 = vld [vmem:[%s220 + $0x8] sm:$0xff]
        %v1259 = vld [vmem:[%s220 + $0x10] sm:$0xff]
        %v1260 = vld [vmem:[%s220 + $0x18] sm:$0xff]
        %v1261 = vld [vmem:[%s220 + $0x20] sm:$0xff]
        %v1262 = vld [vmem:[%s220 + $0x28] sm:$0xff]
        %v1263 = vld [vmem:[%s220 + $0x30] sm:$0xff]
        %v1264 = vld [vmem:[%s220 + $0x38] sm:$0xff]
        %v1265 = vld [vmem:[%s220 + $0x40] sm:$0xff]
        %v1266 = vld [vmem:[%s220 + $0x48] sm:$0xff]
        %v1267 = vld [vmem:[%s220 + $0x50] sm:$0xff]
        %v1268 = vld [vmem:[%s220 + $0x58] sm:$0xff]
        %v1269 = vld [vmem:[%s220 + $0x60] sm:$0xff]
        %v1270 = vld [vmem:[%s220 + $0x68] sm:$0xff]
        %v1271 = vld [vmem:[%s220 + $0x70] sm:$0xff]
        %v1272 = vld [vmem:[%s220 + $0x78] sm:$0xff]
        %v1273 = vld [vmem:[%s220 + $0x80] sm:$0xff]
        %v1274 = vld [vmem:[%s220 + $0x88] sm:$0xff]
        %v1275 = vld [vmem:[%s220 + $0x90] sm:$0xff]
        %v1276 = vld [vmem:[%s220 + $0x98] sm:$0xff]
        %v1277 = vld [vmem:[%s220 + $0xa0] sm:$0xff]
        %v1278 = vld [vmem:[%s220 + $0xa8] sm:$0xff]
        %v1279 = vld [vmem:[%s220 + $0xb0] sm:$0xff]
        %v1280 = vld [vmem:[%s220 + $0xb8] sm:$0xff]
        %v1281 = vld [vmem:[%s220 + $0xc0] sm:$0xff]
        %v1282 = vld [vmem:[%s220 + $0xc8] sm:$0xff]
        %v1283 = vld [vmem:[%s220 + $0xd0] sm:$0xff]
        %v1284 = vld [vmem:[%s220 + $0xd8] sm:$0xff]
        %v1285 = vld [vmem:[%s220 + $0xe0] sm:$0xff]
        %v1286 = vld [vmem:[%s220 + $0xe8] sm:$0xff]
        %v1287 = vld [vmem:[%s220 + $0xf0] sm:$0xff]
        %v1288 = vld [vmem:[%s220 + $0xf8] sm:$0xff]
        %v1289 = vld [vmem:[%s220 + $0x100] sm:$0xff]
        %v1290 = vld [vmem:[%s220 + $0x108] sm:$0xff]
        %v1291 = vld [vmem:[%s220 + $0x110] sm:$0xff]
        %v1292 = vld [vmem:[%s220 + $0x118] sm:$0xff]
        %v1293 = vld [vmem:[%s220 + $0x120] sm:$0xff]
        %v1294 = vld [vmem:[%s220 + $0x128] sm:$0xff]
        %v1295 = vld [vmem:[%s220 + $0x130] sm:$0xff]
        %v1296 = vld [vmem:[%s220 + $0x138] sm:$0xff]
        %v1297 = vld [vmem:[%s220 + $0x140] sm:$0xff]
        %v1298 = vld [vmem:[%s220 + $0x148] sm:$0xff]
        %v1299 = vld [vmem:[%s220 + $0x150] sm:$0xff]
        %v1300 = vld [vmem:[%s220 + $0x158] sm:$0xff]
        %v1301 = vld [vmem:[%s220 + $0x160] sm:$0xff]
        %v1302 = vld [vmem:[%s220 + $0x168] sm:$0xff]
        %v1303 = vld [vmem:[%s220 + $0x170] sm:$0xff]
        %v1304 = vld [vmem:[%s220 + $0x178] sm:$0xff]
        %v1305 = vld [vmem:[%s220 + $0x180] sm:$0xff]
        %v1306 = vld [vmem:[%s220 + $0x188] sm:$0xff]
        %v1307 = vld [vmem:[%s220 + $0x190] sm:$0xff]
        %v1308 = vld [vmem:[%s220 + $0x198] sm:$0xff]
        %v1309 = vld [vmem:[%s220 + $0x1a0] sm:$0xff]
        %v1310 = vld [vmem:[%s220 + $0x1a8] sm:$0xff]
        %v1311 = vld [vmem:[%s220 + $0x1b0] sm:$0xff]
        %v1312 = vld [vmem:[%s220 + $0x1b8] sm:$0xff]
        %v1313 = vld [vmem:[%s220 + $0x1c0] sm:$0xff]
        %v1314 = vld [vmem:[%s220 + $0x1c8] sm:$0xff]
        %v1315 = vld [vmem:[%s220 + $0x1d0] sm:$0xff]
        %v1316 = vld [vmem:[%s220 + $0x1d8] sm:$0xff]
        %v1317 = vld [vmem:[%s220 + $0x1e0] sm:$0xff]
        %v1318 = vld [vmem:[%s220 + $0x1e8] sm:$0xff]
        %v1319 = vld [vmem:[%s220 + $0x1f0] sm:$0xff]
        %v1320 = vld [vmem:[%s220 + $0x1f8] sm:$0xff]
        %v1321 = vld [vmem:[%s220 + $0x200] sm:$0xff]
        %v1322 = vld [vmem:[%s220 + $0x208] sm:$0xff]
        %v1323 = vld [vmem:[%s220 + $0x210] sm:$0xff]
        %v1324 = vld [vmem:[%s220 + $0x218] sm:$0xff]
        %v1325 = vld [vmem:[%s220 + $0x220] sm:$0xff]
        %v1326 = vld [vmem:[%s220 + $0x228] sm:$0xff]
        %v1327 = vld [vmem:[%s220 + $0x230] sm:$0xff]
        %v1328 = vld [vmem:[%s220 + $0x238] sm:$0xff]
        %v1329 = vld [vmem:[%s220 + $0x240] sm:$0xff]
        %v1330 = vld [vmem:[%s220 + $0x248] sm:$0xff]
        %v1331 = vld [vmem:[%s220 + $0x250] sm:$0xff]
        %v1332 = vld [vmem:[%s220 + $0x258] sm:$0xff]
        %v1333 = vld [vmem:[%s220 + $0x260] sm:$0xff]
        %v1334 = vld [vmem:[%s220 + $0x268] sm:$0xff]
        %v1335 = vld [vmem:[%s220 + $0x270] sm:$0xff]
        %v1336 = vld [vmem:[%s220 + $0x278] sm:$0xff]
        %v1337 = vld [vmem:[%s220 + $0x280] sm:$0xff]
        %v1338 = vld [vmem:[%s220 + $0x288] sm:$0xff]
        %v1339 = vld [vmem:[%s220 + $0x290] sm:$0xff]
        %v1340 = vld [vmem:[%s220 + $0x298] sm:$0xff]
        %v1341 = vld [vmem:[%s220 + $0x2a0] sm:$0xff]
        %v1342 = vld [vmem:[%s220 + $0x2a8] sm:$0xff]
        %v1343 = vld [vmem:[%s220 + $0x2b0] sm:$0xff]
        %v1344 = vld [vmem:[%s220 + $0x2b8] sm:$0xff]
        %v1345 = vld [vmem:[%s220 + $0x2c0] sm:$0xff]
        %v1346 = vld [vmem:[%s220 + $0x2c8] sm:$0xff]
        %v1347 = vld [vmem:[%s220 + $0x2d0] sm:$0xff]
        %v1348 = vld [vmem:[%s220 + $0x2d8] sm:$0xff]
        %v1349 = vld [vmem:[%s220 + $0x2e0] sm:$0xff]
        %v1350 = vld [vmem:[%s220 + $0x2e8] sm:$0xff]
        %v1351 = vld [vmem:[%s220 + $0x2f0] sm:$0xff]
        %v1352 = vld [vmem:[%s220 + $0x2f8] sm:$0xff]
        %v1353 = vld [vmem:[%s220 + $0x300] sm:$0xff]
        %v1354 = vld [vmem:[%s220 + $0x308] sm:$0xff]
        %v1355 = vld [vmem:[%s220 + $0x310] sm:$0xff]
        %v1356 = vld [vmem:[%s220 + $0x318] sm:$0xff]
        %v1357 = vld [vmem:[%s220 + $0x320] sm:$0xff]
        %v1358 = vld [vmem:[%s220 + $0x328] sm:$0xff]
        %v1359 = vld [vmem:[%s220 + $0x330] sm:$0xff]
        %v1360 = vld [vmem:[%s220 + $0x338] sm:$0xff]
        %v1361 = vld [vmem:[%s220 + $0x340] sm:$0xff]
        %v1362 = vld [vmem:[%s220 + $0x348] sm:$0xff]
        %v1363 = vld [vmem:[%s220 + $0x350] sm:$0xff]
        %v1364 = vld [vmem:[%s220 + $0x358] sm:$0xff]
        %v1365 = vld [vmem:[%s220 + $0x360] sm:$0xff]
        %v1366 = vld [vmem:[%s220 + $0x368] sm:$0xff]
        %v1367 = vld [vmem:[%s220 + $0x370] sm:$0xff]
        %v1368 = vld [vmem:[%s220 + $0x378] sm:$0xff]
        %v1369 = vld [vmem:[%s220 + $0x380] sm:$0xff]
        %v1370 = vld [vmem:[%s220 + $0x388] sm:$0xff]
        %v1371 = vld [vmem:[%s220 + $0x390] sm:$0xff]
        %v1372 = vld [vmem:[%s220 + $0x398] sm:$0xff]
        %v1373 = vld [vmem:[%s220 + $0x3a0] sm:$0xff]
        %v1374 = vld [vmem:[%s220 + $0x3a8] sm:$0xff]
        %v1375 = vld [vmem:[%s220 + $0x3b0] sm:$0xff]
        %v1376 = vld [vmem:[%s220 + $0x3b8] sm:$0xff]
        %v1377 = vld [vmem:[%s220 + $0x3c0] sm:$0xff]
        %v1378 = vld [vmem:[%s220 + $0x3c8] sm:$0xff]
        %v1379 = vld [vmem:[%s220 + $0x3d0] sm:$0xff]
        %v1380 = vld [vmem:[%s220 + $0x3d8] sm:$0xff]
        %v1381 = vld [vmem:[%s220 + $0x3e0] sm:$0xff]
        %v1382 = vld [vmem:[%s220 + $0x3e8] sm:$0xff]
        %v1383 = vld [vmem:[%s220 + $0x3f0] sm:$0xff]
        %v1384 = vld [vmem:[%s220 + $0x3f8] sm:$0xff]
        %v1385 = vld [vmem:[%s220 + $0x400] sm:$0xff]
        %v1386 = vld [vmem:[%s220 + $0x408] sm:$0xff]
        %v1387 = vld [vmem:[%s220 + $0x410] sm:$0xff]
        %v1388 = vld [vmem:[%s220 + $0x418] sm:$0xff]
        %v1389 = vld [vmem:[%s220 + $0x420] sm:$0xff]
        %v1390 = vld [vmem:[%s220 + $0x428] sm:$0xff]
        %v1391 = vld [vmem:[%s220 + $0x430] sm:$0xff]
        %v1392 = vld [vmem:[%s220 + $0x438] sm:$0xff]
        %v1393 = vld [vmem:[%s220 + $0x440] sm:$0xff]
        %v1394 = vld [vmem:[%s220 + $0x448] sm:$0xff]
        %v1395 = vld [vmem:[%s220 + $0x450] sm:$0xff]
        %v1396 = vld [vmem:[%s220 + $0x458] sm:$0xff]
        %v1397 = vld [vmem:[%s220 + $0x460] sm:$0xff]
        %v1398 = vld [vmem:[%s220 + $0x468] sm:$0xff]
        %v1399 = vld [vmem:[%s220 + $0x470] sm:$0xff]
        %v1400 = vld [vmem:[%s220 + $0x478] sm:$0xff]
        %v1401 = vld [vmem:[%s220 + $0x480] sm:$0xff]
        %v1402 = vld [vmem:[%s220 + $0x488] sm:$0xff]
        %v1403 = vld [vmem:[%s220 + $0x490] sm:$0xff]
        %v1404 = vld [vmem:[%s220 + $0x498] sm:$0xff]
        %v1405 = vld [vmem:[%s220 + $0x4a0] sm:$0xff]
        %v1406 = vld [vmem:[%s220 + $0x4a8] sm:$0xff]
        %v1407 = vld [vmem:[%s220 + $0x4b0] sm:$0xff]
        %v1408 = vld [vmem:[%s220 + $0x4b8] sm:$0xff]
        %v1409 = vld [vmem:[%s220 + $0x4c0] sm:$0xff]
        %v1410 = vld [vmem:[%s220 + $0x4c8] sm:$0xff]
        %v1411 = vld [vmem:[%s220 + $0x4d0] sm:$0xff]
        %v1412 = vld [vmem:[%s220 + $0x4d8] sm:$0xff]
        %v1413 = vld [vmem:[%s220 + $0x4e0] sm:$0xff]
        %v1414 = vld [vmem:[%s220 + $0x4e8] sm:$0xff]
        %v1415 = vld [vmem:[%s220 + $0x4f0] sm:$0xff]
        %v1416 = vld [vmem:[%s220 + $0x4f8] sm:$0xff]
        %v1417 = vld [vmem:[%s220 + $0x500] sm:$0xff]
        %v1418 = vld [vmem:[%s220 + $0x508] sm:$0xff]
        %v1419 = vld [vmem:[%s220 + $0x510] sm:$0xff]
        %v1420 = vld [vmem:[%s220 + $0x518] sm:$0xff]
        %v1421 = vld [vmem:[%s220 + $0x520] sm:$0xff]
        %v1422 = vld [vmem:[%s220 + $0x528] sm:$0xff]
        %v1423 = vld [vmem:[%s220 + $0x530] sm:$0xff]
        %v1424 = vld [vmem:[%s220 + $0x538] sm:$0xff]
        %v1425 = vld [vmem:[%s220 + $0x540] sm:$0xff]
        %v1426 = vld [vmem:[%s220 + $0x548] sm:$0xff]
        %v1427 = vld [vmem:[%s220 + $0x550] sm:$0xff]
        %v1428 = vld [vmem:[%s220 + $0x558] sm:$0xff]
        %v1429 = vld [vmem:[%s220 + $0x560] sm:$0xff]
        %v1430 = vld [vmem:[%s220 + $0x568] sm:$0xff]
        %v1431 = vld [vmem:[%s220 + $0x570] sm:$0xff]
        %v1432 = vld [vmem:[%s220 + $0x578] sm:$0xff]
        %v1433 = vld [vmem:[%s220 + $0x580] sm:$0xff]
        %v1434 = vld [vmem:[%s220 + $0x588] sm:$0xff]
        %v1435 = vld [vmem:[%s220 + $0x590] sm:$0xff]
        %v1436 = vld [vmem:[%s220 + $0x598] sm:$0xff]
        %v1437 = vld [vmem:[%s220 + $0x5a0] sm:$0xff]
        %v1438 = vld [vmem:[%s220 + $0x5a8] sm:$0xff]
        %v1439 = vld [vmem:[%s220 + $0x5b0] sm:$0xff]
        %v1440 = vld [vmem:[%s220 + $0x5b8] sm:$0xff]
        %v1441 = vld [vmem:[%s220 + $0x5c0] sm:$0xff]
        %v1442 = vld [vmem:[%s220 + $0x5c8] sm:$0xff]
        %v1443 = vld [vmem:[%s220 + $0x5d0] sm:$0xff]
        %v1444 = vld [vmem:[%s220 + $0x5d8] sm:$0xff]
        %v1445 = vld [vmem:[%s220 + $0x5e0] sm:$0xff]
        %v1446 = vld [vmem:[%s220 + $0x5e8] sm:$0xff]
        %v1447 = vld [vmem:[%s220 + $0x5f0] sm:$0xff]
        %v1448 = vld [vmem:[%s220 + $0x5f8] sm:$0xff]
        %v1449 = vld [vmem:[%s220 + $0x600] sm:$0xff]
        %v1450 = vld [vmem:[%s220 + $0x608] sm:$0xff]
        %v1451 = vld [vmem:[%s220 + $0x610] sm:$0xff]
        %v1452 = vld [vmem:[%s220 + $0x618] sm:$0xff]
        %v1453 = vld [vmem:[%s220 + $0x620] sm:$0xff]
        %v1454 = vld [vmem:[%s220 + $0x628] sm:$0xff]
        %v1455 = vld [vmem:[%s220 + $0x630] sm:$0xff]
        %v1456 = vld [vmem:[%s220 + $0x638] sm:$0xff]
        %v1457 = vld [vmem:[%s220 + $0x640] sm:$0xff]
        %v1458 = vld [vmem:[%s220 + $0x648] sm:$0xff]
        %v1459 = vld [vmem:[%s220 + $0x650] sm:$0xff]
        %v1460 = vld [vmem:[%s220 + $0x658] sm:$0xff]
        %v1461 = vld [vmem:[%s220 + $0x660] sm:$0xff]
        %v1462 = vld [vmem:[%s220 + $0x668] sm:$0xff]
        %v1463 = vld [vmem:[%s220 + $0x670] sm:$0xff]
        %v1464 = vld [vmem:[%s220 + $0x678] sm:$0xff]
        %v1465 = vld [vmem:[%s220 + $0x680] sm:$0xff]
        %v1466 = vld [vmem:[%s220 + $0x688] sm:$0xff]
        %v1467 = vld [vmem:[%s220 + $0x690] sm:$0xff]
        %v1468 = vld [vmem:[%s220 + $0x698] sm:$0xff]
        %v1469 = vld [vmem:[%s220 + $0x6a0] sm:$0xff]
        %v1470 = vld [vmem:[%s220 + $0x6a8] sm:$0xff]
        %v1471 = vld [vmem:[%s220 + $0x6b0] sm:$0xff]
        %v1472 = vld [vmem:[%s220 + $0x6b8] sm:$0xff]
        %v1473 = vld [vmem:[%s220 + $0x6c0] sm:$0xff]
        %v1474 = vld [vmem:[%s220 + $0x6c8] sm:$0xff]
        %v1475 = vld [vmem:[%s220 + $0x6d0] sm:$0xff]
        %v1476 = vld [vmem:[%s220 + $0x6d8] sm:$0xff]
        %v1477 = vld [vmem:[%s220 + $0x6e0] sm:$0xff]
        %v1478 = vld [vmem:[%s220 + $0x6e8] sm:$0xff]
        %v1479 = vld [vmem:[%s220 + $0x6f0] sm:$0xff]
        %v1480 = vld [vmem:[%s220 + $0x6f8] sm:$0xff]
        %v1481 = vld [vmem:[%s220 + $0x700] sm:$0xff]
        %v1482 = vld [vmem:[%s220 + $0x708] sm:$0xff]
        %v1483 = vld [vmem:[%s220 + $0x710] sm:$0xff]
        %v1484 = vld [vmem:[%s220 + $0x718] sm:$0xff]
        %v1485 = vld [vmem:[%s220 + $0x720] sm:$0xff]
        %v1486 = vld [vmem:[%s220 + $0x728] sm:$0xff]
        %v1487 = vld [vmem:[%s220 + $0x730] sm:$0xff]
        %v1488 = vld [vmem:[%s220 + $0x738] sm:$0xff]
        %v1489 = vld [vmem:[%s220 + $0x740] sm:$0xff]
        %v1490 = vld [vmem:[%s220 + $0x748] sm:$0xff]
        %v1491 = vld [vmem:[%s220 + $0x750] sm:$0xff]
        %v1492 = vld [vmem:[%s220 + $0x758] sm:$0xff]
        %v1493 = vld [vmem:[%s220 + $0x760] sm:$0xff]
        %v1494 = vld [vmem:[%s220 + $0x768] sm:$0xff]
        %v1495 = vld [vmem:[%s220 + $0x770] sm:$0xff]
        %v1496 = vld [vmem:[%s220 + $0x778] sm:$0xff]
        %v1497 = vld [vmem:[%s220 + $0x780] sm:$0xff]
        %v1498 = vld [vmem:[%s220 + $0x788] sm:$0xff]
        %v1499 = vld [vmem:[%s220 + $0x790] sm:$0xff]
        %v1500 = vld [vmem:[%s220 + $0x798] sm:$0xff]
        %v1501 = vld [vmem:[%s220 + $0x7a0] sm:$0xff]
        %v1502 = vld [vmem:[%s220 + $0x7a8] sm:$0xff]
        %v1503 = vld [vmem:[%s220 + $0x7b0] sm:$0xff]
        %v1504 = vld [vmem:[%s220 + $0x7b8] sm:$0xff]
        %v1505 = vld [vmem:[%s220 + $0x7c0] sm:$0xff]
        %v1506 = vld [vmem:[%s220 + $0x7c8] sm:$0xff]
        %v1507 = vld [vmem:[%s220 + $0x7d0] sm:$0xff]
        %v1508 = vld [vmem:[%s220 + $0x7d8] sm:$0xff]
        %v1509 = vld [vmem:[%s220 + $0x7e0] sm:$0xff]
        %v1510 = vld [vmem:[%s220 + $0x7e8] sm:$0xff]
        %v1511 = vld [vmem:[%s220 + $0x7f0] sm:$0xff]
        %v1512 = vld [vmem:[%s220 + $0x7f8] sm:$0xff]
        %v1513 = vld [vmem:[%s220 + $0x800] sm:$0xff]
        %v1514 = vld [vmem:[%s220 + $0x808] sm:$0xff]
        %v1515 = vld [vmem:[%s220 + $0x810] sm:$0xff]
        %v1516 = vld [vmem:[%s220 + $0x818] sm:$0xff]
        %v1517 = vld [vmem:[%s220 + $0x820] sm:$0xff]
        %v1518 = vld [vmem:[%s220 + $0x828] sm:$0xff]
        %v1519 = vld [vmem:[%s220 + $0x830] sm:$0xff]
        %v1520 = vld [vmem:[%s220 + $0x838] sm:$0xff]
        %v1521 = vld [vmem:[%s220 + $0x840] sm:$0xff]
        %v1522 = vld [vmem:[%s220 + $0x848] sm:$0xff]
        %v1523 = vld [vmem:[%s220 + $0x850] sm:$0xff]
        %v1524 = vld [vmem:[%s220 + $0x858] sm:$0xff]
        %v1525 = vld [vmem:[%s220 + $0x860] sm:$0xff]
        %v1526 = vld [vmem:[%s220 + $0x868] sm:$0xff]
        %v1527 = vld [vmem:[%s220 + $0x870] sm:$0xff]
        %v1528 = vld [vmem:[%s220 + $0x878] sm:$0xff]
        %v1529 = vld [vmem:[%s220 + $0x880] sm:$0xff]
        %v1530 = vld [vmem:[%s220 + $0x888] sm:$0xff]
        %v1531 = vld [vmem:[%s220 + $0x890] sm:$0xff]
        %v1532 = vld [vmem:[%s220 + $0x898] sm:$0xff]
        %v1533 = vld [vmem:[%s220 + $0x8a0] sm:$0xff]
        %v1534 = vld [vmem:[%s220 + $0x8a8] sm:$0xff]
        %v1535 = vld [vmem:[%s220 + $0x8b0] sm:$0xff]
        %v1536 = vld [vmem:[%s220 + $0x8b8] sm:$0xff]
        %v1537 = vld [vmem:[%s220 + $0x8c0] sm:$0xff]
        %v1538 = vld [vmem:[%s220 + $0x8c8] sm:$0xff]
        %v1539 = vld [vmem:[%s220 + $0x8d0] sm:$0xff]
        %v1540 = vld [vmem:[%s220 + $0x8d8] sm:$0xff]
        %v1541 = vld [vmem:[%s220 + $0x8e0] sm:$0xff]
        %v1542 = vld [vmem:[%s220 + $0x8e8] sm:$0xff]
        %v1543 = vld [vmem:[%s220 + $0x8f0] sm:$0xff]
        %v1544 = vld [vmem:[%s220 + $0x8f8] sm:$0xff]
        %v1545 = vld [vmem:[%s220 + $0x900] sm:$0xff]
        %v1546 = vld [vmem:[%s220 + $0x908] sm:$0xff]
        %v1547 = vld [vmem:[%s220 + $0x910] sm:$0xff]
        %v1548 = vld [vmem:[%s220 + $0x918] sm:$0xff]
        %v1549 = vld [vmem:[%s220 + $0x920] sm:$0xff]
        %v1550 = vld [vmem:[%s220 + $0x928] sm:$0xff]
        %v1551 = vld [vmem:[%s220 + $0x930] sm:$0xff]
        %v1552 = vld [vmem:[%s220 + $0x938] sm:$0xff]
        %v1553 = vld [vmem:[%s220 + $0x940] sm:$0xff]
        %v1554 = vld [vmem:[%s220 + $0x948] sm:$0xff]
        %v1555 = vld [vmem:[%s220 + $0x950] sm:$0xff]
        %v1556 = vld [vmem:[%s220 + $0x958] sm:$0xff]
        %v1557 = vld [vmem:[%s220 + $0x960] sm:$0xff]
        %v1558 = vld [vmem:[%s220 + $0x968] sm:$0xff]
        %v1559 = vld [vmem:[%s220 + $0x970] sm:$0xff]
        %v1560 = vld [vmem:[%s220 + $0x978] sm:$0xff]
        %v1561 = vld [vmem:[%s220 + $0x980] sm:$0xff]
        %v1562 = vld [vmem:[%s220 + $0x988] sm:$0xff]
        %v1563 = vld [vmem:[%s220 + $0x990] sm:$0xff]
        %v1564 = vld [vmem:[%s220 + $0x998] sm:$0xff]
        %v1565 = vld [vmem:[%s220 + $0x9a0] sm:$0xff]
        %v1566 = vld [vmem:[%s220 + $0x9a8] sm:$0xff]
        %v1567 = vld [vmem:[%s220 + $0x9b0] sm:$0xff]
        %v1568 = vld [vmem:[%s220 + $0x9b8] sm:$0xff]
        %v1569 = vld [vmem:[%s220 + $0x9c0] sm:$0xff]
        %v1570 = vld [vmem:[%s220 + $0x9c8] sm:$0xff]
        %v1571 = vld [vmem:[%s220 + $0x9d0] sm:$0xff]
        %v1572 = vld [vmem:[%s220 + $0x9d8] sm:$0xff]
        %v1573 = vld [vmem:[%s220 + $0x9e0] sm:$0xff]
        %v1574 = vld [vmem:[%s220 + $0x9e8] sm:$0xff]
        %v1575 = vld [vmem:[%s220 + $0x9f0] sm:$0xff]
        %v1576 = vld [vmem:[%s220 + $0x9f8] sm:$0xff]
        %v1577 = vld [vmem:[%s220 + $0xa00] sm:$0xff]
        %v1578 = vld [vmem:[%s220 + $0xa08] sm:$0xff]
        %v1579 = vld [vmem:[%s220 + $0xa10] sm:$0xff]
        %v1580 = vld [vmem:[%s220 + $0xa18] sm:$0xff]
        %v1581 = vld [vmem:[%s220 + $0xa20] sm:$0xff]
        %v1582 = vld [vmem:[%s220 + $0xa28] sm:$0xff]
        %v1583 = vld [vmem:[%s220 + $0xa30] sm:$0xff]
        %v1584 = vld [vmem:[%s220 + $0xa38] sm:$0xff]
        %v1585 = vld [vmem:[%s220 + $0xa40] sm:$0xff]
        %v1586 = vld [vmem:[%s220 + $0xa48] sm:$0xff]
        %v1587 = vld [vmem:[%s220 + $0xa50] sm:$0xff]
        %v1588 = vld [vmem:[%s220 + $0xa58] sm:$0xff]
        %v1589 = vld [vmem:[%s220 + $0xa60] sm:$0xff]
        %v1590 = vld [vmem:[%s220 + $0xa68] sm:$0xff]
        %v1591 = vld [vmem:[%s220 + $0xa70] sm:$0xff]
        %v1592 = vld [vmem:[%s220 + $0xa78] sm:$0xff]
        %v1593 = vld [vmem:[%s220 + $0xa80] sm:$0xff]
        %v1594 = vld [vmem:[%s220 + $0xa88] sm:$0xff]
        %v1595 = vld [vmem:[%s220 + $0xa90] sm:$0xff]
        %v1596 = vld [vmem:[%s220 + $0xa98] sm:$0xff]
        %v1597 = vld [vmem:[%s220 + $0xaa0] sm:$0xff]
        %v1598 = vld [vmem:[%s220 + $0xaa8] sm:$0xff]
        %v1599 = vld [vmem:[%s220 + $0xab0] sm:$0xff]
        %v1600 = vld [vmem:[%s220 + $0xab8] sm:$0xff]
        %v1601 = vld [vmem:[%s220 + $0xac0] sm:$0xff]
        %v1602 = vld [vmem:[%s220 + $0xac8] sm:$0xff]
        %v1603 = vld [vmem:[%s220 + $0xad0] sm:$0xff]
        %v1604 = vld [vmem:[%s220 + $0xad8] sm:$0xff]
        %v1605 = vld [vmem:[%s220 + $0xae0] sm:$0xff]
        %v1606 = vld [vmem:[%s220 + $0xae8] sm:$0xff]
        %v1607 = vld [vmem:[%s220 + $0xaf0] sm:$0xff]
        %v1608 = vld [vmem:[%s220 + $0xaf8] sm:$0xff]
        %v1609 = vld [vmem:[%s220 + $0xb00] sm:$0xff]
        %v1610 = vld [vmem:[%s220 + $0xb08] sm:$0xff]
        %v1611 = vld [vmem:[%s220 + $0xb10] sm:$0xff]
        %v1612 = vld [vmem:[%s220 + $0xb18] sm:$0xff]
        %v1613 = vld [vmem:[%s220 + $0xb20] sm:$0xff]
        %v1614 = vld [vmem:[%s220 + $0xb28] sm:$0xff]
        %v1615 = vld [vmem:[%s220 + $0xb30] sm:$0xff]
        %v1616 = vld [vmem:[%s220 + $0xb38] sm:$0xff]
        %v1617 = vld [vmem:[%s220 + $0xb40] sm:$0xff]
        %v1618 = vld [vmem:[%s220 + $0xb48] sm:$0xff]
        %v1619 = vld [vmem:[%s220 + $0xb50] sm:$0xff]
        %v1620 = vld [vmem:[%s220 + $0xb58] sm:$0xff]
        %v1621 = vld [vmem:[%s220 + $0xb60] sm:$0xff]
        %v1622 = vld [vmem:[%s220 + $0xb68] sm:$0xff]
        %v1623 = vld [vmem:[%s220 + $0xb70] sm:$0xff]
        %v1624 = vld [vmem:[%s220 + $0xb78] sm:$0xff]
        %v1625 = vld [vmem:[%s220 + $0xb80] sm:$0xff]
        %v1626 = vld [vmem:[%s220 + $0xb88] sm:$0xff]
        %v1627 = vld [vmem:[%s220 + $0xb90] sm:$0xff]
        %v1628 = vld [vmem:[%s220 + $0xb98] sm:$0xff]
        %v1629 = vld [vmem:[%s220 + $0xba0] sm:$0xff]
        %v1630 = vld [vmem:[%s220 + $0xba8] sm:$0xff]
        %v1631 = vld [vmem:[%s220 + $0xbb0] sm:$0xff]
        %v1632 = vld [vmem:[%s220 + $0xbb8] sm:$0xff]
        %v1633 = vld [vmem:[%s220 + $0xbc0] sm:$0xff]
        %v1634 = vld [vmem:[%s220 + $0xbc8] sm:$0xff]
        %v1635 = vld [vmem:[%s220 + $0xbd0] sm:$0xff]
        %v1636 = vld [vmem:[%s220 + $0xbd8] sm:$0xff]
        %v1637 = vld [vmem:[%s220 + $0xbe0] sm:$0xff]
        %v1638 = vld [vmem:[%s220 + $0xbe8] sm:$0xff]
        %v1639 = vld [vmem:[%s220 + $0xbf0] sm:$0xff]
        %v1640 = vld [vmem:[%s220 + $0xbf8] sm:$0xff]
        %v1641 = vld [vmem:[%s220 + $0xc00] sm:$0xff]
        %v1642 = vld [vmem:[%s220 + $0xc08] sm:$0xff]
        %v1643 = vld [vmem:[%s220 + $0xc10] sm:$0xff]
        %v1644 = vld [vmem:[%s220 + $0xc18] sm:$0xff]
        %v1645 = vld [vmem:[%s220 + $0xc20] sm:$0xff]
        %v1646 = vld [vmem:[%s220 + $0xc28] sm:$0xff]
        %v1647 = vld [vmem:[%s220 + $0xc30] sm:$0xff]
        %v1648 = vld [vmem:[%s220 + $0xc38] sm:$0xff]
        %v1649 = vld [vmem:[%s220 + $0xc40] sm:$0xff]
        %v1650 = vld [vmem:[%s220 + $0xc48] sm:$0xff]
        %v1651 = vld [vmem:[%s220 + $0xc50] sm:$0xff]
        %v1652 = vld [vmem:[%s220 + $0xc58] sm:$0xff]
        %v1653 = vld [vmem:[%s220 + $0xc60] sm:$0xff]
        %v1654 = vld [vmem:[%s220 + $0xc68] sm:$0xff]
        %v1655 = vld [vmem:[%s220 + $0xc70] sm:$0xff]
        %v1656 = vld [vmem:[%s220 + $0xc78] sm:$0xff]
        %v1657 = vld [vmem:[%s220 + $0xc80] sm:$0xff]
        %v1658 = vld [vmem:[%s220 + $0xc88] sm:$0xff]
        %v1659 = vld [vmem:[%s220 + $0xc90] sm:$0xff]
        %v1660 = vld [vmem:[%s220 + $0xc98] sm:$0xff]
        %v1661 = vld [vmem:[%s220 + $0xca0] sm:$0xff]
        %v1662 = vld [vmem:[%s220 + $0xca8] sm:$0xff]
        %v1663 = vld [vmem:[%s220 + $0xcb0] sm:$0xff]
        %v1664 = vld [vmem:[%s220 + $0xcb8] sm:$0xff]
        %v1665 = vld [vmem:[%s220 + $0xcc0] sm:$0xff]
        %v1666 = vld [vmem:[%s220 + $0xcc8] sm:$0xff]
        %v1667 = vld [vmem:[%s220 + $0xcd0] sm:$0xff]
        %v1668 = vld [vmem:[%s220 + $0xcd8] sm:$0xff]
        %v1669 = vld [vmem:[%s220 + $0xce0] sm:$0xff]
        %v1670 = vld [vmem:[%s220 + $0xce8] sm:$0xff]
        %v1671 = vld [vmem:[%s220 + $0xcf0] sm:$0xff]
        %v1672 = vld [vmem:[%s220 + $0xcf8] sm:$0xff]
        %v1673 = vld [vmem:[%s220 + $0xd00] sm:$0xff]
        %v1674 = vld [vmem:[%s220 + $0xd08] sm:$0xff]
        %v1675 = vld [vmem:[%s220 + $0xd10] sm:$0xff]
        %v1676 = vld [vmem:[%s220 + $0xd18] sm:$0xff]
        %v1677 = vld [vmem:[%s220 + $0xd20] sm:$0xff]
        %v1678 = vld [vmem:[%s220 + $0xd28] sm:$0xff]
        %v1679 = vld [vmem:[%s220 + $0xd30] sm:$0xff]
        %v1680 = vld [vmem:[%s220 + $0xd38] sm:$0xff]
        %v1681 = vld [vmem:[%s220 + $0xd40] sm:$0xff]
        %v1682 = vld [vmem:[%s220 + $0xd48] sm:$0xff]
        %v1683 = vld [vmem:[%s220 + $0xd50] sm:$0xff]
        %v1684 = vld [vmem:[%s220 + $0xd58] sm:$0xff]
        %v1685 = vld [vmem:[%s220 + $0xd60] sm:$0xff]
        %v1686 = vld [vmem:[%s220 + $0xd68] sm:$0xff]
        %v1687 = vld [vmem:[%s220 + $0xd70] sm:$0xff]
        %v1688 = vld [vmem:[%s220 + $0xd78] sm:$0xff]
        %v1689 = vld [vmem:[%s220 + $0xd80] sm:$0xff]
        %v1690 = vld [vmem:[%s220 + $0xd88] sm:$0xff]
        %v1691 = vld [vmem:[%s220 + $0xd90] sm:$0xff]
        %v1692 = vld [vmem:[%s220 + $0xd98] sm:$0xff]
        %v1693 = vld [vmem:[%s220 + $0xda0] sm:$0xff]
        %v1694 = vld [vmem:[%s220 + $0xda8] sm:$0xff]
        %v1695 = vld [vmem:[%s220 + $0xdb0] sm:$0xff]
        %v1696 = vld [vmem:[%s220 + $0xdb8] sm:$0xff]
        %v1697 = vld [vmem:[%s220 + $0xdc0] sm:$0xff]
        %v1698 = vld [vmem:[%s220 + $0xdc8] sm:$0xff]
        %v1699 = vld [vmem:[%s220 + $0xdd0] sm:$0xff]
        %v1700 = vld [vmem:[%s220 + $0xdd8] sm:$0xff]
        %v1701 = vld [vmem:[%s220 + $0xde0] sm:$0xff]
        %v1702 = vld [vmem:[%s220 + $0xde8] sm:$0xff]
        %v1703 = vld [vmem:[%s220 + $0xdf0] sm:$0xff]
        %v1704 = vld [vmem:[%s220 + $0xdf8] sm:$0xff]
        %v1705 = vld [vmem:[%s220 + $0xe00] sm:$0xff]
        %v1706 = vld [vmem:[%s220 + $0xe08] sm:$0xff]
        %v1707 = vld [vmem:[%s220 + $0xe10] sm:$0xff]
        %v1708 = vld [vmem:[%s220 + $0xe18] sm:$0xff]
        %v1709 = vld [vmem:[%s220 + $0xe20] sm:$0xff]
        %v1710 = vld [vmem:[%s220 + $0xe28] sm:$0xff]
        %v1711 = vld [vmem:[%s220 + $0xe30] sm:$0xff]
        %v1712 = vld [vmem:[%s220 + $0xe38] sm:$0xff]
        %v1713 = vld [vmem:[%s220 + $0xe40] sm:$0xff]
        %v1714 = vld [vmem:[%s220 + $0xe48] sm:$0xff]
        %v1715 = vld [vmem:[%s220 + $0xe50] sm:$0xff]
        %v1716 = vld [vmem:[%s220 + $0xe58] sm:$0xff]
        %v1717 = vld [vmem:[%s220 + $0xe60] sm:$0xff]
        %v1718 = vld [vmem:[%s220 + $0xe68] sm:$0xff]
        %v1719 = vld [vmem:[%s220 + $0xe70] sm:$0xff]
        %v1720 = vld [vmem:[%s220 + $0xe78] sm:$0xff]
        %v1721 = vld [vmem:[%s220 + $0xe80] sm:$0xff]
        %v1722 = vld [vmem:[%s220 + $0xe88] sm:$0xff]
        %v1723 = vld [vmem:[%s220 + $0xe90] sm:$0xff]
        %v1724 = vld [vmem:[%s220 + $0xe98] sm:$0xff]
        %v1725 = vld [vmem:[%s220 + $0xea0] sm:$0xff]
        %v1726 = vld [vmem:[%s220 + $0xea8] sm:$0xff]
        %v1727 = vld [vmem:[%s220 + $0xeb0] sm:$0xff]
        %v1728 = vld [vmem:[%s220 + $0xeb8] sm:$0xff]
        %v1729 = vld [vmem:[%s220 + $0xec0] sm:$0xff]
        %v1730 = vld [vmem:[%s220 + $0xec8] sm:$0xff]
        %v1731 = vld [vmem:[%s220 + $0xed0] sm:$0xff]
        %v1732 = vld [vmem:[%s220 + $0xed8] sm:$0xff]
        %v1733 = vld [vmem:[%s220 + $0xee0] sm:$0xff]
        %v1734 = vld [vmem:[%s220 + $0xee8] sm:$0xff]
        %v1735 = vld [vmem:[%s220 + $0xef0] sm:$0xff]
        %v1736 = vld [vmem:[%s220 + $0xef8] sm:$0xff]
        %v1737 = vld [vmem:[%s220 + $0xf00] sm:$0xff]
        %v1738 = vld [vmem:[%s220 + $0xf08] sm:$0xff]
        %v1739 = vld [vmem:[%s220 + $0xf10] sm:$0xff]
        %v1740 = vld [vmem:[%s220 + $0xf18] sm:$0xff]
        %v1741 = vld [vmem:[%s220 + $0xf20] sm:$0xff]
        %v1742 = vld [vmem:[%s220 + $0xf28] sm:$0xff]
        %v1743 = vld [vmem:[%s220 + $0xf30] sm:$0xff]
        %v1744 = vld [vmem:[%s220 + $0xf38] sm:$0xff]
        %v1745 = vld [vmem:[%s220 + $0xf40] sm:$0xff]
        %v1746 = vld [vmem:[%s220 + $0xf48] sm:$0xff]
        %v1747 = vld [vmem:[%s220 + $0xf50] sm:$0xff]
        %v1748 = vld [vmem:[%s220 + $0xf58] sm:$0xff]
        %v1749 = vld [vmem:[%s220 + $0xf60] sm:$0xff]
        %v1750 = vld [vmem:[%s220 + $0xf68] sm:$0xff]
        %v1751 = vld [vmem:[%s220 + $0xf70] sm:$0xff]
        %v1752 = vld [vmem:[%s220 + $0xf78] sm:$0xff]
        %v1753 = vld [vmem:[%s220 + $0xf80] sm:$0xff]
        %v1754 = vld [vmem:[%s220 + $0xf88] sm:$0xff]
        %v1755 = vld [vmem:[%s220 + $0xf90] sm:$0xff]
        %v1756 = vld [vmem:[%s220 + $0xf98] sm:$0xff]
        %v1757 = vld [vmem:[%s220 + $0xfa0] sm:$0xff]
        %v1758 = vld [vmem:[%s220 + $0xfa8] sm:$0xff]
        %v1759 = vld [vmem:[%s220 + $0xfb0] sm:$0xff]
        %v1760 = vld [vmem:[%s220 + $0xfb8] sm:$0xff]
        %v1761 = vld [vmem:[%s220 + $0xfc0] sm:$0xff]
        %v1762 = vld [vmem:[%s220 + $0xfc8] sm:$0xff]
        %v1763 = vld [vmem:[%s220 + $0xfd0] sm:$0xff]
        %v1764 = vld [vmem:[%s220 + $0xfd8] sm:$0xff]
        %v1765 = vld [vmem:[%s220 + $0xfe0] sm:$0xff]
        %v1766 = vld [vmem:[%s220 + $0xfe8] sm:$0xff]
        %v1767 = vld [vmem:[%s220 + $0xff0] sm:$0xff]
        %v1768 = vld [vmem:[%s220 + $0xff8] sm:$0xff]
        %v2025 = vlaneseq
        %v2026 = vand.u32 %v2025, 127
        %v2027 = vlaneseq
        %v2028 = vshrl.u32 %v2027, 7
        %v2029 = vsub.s32 %v2026, %v2028
        %v2030 = vrot.slane %v490, %v2029
        %v2031 = vadd.s32 %v2026, 4294967288
        %v2032 = vlaneseq
        %v2033 = vshrl.u32 %v2032, 7
        %v2034 = vsub.s32 %v2031, %v2033
        %v2035 = vrot.slane %v493, %v2034
        %vm2036 = vcmask 130112
        %v2037 = vsel %vm2036, %v2035, %v2030
        %v2038 = vadd.s32 %v2026, 4294967280
        %v2039 = vlaneseq
        %v2040 = vshrl.u32 %v2039, 7
        %v2041 = vsub.s32 %v2038, %v2040
        %v2042 = vrot.slane %v496, %v2041
        %vm2043 = vcmask 195712
        %v2044 = vsel %vm2043, %v2042, %v2037
        %v2045 = vadd.s32 %v2026, 4294967272
        %v2046 = vlaneseq
        %v2047 = vshrl.u32 %v2046, 7
        %v2048 = vsub.s32 %v2045, %v2047
        %v2049 = vrot.slane %v499, %v2048
        %vm2050 = vcmask 261312
        %v2051 = vsel %vm2050, %v2049, %v2044
        %v2052 = vadd.s32 %v2026, 4294967264
        %v2053 = vlaneseq
        %v2054 = vshrl.u32 %v2053, 7
        %v2055 = vsub.s32 %v2052, %v2054
        %v2056 = vrot.slane %v502, %v2055
        %vm2057 = vcmask 326912
        %v2058 = vsel %vm2057, %v2056, %v2051
        %v2059 = vadd.s32 %v2026, 4294967256
        %v2060 = vlaneseq
        %v2061 = vshrl.u32 %v2060, 7
        %v2062 = vsub.s32 %v2059, %v2061
        %v2063 = vrot.slane %v505, %v2062
        %vm2064 = vcmask 392512
        %v2065 = vsel %vm2064, %v2063, %v2058
        %v2066 = vadd.s32 %v2026, 4294967248
        %v2067 = vlaneseq
        %v2068 = vshrl.u32 %v2067, 7
        %v2069 = vsub.s32 %v2066, %v2068
        %v2070 = vrot.slane %v508, %v2069
        %vm2071 = vcmask 458112
        %v2072 = vsel %vm2071, %v2070, %v2065
        %v2073 = vadd.s32 %v2026, 4294967240
        %v2074 = vlaneseq
        %v2075 = vshrl.u32 %v2074, 7
        %v2076 = vsub.s32 %v2073, %v2075
        %v2077 = vrot.slane %v511, %v2076
        %vm2078 = vcmask 523712
        %v2079 = vsel %vm2078, %v2077, %v2072
        %v2080 = vadd.s32 %v2026, 4294967232
        %v2081 = vlaneseq
        %v2082 = vshrl.u32 %v2081, 7
        %v2083 = vsub.s32 %v2080, %v2082
        %v2084 = vrot.slane %v514, %v2083
        %vm2085 = vcmask 589312
        %v2086 = vsel %vm2085, %v2084, %v2079
        %v2087 = vadd.s32 %v2026, 4294967224
        %v2088 = vlaneseq
        %v2089 = vshrl.u32 %v2088, 7
        %v2090 = vsub.s32 %v2087, %v2089
        %v2091 = vrot.slane %v517, %v2090
        %vm2092 = vcmask 654912
        %v2093 = vsel %vm2092, %v2091, %v2086
        %v2094 = vadd.s32 %v2026, 4294967216
        %v2095 = vlaneseq
        %v2096 = vshrl.u32 %v2095, 7
        %v2097 = vsub.s32 %v2094, %v2096
        %v2098 = vrot.slane %v520, %v2097
        %vm2099 = vcmask 720512
        %v2100 = vsel %vm2099, %v2098, %v2093
        %v2101 = vadd.s32 %v2026, 4294967208
        %v2102 = vlaneseq
        %v2103 = vshrl.u32 %v2102, 7
        %v2104 = vsub.s32 %v2101, %v2103
        %v2105 = vrot.slane %v523, %v2104
        %vm2106 = vcmask 786112
        %v2107 = vsel %vm2106, %v2105, %v2100
        %v2108 = vadd.s32 %v2026, 4294967200
        %v2109 = vlaneseq
        %v2110 = vshrl.u32 %v2109, 7
        %v2111 = vsub.s32 %v2108, %v2110
        %v2112 = vrot.slane %v526, %v2111
        %vm2113 = vcmask 851712
        %v2114 = vsel %vm2113, %v2112, %v2107
        %v2115 = vadd.s32 %v2026, 4294967192
        %v2116 = vlaneseq
        %v2117 = vshrl.u32 %v2116, 7
        %v2118 = vsub.s32 %v2115, %v2117
        %v2119 = vrot.slane %v529, %v2118
        %vm2120 = vcmask 917312
        %v2121 = vsel %vm2120, %v2119, %v2114
        %v2122 = vadd.s32 %v2026, 4294967184
        %v2123 = vlaneseq
        %v2124 = vshrl.u32 %v2123, 7
        %v2125 = vsub.s32 %v2122, %v2124
        %v2126 = vrot.slane %v532, %v2125
        %vm2127 = vcmask 982912
        %v2128 = vsel %vm2127, %v2126, %v2121
        %v2129 = vadd.s32 %v2026, 4294967176
        %v2130 = vlaneseq
        %v2131 = vshrl.u32 %v2130, 7
        %v2132 = vsub.s32 %v2129, %v2131
        %v2133 = vrot.slane %v535, %v2132
        %vm2134 = vcmask 1048512
        %v2135 = vsel %vm2134, %v2133, %v2128
        %v2136 = vlaneseq
        %v2137 = vshrl.u32 %v2136, 7
        %v2138 = vsub.s32 %v2026, %v2137
        %v2139 = vrot.slane %v538, %v2138
        %v2140 = vlaneseq
        %v2141 = vshrl.u32 %v2140, 7
        %v2142 = vsub.s32 %v2031, %v2141
        %v2143 = vrot.slane %v541, %v2142
        %v2144 = vsel %vm2036, %v2143, %v2139
        %v2145 = vlaneseq
        %v2146 = vshrl.u32 %v2145, 7
        %v2147 = vsub.s32 %v2038, %v2146
        %v2148 = vrot.slane %v544, %v2147
        %v2149 = vsel %vm2043, %v2148, %v2144
        %v2150 = vlaneseq
        %v2151 = vshrl.u32 %v2150, 7
        %v2152 = vsub.s32 %v2045, %v2151
        %v2153 = vrot.slane %v547, %v2152
        %v2154 = vsel %vm2050, %v2153, %v2149
        %v2155 = vlaneseq
        %v2156 = vshrl.u32 %v2155, 7
        %v2157 = vsub.s32 %v2052, %v2156
        %v2158 = vrot.slane %v550, %v2157
        %v2159 = vsel %vm2057, %v2158, %v2154
        %v2160 = vlaneseq
        %v2161 = vshrl.u32 %v2160, 7
        %v2162 = vsub.s32 %v2059, %v2161
        %v2163 = vrot.slane %v553, %v2162
        %v2164 = vsel %vm2064, %v2163, %v2159
        %v2165 = vlaneseq
        %v2166 = vshrl.u32 %v2165, 7
        %v2167 = vsub.s32 %v2066, %v2166
        %v2168 = vrot.slane %v556, %v2167
        %v2169 = vsel %vm2071, %v2168, %v2164
        %v2170 = vlaneseq
        %v2171 = vshrl.u32 %v2170, 7
        %v2172 = vsub.s32 %v2073, %v2171
        %v2173 = vrot.slane %v559, %v2172
        %v2174 = vsel %vm2078, %v2173, %v2169
        %v2175 = vlaneseq
        %v2176 = vshrl.u32 %v2175, 7
        %v2177 = vsub.s32 %v2080, %v2176
        %v2178 = vrot.slane %v562, %v2177
        %v2179 = vsel %vm2085, %v2178, %v2174
        %v2180 = vlaneseq
        %v2181 = vshrl.u32 %v2180, 7
        %v2182 = vsub.s32 %v2087, %v2181
        %v2183 = vrot.slane %v565, %v2182
        %v2184 = vsel %vm2092, %v2183, %v2179
        %v2185 = vlaneseq
        %v2186 = vshrl.u32 %v2185, 7
        %v2187 = vsub.s32 %v2094, %v2186
        %v2188 = vrot.slane %v568, %v2187
        %v2189 = vsel %vm2099, %v2188, %v2184
        %v2190 = vlaneseq
        %v2191 = vshrl.u32 %v2190, 7
        %v2192 = vsub.s32 %v2101, %v2191
        %v2193 = vrot.slane %v571, %v2192
        %v2194 = vsel %vm2106, %v2193, %v2189
        %v2195 = vlaneseq
        %v2196 = vshrl.u32 %v2195, 7
        %v2197 = vsub.s32 %v2108, %v2196
        %v2198 = vrot.slane %v574, %v2197
        %v2199 = vsel %vm2113, %v2198, %v2194
        %v2200 = vlaneseq
        %v2201 = vshrl.u32 %v2200, 7
        %v2202 = vsub.s32 %v2115, %v2201
        %v2203 = vrot.slane %v577, %v2202
        %v2204 = vsel %vm2120, %v2203, %v2199
        %v2205 = vlaneseq
        %v2206 = vshrl.u32 %v2205, 7
        %v2207 = vsub.s32 %v2122, %v2206
        %v2208 = vrot.slane %v580, %v2207
        %v2209 = vsel %vm2127, %v2208, %v2204
        %v2210 = vlaneseq
        %v2211 = vshrl.u32 %v2210, 7
        %v2212 = vsub.s32 %v2129, %v2211
        %v2213 = vrot.slane %v583, %v2212
        %v2214 = vsel %vm2134, %v2213, %v2209
        %v2215 = vlaneseq
        %v2216 = vshrl.u32 %v2215, 7
        %v2217 = vsub.s32 %v2026, %v2216
        %v2218 = vrot.slane %v586, %v2217
        %v2219 = vlaneseq
        %v2220 = vshrl.u32 %v2219, 7
        %v2221 = vsub.s32 %v2031, %v2220
        %v2222 = vrot.slane %v589, %v2221
        %v2223 = vsel %vm2036, %v2222, %v2218
        %v2224 = vlaneseq
        %v2225 = vshrl.u32 %v2224, 7
        %v2226 = vsub.s32 %v2038, %v2225
        %v2227 = vrot.slane %v592, %v2226
        %v2228 = vsel %vm2043, %v2227, %v2223
        %v2229 = vlaneseq
        %v2230 = vshrl.u32 %v2229, 7
        %v2231 = vsub.s32 %v2045, %v2230
        %v2232 = vrot.slane %v595, %v2231
        %v2233 = vsel %vm2050, %v2232, %v2228
        %v2234 = vlaneseq
        %v2235 = vshrl.u32 %v2234, 7
        %v2236 = vsub.s32 %v2052, %v2235
        %v2237 = vrot.slane %v598, %v2236
        %v2238 = vsel %vm2057, %v2237, %v2233
        %v2239 = vlaneseq
        %v2240 = vshrl.u32 %v2239, 7
        %v2241 = vsub.s32 %v2059, %v2240
        %v2242 = vrot.slane %v601, %v2241
        %v2243 = vsel %vm2064, %v2242, %v2238
        %v2244 = vlaneseq
        %v2245 = vshrl.u32 %v2244, 7
        %v2246 = vsub.s32 %v2066, %v2245
        %v2247 = vrot.slane %v604, %v2246
        %v2248 = vsel %vm2071, %v2247, %v2243
        %v2249 = vlaneseq
        %v2250 = vshrl.u32 %v2249, 7
        %v2251 = vsub.s32 %v2073, %v2250
        %v2252 = vrot.slane %v607, %v2251
        %v2253 = vsel %vm2078, %v2252, %v2248
        %v2254 = vlaneseq
        %v2255 = vshrl.u32 %v2254, 7
        %v2256 = vsub.s32 %v2080, %v2255
        %v2257 = vrot.slane %v610, %v2256
        %v2258 = vsel %vm2085, %v2257, %v2253
        %v2259 = vlaneseq
        %v2260 = vshrl.u32 %v2259, 7
        %v2261 = vsub.s32 %v2087, %v2260
        %v2262 = vrot.slane %v613, %v2261
        %v2263 = vsel %vm2092, %v2262, %v2258
        %v2264 = vlaneseq
        %v2265 = vshrl.u32 %v2264, 7
        %v2266 = vsub.s32 %v2094, %v2265
        %v2267 = vrot.slane %v616, %v2266
        %v2268 = vsel %vm2099, %v2267, %v2263
        %v2269 = vlaneseq
        %v2270 = vshrl.u32 %v2269, 7
        %v2271 = vsub.s32 %v2101, %v2270
        %v2272 = vrot.slane %v619, %v2271
        %v2273 = vsel %vm2106, %v2272, %v2268
        %v2274 = vlaneseq
        %v2275 = vshrl.u32 %v2274, 7
        %v2276 = vsub.s32 %v2108, %v2275
        %v2277 = vrot.slane %v622, %v2276
        %v2278 = vsel %vm2113, %v2277, %v2273
        %v2279 = vlaneseq
        %v2280 = vshrl.u32 %v2279, 7
        %v2281 = vsub.s32 %v2115, %v2280
        %v2282 = vrot.slane %v625, %v2281
        %v2283 = vsel %vm2120, %v2282, %v2278
        %v2284 = vlaneseq
        %v2285 = vshrl.u32 %v2284, 7
        %v2286 = vsub.s32 %v2122, %v2285
        %v2287 = vrot.slane %v628, %v2286
        %v2288 = vsel %vm2127, %v2287, %v2283
        %v2289 = vlaneseq
        %v2290 = vshrl.u32 %v2289, 7
        %v2291 = vsub.s32 %v2129, %v2290
        %v2292 = vrot.slane %v631, %v2291
        %v2293 = vsel %vm2134, %v2292, %v2288
        %v2294 = vlaneseq
        %v2295 = vshrl.u32 %v2294, 7
        %v2296 = vsub.s32 %v2026, %v2295
        %v2297 = vrot.slane %v634, %v2296
        %v2298 = vlaneseq
        %v2299 = vshrl.u32 %v2298, 7
        %v2300 = vsub.s32 %v2031, %v2299
        %v2301 = vrot.slane %v637, %v2300
        %v2302 = vsel %vm2036, %v2301, %v2297
        %v2303 = vlaneseq
        %v2304 = vshrl.u32 %v2303, 7
        %v2305 = vsub.s32 %v2038, %v2304
        %v2306 = vrot.slane %v640, %v2305
        %v2307 = vsel %vm2043, %v2306, %v2302
        %v2308 = vlaneseq
        %v2309 = vshrl.u32 %v2308, 7
        %v2310 = vsub.s32 %v2045, %v2309
        %v2311 = vrot.slane %v643, %v2310
        %v2312 = vsel %vm2050, %v2311, %v2307
        %v2313 = vlaneseq
        %v2314 = vshrl.u32 %v2313, 7
        %v2315 = vsub.s32 %v2052, %v2314
        %v2316 = vrot.slane %v646, %v2315
        %v2317 = vsel %vm2057, %v2316, %v2312
        %v2318 = vlaneseq
        %v2319 = vshrl.u32 %v2318, 7
        %v2320 = vsub.s32 %v2059, %v2319
        %v2321 = vrot.slane %v649, %v2320
        %v2322 = vsel %vm2064, %v2321, %v2317
        %v2323 = vlaneseq
        %v2324 = vshrl.u32 %v2323, 7
        %v2325 = vsub.s32 %v2066, %v2324
        %v2326 = vrot.slane %v652, %v2325
        %v2327 = vsel %vm2071, %v2326, %v2322
        %v2328 = vlaneseq
        %v2329 = vshrl.u32 %v2328, 7
        %v2330 = vsub.s32 %v2073, %v2329
        %v2331 = vrot.slane %v655, %v2330
        %v2332 = vsel %vm2078, %v2331, %v2327
        %v2333 = vlaneseq
        %v2334 = vshrl.u32 %v2333, 7
        %v2335 = vsub.s32 %v2080, %v2334
        %v2336 = vrot.slane %v658, %v2335
        %v2337 = vsel %vm2085, %v2336, %v2332
        %v2338 = vlaneseq
        %v2339 = vshrl.u32 %v2338, 7
        %v2340 = vsub.s32 %v2087, %v2339
        %v2341 = vrot.slane %v661, %v2340
        %v2342 = vsel %vm2092, %v2341, %v2337
        %v2343 = vlaneseq
        %v2344 = vshrl.u32 %v2343, 7
        %v2345 = vsub.s32 %v2094, %v2344
        %v2346 = vrot.slane %v664, %v2345
        %v2347 = vsel %vm2099, %v2346, %v2342
        %v2348 = vlaneseq
        %v2349 = vshrl.u32 %v2348, 7
        %v2350 = vsub.s32 %v2101, %v2349
        %v2351 = vrot.slane %v667, %v2350
        %v2352 = vsel %vm2106, %v2351, %v2347
        %v2353 = vlaneseq
        %v2354 = vshrl.u32 %v2353, 7
        %v2355 = vsub.s32 %v2108, %v2354
        %v2356 = vrot.slane %v670, %v2355
        %v2357 = vsel %vm2113, %v2356, %v2352
        %v2358 = vlaneseq
        %v2359 = vshrl.u32 %v2358, 7
        %v2360 = vsub.s32 %v2115, %v2359
        %v2361 = vrot.slane %v673, %v2360
        %v2362 = vsel %vm2120, %v2361, %v2357
        %v2363 = vlaneseq
        %v2364 = vshrl.u32 %v2363, 7
        %v2365 = vsub.s32 %v2122, %v2364
        %v2366 = vrot.slane %v676, %v2365
        %v2367 = vsel %vm2127, %v2366, %v2362
        %v2368 = vlaneseq
        %v2369 = vshrl.u32 %v2368, 7
        %v2370 = vsub.s32 %v2129, %v2369
        %v2371 = vrot.slane %v679, %v2370
        %v2372 = vsel %vm2134, %v2371, %v2367
        %v2373 = vlaneseq
        %v2374 = vshrl.u32 %v2373, 7
        %v2375 = vsub.s32 %v2026, %v2374
        %v2376 = vrot.slane %v682, %v2375
        %v2377 = vlaneseq
        %v2378 = vshrl.u32 %v2377, 7
        %v2379 = vsub.s32 %v2031, %v2378
        %v2380 = vrot.slane %v685, %v2379
        %v2381 = vsel %vm2036, %v2380, %v2376
        %v2382 = vlaneseq
        %v2383 = vshrl.u32 %v2382, 7
        %v2384 = vsub.s32 %v2038, %v2383
        %v2385 = vrot.slane %v688, %v2384
        %v2386 = vsel %vm2043, %v2385, %v2381
        %v2387 = vlaneseq
        %v2388 = vshrl.u32 %v2387, 7
        %v2389 = vsub.s32 %v2045, %v2388
        %v2390 = vrot.slane %v691, %v2389
        %v2391 = vsel %vm2050, %v2390, %v2386
        %v2392 = vlaneseq
        %v2393 = vshrl.u32 %v2392, 7
        %v2394 = vsub.s32 %v2052, %v2393
        %v2395 = vrot.slane %v694, %v2394
        %v2396 = vsel %vm2057, %v2395, %v2391
        %v2397 = vlaneseq
        %v2398 = vshrl.u32 %v2397, 7
        %v2399 = vsub.s32 %v2059, %v2398
        %v2400 = vrot.slane %v697, %v2399
        %v2401 = vsel %vm2064, %v2400, %v2396
        %v2402 = vlaneseq
        %v2403 = vshrl.u32 %v2402, 7
        %v2404 = vsub.s32 %v2066, %v2403
        %v2405 = vrot.slane %v700, %v2404
        %v2406 = vsel %vm2071, %v2405, %v2401
        %v2407 = vlaneseq
        %v2408 = vshrl.u32 %v2407, 7
        %v2409 = vsub.s32 %v2073, %v2408
        %v2410 = vrot.slane %v703, %v2409
        %v2411 = vsel %vm2078, %v2410, %v2406
        %v2412 = vlaneseq
        %v2413 = vshrl.u32 %v2412, 7
        %v2414 = vsub.s32 %v2080, %v2413
        %v2415 = vrot.slane %v706, %v2414
        %v2416 = vsel %vm2085, %v2415, %v2411
        %v2417 = vlaneseq
        %v2418 = vshrl.u32 %v2417, 7
        %v2419 = vsub.s32 %v2087, %v2418
        %v2420 = vrot.slane %v709, %v2419
        %v2421 = vsel %vm2092, %v2420, %v2416
        %v2422 = vlaneseq
        %v2423 = vshrl.u32 %v2422, 7
        %v2424 = vsub.s32 %v2094, %v2423
        %v2425 = vrot.slane %v712, %v2424
        %v2426 = vsel %vm2099, %v2425, %v2421
        %v2427 = vlaneseq
        %v2428 = vshrl.u32 %v2427, 7
        %v2429 = vsub.s32 %v2101, %v2428
        %v2430 = vrot.slane %v715, %v2429
        %v2431 = vsel %vm2106, %v2430, %v2426
        %v2432 = vlaneseq
        %v2433 = vshrl.u32 %v2432, 7
        %v2434 = vsub.s32 %v2108, %v2433
        %v2435 = vrot.slane %v718, %v2434
        %v2436 = vsel %vm2113, %v2435, %v2431
        %v2437 = vlaneseq
        %v2438 = vshrl.u32 %v2437, 7
        %v2439 = vsub.s32 %v2115, %v2438
        %v2440 = vrot.slane %v721, %v2439
        %v2441 = vsel %vm2120, %v2440, %v2436
        %v2442 = vlaneseq
        %v2443 = vshrl.u32 %v2442, 7
        %v2444 = vsub.s32 %v2122, %v2443
        %v2445 = vrot.slane %v724, %v2444
        %v2446 = vsel %vm2127, %v2445, %v2441
        %v2447 = vlaneseq
        %v2448 = vshrl.u32 %v2447, 7
        %v2449 = vsub.s32 %v2129, %v2448
        %v2450 = vrot.slane %v727, %v2449
        %v2451 = vsel %vm2134, %v2450, %v2446
        %v2452 = vlaneseq
        %v2453 = vshrl.u32 %v2452, 7
        %v2454 = vsub.s32 %v2026, %v2453
        %v2455 = vrot.slane %v730, %v2454
        %v2456 = vlaneseq
        %v2457 = vshrl.u32 %v2456, 7
        %v2458 = vsub.s32 %v2031, %v2457
        %v2459 = vrot.slane %v733, %v2458
        %v2460 = vsel %vm2036, %v2459, %v2455
        %v2461 = vlaneseq
        %v2462 = vshrl.u32 %v2461, 7
        %v2463 = vsub.s32 %v2038, %v2462
        %v2464 = vrot.slane %v736, %v2463
        %v2465 = vsel %vm2043, %v2464, %v2460
        %v2466 = vlaneseq
        %v2467 = vshrl.u32 %v2466, 7
        %v2468 = vsub.s32 %v2045, %v2467
        %v2469 = vrot.slane %v739, %v2468
        %v2470 = vsel %vm2050, %v2469, %v2465
        %v2471 = vlaneseq
        %v2472 = vshrl.u32 %v2471, 7
        %v2473 = vsub.s32 %v2052, %v2472
        %v2474 = vrot.slane %v742, %v2473
        %v2475 = vsel %vm2057, %v2474, %v2470
        %v2476 = vlaneseq
        %v2477 = vshrl.u32 %v2476, 7
        %v2478 = vsub.s32 %v2059, %v2477
        %v2479 = vrot.slane %v745, %v2478
        %v2480 = vsel %vm2064, %v2479, %v2475
        %v2481 = vlaneseq
        %v2482 = vshrl.u32 %v2481, 7
        %v2483 = vsub.s32 %v2066, %v2482
        %v2484 = vrot.slane %v748, %v2483
        %v2485 = vsel %vm2071, %v2484, %v2480
        %v2486 = vlaneseq
        %v2487 = vshrl.u32 %v2486, 7
        %v2488 = vsub.s32 %v2073, %v2487
        %v2489 = vrot.slane %v751, %v2488
        %v2490 = vsel %vm2078, %v2489, %v2485
        %v2491 = vlaneseq
        %v2492 = vshrl.u32 %v2491, 7
        %v2493 = vsub.s32 %v2080, %v2492
        %v2494 = vrot.slane %v754, %v2493
        %v2495 = vsel %vm2085, %v2494, %v2490
        %v2496 = vlaneseq
        %v2497 = vshrl.u32 %v2496, 7
        %v2498 = vsub.s32 %v2087, %v2497
        %v2499 = vrot.slane %v757, %v2498
        %v2500 = vsel %vm2092, %v2499, %v2495
        %v2501 = vlaneseq
        %v2502 = vshrl.u32 %v2501, 7
        %v2503 = vsub.s32 %v2094, %v2502
        %v2504 = vrot.slane %v760, %v2503
        %v2505 = vsel %vm2099, %v2504, %v2500
        %v2506 = vlaneseq
        %v2507 = vshrl.u32 %v2506, 7
        %v2508 = vsub.s32 %v2101, %v2507
        %v2509 = vrot.slane %v763, %v2508
        %v2510 = vsel %vm2106, %v2509, %v2505
        %v2511 = vlaneseq
        %v2512 = vshrl.u32 %v2511, 7
        %v2513 = vsub.s32 %v2108, %v2512
        %v2514 = vrot.slane %v766, %v2513
        %v2515 = vsel %vm2113, %v2514, %v2510
        %v2516 = vlaneseq
        %v2517 = vshrl.u32 %v2516, 7
        %v2518 = vsub.s32 %v2115, %v2517
        %v2519 = vrot.slane %v769, %v2518
        %v2520 = vsel %vm2120, %v2519, %v2515
        %v2521 = vlaneseq
        %v2522 = vshrl.u32 %v2521, 7
        %v2523 = vsub.s32 %v2122, %v2522
        %v2524 = vrot.slane %v772, %v2523
        %v2525 = vsel %vm2127, %v2524, %v2520
        %v2526 = vlaneseq
        %v2527 = vshrl.u32 %v2526, 7
        %v2528 = vsub.s32 %v2129, %v2527
        %v2529 = vrot.slane %v775, %v2528
        %v2530 = vsel %vm2134, %v2529, %v2525
        %v2531 = vlaneseq
        %v2532 = vshrl.u32 %v2531, 7
        %v2533 = vsub.s32 %v2026, %v2532
        %v2534 = vrot.slane %v778, %v2533
        %v2535 = vlaneseq
        %v2536 = vshrl.u32 %v2535, 7
        %v2537 = vsub.s32 %v2031, %v2536
        %v2538 = vrot.slane %v781, %v2537
        %v2539 = vsel %vm2036, %v2538, %v2534
        %v2540 = vlaneseq
        %v2541 = vshrl.u32 %v2540, 7
        %v2542 = vsub.s32 %v2038, %v2541
        %v2543 = vrot.slane %v784, %v2542
        %v2544 = vsel %vm2043, %v2543, %v2539
        %v2545 = vlaneseq
        %v2546 = vshrl.u32 %v2545, 7
        %v2547 = vsub.s32 %v2045, %v2546
        %v2548 = vrot.slane %v787, %v2547
        %v2549 = vsel %vm2050, %v2548, %v2544
        %v2550 = vlaneseq
        %v2551 = vshrl.u32 %v2550, 7
        %v2552 = vsub.s32 %v2052, %v2551
        %v2553 = vrot.slane %v790, %v2552
        %v2554 = vsel %vm2057, %v2553, %v2549
        %v2555 = vlaneseq
        %v2556 = vshrl.u32 %v2555, 7
        %v2557 = vsub.s32 %v2059, %v2556
        %v2558 = vrot.slane %v793, %v2557
        %v2559 = vsel %vm2064, %v2558, %v2554
        %v2560 = vlaneseq
        %v2561 = vshrl.u32 %v2560, 7
        %v2562 = vsub.s32 %v2066, %v2561
        %v2563 = vrot.slane %v796, %v2562
        %v2564 = vsel %vm2071, %v2563, %v2559
        %v2565 = vlaneseq
        %v2566 = vshrl.u32 %v2565, 7
        %v2567 = vsub.s32 %v2073, %v2566
        %v2568 = vrot.slane %v799, %v2567
        %v2569 = vsel %vm2078, %v2568, %v2564
        %v2570 = vlaneseq
        %v2571 = vshrl.u32 %v2570, 7
        %v2572 = vsub.s32 %v2080, %v2571
        %v2573 = vrot.slane %v802, %v2572
        %v2574 = vsel %vm2085, %v2573, %v2569
        %v2575 = vlaneseq
        %v2576 = vshrl.u32 %v2575, 7
        %v2577 = vsub.s32 %v2087, %v2576
        %v2578 = vrot.slane %v805, %v2577
        %v2579 = vsel %vm2092, %v2578, %v2574
        %v2580 = vlaneseq
        %v2581 = vshrl.u32 %v2580, 7
        %v2582 = vsub.s32 %v2094, %v2581
        %v2583 = vrot.slane %v808, %v2582
        %v2584 = vsel %vm2099, %v2583, %v2579
        %v2585 = vlaneseq
        %v2586 = vshrl.u32 %v2585, 7
        %v2587 = vsub.s32 %v2101, %v2586
        %v2588 = vrot.slane %v811, %v2587
        %v2589 = vsel %vm2106, %v2588, %v2584
        %v2590 = vlaneseq
        %v2591 = vshrl.u32 %v2590, 7
        %v2592 = vsub.s32 %v2108, %v2591
        %v2593 = vrot.slane %v814, %v2592
        %v2594 = vsel %vm2113, %v2593, %v2589
        %v2595 = vlaneseq
        %v2596 = vshrl.u32 %v2595, 7
        %v2597 = vsub.s32 %v2115, %v2596
        %v2598 = vrot.slane %v817, %v2597
        %v2599 = vsel %vm2120, %v2598, %v2594
        %v2600 = vlaneseq
        %v2601 = vshrl.u32 %v2600, 7
        %v2602 = vsub.s32 %v2122, %v2601
        %v2603 = vrot.slane %v820, %v2602
        %v2604 = vsel %vm2127, %v2603, %v2599
        %v2605 = vlaneseq
        %v2606 = vshrl.u32 %v2605, 7
        %v2607 = vsub.s32 %v2129, %v2606
        %v2608 = vrot.slane %v823, %v2607
        %v2609 = vsel %vm2134, %v2608, %v2604
        %v2610 = vlaneseq
        %v2611 = vshrl.u32 %v2610, 7
        %v2612 = vsub.s32 %v2026, %v2611
        %v2613 = vrot.slane %v826, %v2612
        %v2614 = vlaneseq
        %v2615 = vshrl.u32 %v2614, 7
        %v2616 = vsub.s32 %v2031, %v2615
        %v2617 = vrot.slane %v829, %v2616
        %v2618 = vsel %vm2036, %v2617, %v2613
        %v2619 = vlaneseq
        %v2620 = vshrl.u32 %v2619, 7
        %v2621 = vsub.s32 %v2038, %v2620
        %v2622 = vrot.slane %v832, %v2621
        %v2623 = vsel %vm2043, %v2622, %v2618
        %v2624 = vlaneseq
        %v2625 = vshrl.u32 %v2624, 7
        %v2626 = vsub.s32 %v2045, %v2625
        %v2627 = vrot.slane %v835, %v2626
        %v2628 = vsel %vm2050, %v2627, %v2623
        %v2629 = vlaneseq
        %v2630 = vshrl.u32 %v2629, 7
        %v2631 = vsub.s32 %v2052, %v2630
        %v2632 = vrot.slane %v838, %v2631
        %v2633 = vsel %vm2057, %v2632, %v2628
        %v2634 = vlaneseq
        %v2635 = vshrl.u32 %v2634, 7
        %v2636 = vsub.s32 %v2059, %v2635
        %v2637 = vrot.slane %v841, %v2636
        %v2638 = vsel %vm2064, %v2637, %v2633
        %v2639 = vlaneseq
        %v2640 = vshrl.u32 %v2639, 7
        %v2641 = vsub.s32 %v2066, %v2640
        %v2642 = vrot.slane %v844, %v2641
        %v2643 = vsel %vm2071, %v2642, %v2638
        %v2644 = vlaneseq
        %v2645 = vshrl.u32 %v2644, 7
        %v2646 = vsub.s32 %v2073, %v2645
        %v2647 = vrot.slane %v847, %v2646
        %v2648 = vsel %vm2078, %v2647, %v2643
        %v2649 = vlaneseq
        %v2650 = vshrl.u32 %v2649, 7
        %v2651 = vsub.s32 %v2080, %v2650
        %v2652 = vrot.slane %v850, %v2651
        %v2653 = vsel %vm2085, %v2652, %v2648
        %v2654 = vlaneseq
        %v2655 = vshrl.u32 %v2654, 7
        %v2656 = vsub.s32 %v2087, %v2655
        %v2657 = vrot.slane %v853, %v2656
        %v2658 = vsel %vm2092, %v2657, %v2653
        %v2659 = vlaneseq
        %v2660 = vshrl.u32 %v2659, 7
        %v2661 = vsub.s32 %v2094, %v2660
        %v2662 = vrot.slane %v856, %v2661
        %v2663 = vsel %vm2099, %v2662, %v2658
        %v2664 = vlaneseq
        %v2665 = vshrl.u32 %v2664, 7
        %v2666 = vsub.s32 %v2101, %v2665
        %v2667 = vrot.slane %v859, %v2666
        %v2668 = vsel %vm2106, %v2667, %v2663
        %v2669 = vlaneseq
        %v2670 = vshrl.u32 %v2669, 7
        %v2671 = vsub.s32 %v2108, %v2670
        %v2672 = vrot.slane %v862, %v2671
        %v2673 = vsel %vm2113, %v2672, %v2668
        %v2674 = vlaneseq
        %v2675 = vshrl.u32 %v2674, 7
        %v2676 = vsub.s32 %v2115, %v2675
        %v2677 = vrot.slane %v865, %v2676
        %v2678 = vsel %vm2120, %v2677, %v2673
        %v2679 = vlaneseq
        %v2680 = vshrl.u32 %v2679, 7
        %v2681 = vsub.s32 %v2122, %v2680
        %v2682 = vrot.slane %v868, %v2681
        %v2683 = vsel %vm2127, %v2682, %v2678
        %v2684 = vlaneseq
        %v2685 = vshrl.u32 %v2684, 7
        %v2686 = vsub.s32 %v2129, %v2685
        %v2687 = vrot.slane %v871, %v2686
        %v2688 = vsel %vm2134, %v2687, %v2683
        %v2689 = vlaneseq
        %v2690 = vshrl.u32 %v2689, 7
        %v2691 = vsub.s32 %v2026, %v2690
        %v2692 = vrot.slane %v874, %v2691
        %v2693 = vlaneseq
        %v2694 = vshrl.u32 %v2693, 7
        %v2695 = vsub.s32 %v2031, %v2694
        %v2696 = vrot.slane %v877, %v2695
        %v2697 = vsel %vm2036, %v2696, %v2692
        %v2698 = vlaneseq
        %v2699 = vshrl.u32 %v2698, 7
        %v2700 = vsub.s32 %v2038, %v2699
        %v2701 = vrot.slane %v880, %v2700
        %v2702 = vsel %vm2043, %v2701, %v2697
        %v2703 = vlaneseq
        %v2704 = vshrl.u32 %v2703, 7
        %v2705 = vsub.s32 %v2045, %v2704
        %v2706 = vrot.slane %v883, %v2705
        %v2707 = vsel %vm2050, %v2706, %v2702
        %v2708 = vlaneseq
        %v2709 = vshrl.u32 %v2708, 7
        %v2710 = vsub.s32 %v2052, %v2709
        %v2711 = vrot.slane %v886, %v2710
        %v2712 = vsel %vm2057, %v2711, %v2707
        %v2713 = vlaneseq
        %v2714 = vshrl.u32 %v2713, 7
        %v2715 = vsub.s32 %v2059, %v2714
        %v2716 = vrot.slane %v889, %v2715
        %v2717 = vsel %vm2064, %v2716, %v2712
        %v2718 = vlaneseq
        %v2719 = vshrl.u32 %v2718, 7
        %v2720 = vsub.s32 %v2066, %v2719
        %v2721 = vrot.slane %v892, %v2720
        %v2722 = vsel %vm2071, %v2721, %v2717
        %v2723 = vlaneseq
        %v2724 = vshrl.u32 %v2723, 7
        %v2725 = vsub.s32 %v2073, %v2724
        %v2726 = vrot.slane %v895, %v2725
        %v2727 = vsel %vm2078, %v2726, %v2722
        %v2728 = vlaneseq
        %v2729 = vshrl.u32 %v2728, 7
        %v2730 = vsub.s32 %v2080, %v2729
        %v2731 = vrot.slane %v898, %v2730
        %v2732 = vsel %vm2085, %v2731, %v2727
        %v2733 = vlaneseq
        %v2734 = vshrl.u32 %v2733, 7
        %v2735 = vsub.s32 %v2087, %v2734
        %v2736 = vrot.slane %v901, %v2735
        %v2737 = vsel %vm2092, %v2736, %v2732
        %v2738 = vlaneseq
        %v2739 = vshrl.u32 %v2738, 7
        %v2740 = vsub.s32 %v2094, %v2739
        %v2741 = vrot.slane %v904, %v2740
        %v2742 = vsel %vm2099, %v2741, %v2737
        %v2743 = vlaneseq
        %v2744 = vshrl.u32 %v2743, 7
        %v2745 = vsub.s32 %v2101, %v2744
        %v2746 = vrot.slane %v907, %v2745
        %v2747 = vsel %vm2106, %v2746, %v2742
        %v2748 = vlaneseq
        %v2749 = vshrl.u32 %v2748, 7
        %v2750 = vsub.s32 %v2108, %v2749
        %v2751 = vrot.slane %v910, %v2750
        %v2752 = vsel %vm2113, %v2751, %v2747
        %v2753 = vlaneseq
        %v2754 = vshrl.u32 %v2753, 7
        %v2755 = vsub.s32 %v2115, %v2754
        %v2756 = vrot.slane %v913, %v2755
        %v2757 = vsel %vm2120, %v2756, %v2752
        %v2758 = vlaneseq
        %v2759 = vshrl.u32 %v2758, 7
        %v2760 = vsub.s32 %v2122, %v2759
        %v2761 = vrot.slane %v916, %v2760
        %v2762 = vsel %vm2127, %v2761, %v2757
        %v2763 = vlaneseq
        %v2764 = vshrl.u32 %v2763, 7
        %v2765 = vsub.s32 %v2129, %v2764
        %v2766 = vrot.slane %v919, %v2765
        %v2767 = vsel %vm2134, %v2766, %v2762
        %v2768 = vlaneseq
        %v2769 = vshrl.u32 %v2768, 7
        %v2770 = vsub.s32 %v2026, %v2769
        %v2771 = vrot.slane %v922, %v2770
        %v2772 = vlaneseq
        %v2773 = vshrl.u32 %v2772, 7
        %v2774 = vsub.s32 %v2031, %v2773
        %v2775 = vrot.slane %v925, %v2774
        %v2776 = vsel %vm2036, %v2775, %v2771
        %v2777 = vlaneseq
        %v2778 = vshrl.u32 %v2777, 7
        %v2779 = vsub.s32 %v2038, %v2778
        %v2780 = vrot.slane %v928, %v2779
        %v2781 = vsel %vm2043, %v2780, %v2776
        %v2782 = vlaneseq
        %v2783 = vshrl.u32 %v2782, 7
        %v2784 = vsub.s32 %v2045, %v2783
        %v2785 = vrot.slane %v931, %v2784
        %v2786 = vsel %vm2050, %v2785, %v2781
        %v2787 = vlaneseq
        %v2788 = vshrl.u32 %v2787, 7
        %v2789 = vsub.s32 %v2052, %v2788
        %v2790 = vrot.slane %v934, %v2789
        %v2791 = vsel %vm2057, %v2790, %v2786
        %v2792 = vlaneseq
        %v2793 = vshrl.u32 %v2792, 7
        %v2794 = vsub.s32 %v2059, %v2793
        %v2795 = vrot.slane %v937, %v2794
        %v2796 = vsel %vm2064, %v2795, %v2791
        %v2797 = vlaneseq
        %v2798 = vshrl.u32 %v2797, 7
        %v2799 = vsub.s32 %v2066, %v2798
        %v2800 = vrot.slane %v940, %v2799
        %v2801 = vsel %vm2071, %v2800, %v2796
        %v2802 = vlaneseq
        %v2803 = vshrl.u32 %v2802, 7
        %v2804 = vsub.s32 %v2073, %v2803
        %v2805 = vrot.slane %v943, %v2804
        %v2806 = vsel %vm2078, %v2805, %v2801
        %v2807 = vlaneseq
        %v2808 = vshrl.u32 %v2807, 7
        %v2809 = vsub.s32 %v2080, %v2808
        %v2810 = vrot.slane %v946, %v2809
        %v2811 = vsel %vm2085, %v2810, %v2806
        %v2812 = vlaneseq
        %v2813 = vshrl.u32 %v2812, 7
        %v2814 = vsub.s32 %v2087, %v2813
        %v2815 = vrot.slane %v949, %v2814
        %v2816 = vsel %vm2092, %v2815, %v2811
        %v2817 = vlaneseq
        %v2818 = vshrl.u32 %v2817, 7
        %v2819 = vsub.s32 %v2094, %v2818
        %v2820 = vrot.slane %v952, %v2819
        %v2821 = vsel %vm2099, %v2820, %v2816
        %v2822 = vlaneseq
        %v2823 = vshrl.u32 %v2822, 7
        %v2824 = vsub.s32 %v2101, %v2823
        %v2825 = vrot.slane %v955, %v2824
        %v2826 = vsel %vm2106, %v2825, %v2821
        %v2827 = vlaneseq
        %v2828 = vshrl.u32 %v2827, 7
        %v2829 = vsub.s32 %v2108, %v2828
        %v2830 = vrot.slane %v958, %v2829
        %v2831 = vsel %vm2113, %v2830, %v2826
        %v2832 = vlaneseq
        %v2833 = vshrl.u32 %v2832, 7
        %v2834 = vsub.s32 %v2115, %v2833
        %v2835 = vrot.slane %v961, %v2834
        %v2836 = vsel %vm2120, %v2835, %v2831
        %v2837 = vlaneseq
        %v2838 = vshrl.u32 %v2837, 7
        %v2839 = vsub.s32 %v2122, %v2838
        %v2840 = vrot.slane %v964, %v2839
        %v2841 = vsel %vm2127, %v2840, %v2836
        %v2842 = vlaneseq
        %v2843 = vshrl.u32 %v2842, 7
        %v2844 = vsub.s32 %v2129, %v2843
        %v2845 = vrot.slane %v967, %v2844
        %v2846 = vsel %vm2134, %v2845, %v2841
        %v2847 = vlaneseq
        %v2848 = vshrl.u32 %v2847, 7
        %v2849 = vsub.s32 %v2026, %v2848
        %v2850 = vrot.slane %v970, %v2849
        %v2851 = vlaneseq
        %v2852 = vshrl.u32 %v2851, 7
        %v2853 = vsub.s32 %v2031, %v2852
        %v2854 = vrot.slane %v973, %v2853
        %v2855 = vsel %vm2036, %v2854, %v2850
        %v2856 = vlaneseq
        %v2857 = vshrl.u32 %v2856, 7
        %v2858 = vsub.s32 %v2038, %v2857
        %v2859 = vrot.slane %v976, %v2858
        %v2860 = vsel %vm2043, %v2859, %v2855
        %v2861 = vlaneseq
        %v2862 = vshrl.u32 %v2861, 7
        %v2863 = vsub.s32 %v2045, %v2862
        %v2864 = vrot.slane %v979, %v2863
        %v2865 = vsel %vm2050, %v2864, %v2860
        %v2866 = vlaneseq
        %v2867 = vshrl.u32 %v2866, 7
        %v2868 = vsub.s32 %v2052, %v2867
        %v2869 = vrot.slane %v982, %v2868
        %v2870 = vsel %vm2057, %v2869, %v2865
        %v2871 = vlaneseq
        %v2872 = vshrl.u32 %v2871, 7
        %v2873 = vsub.s32 %v2059, %v2872
        %v2874 = vrot.slane %v985, %v2873
        %v2875 = vsel %vm2064, %v2874, %v2870
        %v2876 = vlaneseq
        %v2877 = vshrl.u32 %v2876, 7
        %v2878 = vsub.s32 %v2066, %v2877
        %v2879 = vrot.slane %v988, %v2878
        %v2880 = vsel %vm2071, %v2879, %v2875
        %v2881 = vlaneseq
        %v2882 = vshrl.u32 %v2881, 7
        %v2883 = vsub.s32 %v2073, %v2882
        %v2884 = vrot.slane %v991, %v2883
        %v2885 = vsel %vm2078, %v2884, %v2880
        %v2886 = vlaneseq
        %v2887 = vshrl.u32 %v2886, 7
        %v2888 = vsub.s32 %v2080, %v2887
        %v2889 = vrot.slane %v994, %v2888
        %v2890 = vsel %vm2085, %v2889, %v2885
        %v2891 = vlaneseq
        %v2892 = vshrl.u32 %v2891, 7
        %v2893 = vsub.s32 %v2087, %v2892
        %v2894 = vrot.slane %v997, %v2893
        %v2895 = vsel %vm2092, %v2894, %v2890
        %v2896 = vlaneseq
        %v2897 = vshrl.u32 %v2896, 7
        %v2898 = vsub.s32 %v2094, %v2897
        %v2899 = vrot.slane %v1000, %v2898
        %v2900 = vsel %vm2099, %v2899, %v2895
        %v2901 = vlaneseq
        %v2902 = vshrl.u32 %v2901, 7
        %v2903 = vsub.s32 %v2101, %v2902
        %v2904 = vrot.slane %v1003, %v2903
        %v2905 = vsel %vm2106, %v2904, %v2900
        %v2906 = vlaneseq
        %v2907 = vshrl.u32 %v2906, 7
        %v2908 = vsub.s32 %v2108, %v2907
        %v2909 = vrot.slane %v1006, %v2908
        %v2910 = vsel %vm2113, %v2909, %v2905
        %v2911 = vlaneseq
        %v2912 = vshrl.u32 %v2911, 7
        %v2913 = vsub.s32 %v2115, %v2912
        %v2914 = vrot.slane %v1009, %v2913
        %v2915 = vsel %vm2120, %v2914, %v2910
        %v2916 = vlaneseq
        %v2917 = vshrl.u32 %v2916, 7
        %v2918 = vsub.s32 %v2122, %v2917
        %v2919 = vrot.slane %v1012, %v2918
        %v2920 = vsel %vm2127, %v2919, %v2915
        %v2921 = vlaneseq
        %v2922 = vshrl.u32 %v2921, 7
        %v2923 = vsub.s32 %v2129, %v2922
        %v2924 = vrot.slane %v1015, %v2923
        %v2925 = vsel %vm2134, %v2924, %v2920
        %v2926 = vlaneseq
        %v2927 = vshrl.u32 %v2926, 7
        %v2928 = vsub.s32 %v2026, %v2927
        %v2929 = vrot.slane %v1018, %v2928
        %v2930 = vlaneseq
        %v2931 = vshrl.u32 %v2930, 7
        %v2932 = vsub.s32 %v2031, %v2931
        %v2933 = vrot.slane %v1021, %v2932
        %v2934 = vsel %vm2036, %v2933, %v2929
        %v2935 = vlaneseq
        %v2936 = vshrl.u32 %v2935, 7
        %v2937 = vsub.s32 %v2038, %v2936
        %v2938 = vrot.slane %v1024, %v2937
        %v2939 = vsel %vm2043, %v2938, %v2934
        %v2940 = vlaneseq
        %v2941 = vshrl.u32 %v2940, 7
        %v2942 = vsub.s32 %v2045, %v2941
        %v2943 = vrot.slane %v1027, %v2942
        %v2944 = vsel %vm2050, %v2943, %v2939
        %v2945 = vlaneseq
        %v2946 = vshrl.u32 %v2945, 7
        %v2947 = vsub.s32 %v2052, %v2946
        %v2948 = vrot.slane %v1030, %v2947
        %v2949 = vsel %vm2057, %v2948, %v2944
        %v2950 = vlaneseq
        %v2951 = vshrl.u32 %v2950, 7
        %v2952 = vsub.s32 %v2059, %v2951
        %v2953 = vrot.slane %v1033, %v2952
        %v2954 = vsel %vm2064, %v2953, %v2949
        %v2955 = vlaneseq
        %v2956 = vshrl.u32 %v2955, 7
        %v2957 = vsub.s32 %v2066, %v2956
        %v2958 = vrot.slane %v1036, %v2957
        %v2959 = vsel %vm2071, %v2958, %v2954
        %v2960 = vlaneseq
        %v2961 = vshrl.u32 %v2960, 7
        %v2962 = vsub.s32 %v2073, %v2961
        %v2963 = vrot.slane %v1039, %v2962
        %v2964 = vsel %vm2078, %v2963, %v2959
        %v2965 = vlaneseq
        %v2966 = vshrl.u32 %v2965, 7
        %v2967 = vsub.s32 %v2080, %v2966
        %v2968 = vrot.slane %v1042, %v2967
        %v2969 = vsel %vm2085, %v2968, %v2964
        %v2970 = vlaneseq
        %v2971 = vshrl.u32 %v2970, 7
        %v2972 = vsub.s32 %v2087, %v2971
        %v2973 = vrot.slane %v1045, %v2972
        %v2974 = vsel %vm2092, %v2973, %v2969
        %v2975 = vlaneseq
        %v2976 = vshrl.u32 %v2975, 7
        %v2977 = vsub.s32 %v2094, %v2976
        %v2978 = vrot.slane %v1048, %v2977
        %v2979 = vsel %vm2099, %v2978, %v2974
        %v2980 = vlaneseq
        %v2981 = vshrl.u32 %v2980, 7
        %v2982 = vsub.s32 %v2101, %v2981
        %v2983 = vrot.slane %v1051, %v2982
        %v2984 = vsel %vm2106, %v2983, %v2979
        %v2985 = vlaneseq
        %v2986 = vshrl.u32 %v2985, 7
        %v2987 = vsub.s32 %v2108, %v2986
        %v2988 = vrot.slane %v1054, %v2987
        %v2989 = vsel %vm2113, %v2988, %v2984
        %v2990 = vlaneseq
        %v2991 = vshrl.u32 %v2990, 7
        %v2992 = vsub.s32 %v2115, %v2991
        %v2993 = vrot.slane %v1057, %v2992
        %v2994 = vsel %vm2120, %v2993, %v2989
        %v2995 = vlaneseq
        %v2996 = vshrl.u32 %v2995, 7
        %v2997 = vsub.s32 %v2122, %v2996
        %v2998 = vrot.slane %v1060, %v2997
        %v2999 = vsel %vm2127, %v2998, %v2994
        %v3000 = vlaneseq
        %v3001 = vshrl.u32 %v3000, 7
        %v3002 = vsub.s32 %v2129, %v3001
        %v3003 = vrot.slane %v1063, %v3002
        %v3004 = vsel %vm2134, %v3003, %v2999
        %v3005 = vlaneseq
        %v3006 = vshrl.u32 %v3005, 7
        %v3007 = vsub.s32 %v2026, %v3006
        %v3008 = vrot.slane %v1066, %v3007
        %v3009 = vlaneseq
        %v3010 = vshrl.u32 %v3009, 7
        %v3011 = vsub.s32 %v2031, %v3010
        %v3012 = vrot.slane %v1069, %v3011
        %v3013 = vsel %vm2036, %v3012, %v3008
        %v3014 = vlaneseq
        %v3015 = vshrl.u32 %v3014, 7
        %v3016 = vsub.s32 %v2038, %v3015
        %v3017 = vrot.slane %v1072, %v3016
        %v3018 = vsel %vm2043, %v3017, %v3013
        %v3019 = vlaneseq
        %v3020 = vshrl.u32 %v3019, 7
        %v3021 = vsub.s32 %v2045, %v3020
        %v3022 = vrot.slane %v1075, %v3021
        %v3023 = vsel %vm2050, %v3022, %v3018
        %v3024 = vlaneseq
        %v3025 = vshrl.u32 %v3024, 7
        %v3026 = vsub.s32 %v2052, %v3025
        %v3027 = vrot.slane %v1078, %v3026
        %v3028 = vsel %vm2057, %v3027, %v3023
        %v3029 = vlaneseq
        %v3030 = vshrl.u32 %v3029, 7
        %v3031 = vsub.s32 %v2059, %v3030
        %v3032 = vrot.slane %v1081, %v3031
        %v3033 = vsel %vm2064, %v3032, %v3028
        %v3034 = vlaneseq
        %v3035 = vshrl.u32 %v3034, 7
        %v3036 = vsub.s32 %v2066, %v3035
        %v3037 = vrot.slane %v1084, %v3036
        %v3038 = vsel %vm2071, %v3037, %v3033
        %v3039 = vlaneseq
        %v3040 = vshrl.u32 %v3039, 7
        %v3041 = vsub.s32 %v2073, %v3040
        %v3042 = vrot.slane %v1087, %v3041
        %v3043 = vsel %vm2078, %v3042, %v3038
        %v3044 = vlaneseq
        %v3045 = vshrl.u32 %v3044, 7
        %v3046 = vsub.s32 %v2080, %v3045
        %v3047 = vrot.slane %v1090, %v3046
        %v3048 = vsel %vm2085, %v3047, %v3043
        %v3049 = vlaneseq
        %v3050 = vshrl.u32 %v3049, 7
        %v3051 = vsub.s32 %v2087, %v3050
        %v3052 = vrot.slane %v1093, %v3051
        %v3053 = vsel %vm2092, %v3052, %v3048
        %v3054 = vlaneseq
        %v3055 = vshrl.u32 %v3054, 7
        %v3056 = vsub.s32 %v2094, %v3055
        %v3057 = vrot.slane %v1096, %v3056
        %v3058 = vsel %vm2099, %v3057, %v3053
        %v3059 = vlaneseq
        %v3060 = vshrl.u32 %v3059, 7
        %v3061 = vsub.s32 %v2101, %v3060
        %v3062 = vrot.slane %v1099, %v3061
        %v3063 = vsel %vm2106, %v3062, %v3058
        %v3064 = vlaneseq
        %v3065 = vshrl.u32 %v3064, 7
        %v3066 = vsub.s32 %v2108, %v3065
        %v3067 = vrot.slane %v1102, %v3066
        %v3068 = vsel %vm2113, %v3067, %v3063
        %v3069 = vlaneseq
        %v3070 = vshrl.u32 %v3069, 7
        %v3071 = vsub.s32 %v2115, %v3070
        %v3072 = vrot.slane %v1105, %v3071
        %v3073 = vsel %vm2120, %v3072, %v3068
        %v3074 = vlaneseq
        %v3075 = vshrl.u32 %v3074, 7
        %v3076 = vsub.s32 %v2122, %v3075
        %v3077 = vrot.slane %v1108, %v3076
        %v3078 = vsel %vm2127, %v3077, %v3073
        %v3079 = vlaneseq
        %v3080 = vshrl.u32 %v3079, 7
        %v3081 = vsub.s32 %v2129, %v3080
        %v3082 = vrot.slane %v1111, %v3081
        %v3083 = vsel %vm2134, %v3082, %v3078
        %v3084 = vlaneseq
        %v3085 = vshrl.u32 %v3084, 7
        %v3086 = vsub.s32 %v2026, %v3085
        %v3087 = vrot.slane %v1114, %v3086
        %v3088 = vlaneseq
        %v3089 = vshrl.u32 %v3088, 7
        %v3090 = vsub.s32 %v2031, %v3089
        %v3091 = vrot.slane %v1117, %v3090
        %v3092 = vsel %vm2036, %v3091, %v3087
        %v3093 = vlaneseq
        %v3094 = vshrl.u32 %v3093, 7
        %v3095 = vsub.s32 %v2038, %v3094
        %v3096 = vrot.slane %v1120, %v3095
        %v3097 = vsel %vm2043, %v3096, %v3092
        %v3098 = vlaneseq
        %v3099 = vshrl.u32 %v3098, 7
        %v3100 = vsub.s32 %v2045, %v3099
        %v3101 = vrot.slane %v1123, %v3100
        %v3102 = vsel %vm2050, %v3101, %v3097
        %v3103 = vlaneseq
        %v3104 = vshrl.u32 %v3103, 7
        %v3105 = vsub.s32 %v2052, %v3104
        %v3106 = vrot.slane %v1126, %v3105
        %v3107 = vsel %vm2057, %v3106, %v3102
        %v3108 = vlaneseq
        %v3109 = vshrl.u32 %v3108, 7
        %v3110 = vsub.s32 %v2059, %v3109
        %v3111 = vrot.slane %v1129, %v3110
        %v3112 = vsel %vm2064, %v3111, %v3107
        %v3113 = vlaneseq
        %v3114 = vshrl.u32 %v3113, 7
        %v3115 = vsub.s32 %v2066, %v3114
        %v3116 = vrot.slane %v1132, %v3115
        %v3117 = vsel %vm2071, %v3116, %v3112
        %v3118 = vlaneseq
        %v3119 = vshrl.u32 %v3118, 7
        %v3120 = vsub.s32 %v2073, %v3119
        %v3121 = vrot.slane %v1135, %v3120
        %v3122 = vsel %vm2078, %v3121, %v3117
        %v3123 = vlaneseq
        %v3124 = vshrl.u32 %v3123, 7
        %v3125 = vsub.s32 %v2080, %v3124
        %v3126 = vrot.slane %v1138, %v3125
        %v3127 = vsel %vm2085, %v3126, %v3122
        %v3128 = vlaneseq
        %v3129 = vshrl.u32 %v3128, 7
        %v3130 = vsub.s32 %v2087, %v3129
        %v3131 = vrot.slane %v1141, %v3130
        %v3132 = vsel %vm2092, %v3131, %v3127
        %v3133 = vlaneseq
        %v3134 = vshrl.u32 %v3133, 7
        %v3135 = vsub.s32 %v2094, %v3134
        %v3136 = vrot.slane %v1144, %v3135
        %v3137 = vsel %vm2099, %v3136, %v3132
        %v3138 = vlaneseq
        %v3139 = vshrl.u32 %v3138, 7
        %v3140 = vsub.s32 %v2101, %v3139
        %v3141 = vrot.slane %v1147, %v3140
        %v3142 = vsel %vm2106, %v3141, %v3137
        %v3143 = vlaneseq
        %v3144 = vshrl.u32 %v3143, 7
        %v3145 = vsub.s32 %v2108, %v3144
        %v3146 = vrot.slane %v1150, %v3145
        %v3147 = vsel %vm2113, %v3146, %v3142
        %v3148 = vlaneseq
        %v3149 = vshrl.u32 %v3148, 7
        %v3150 = vsub.s32 %v2115, %v3149
        %v3151 = vrot.slane %v1153, %v3150
        %v3152 = vsel %vm2120, %v3151, %v3147
        %v3153 = vlaneseq
        %v3154 = vshrl.u32 %v3153, 7
        %v3155 = vsub.s32 %v2122, %v3154
        %v3156 = vrot.slane %v1156, %v3155
        %v3157 = vsel %vm2127, %v3156, %v3152
        %v3158 = vlaneseq
        %v3159 = vshrl.u32 %v3158, 7
        %v3160 = vsub.s32 %v2129, %v3159
        %v3161 = vrot.slane %v1159, %v3160
        %v3162 = vsel %vm2134, %v3161, %v3157
        %v3163 = vlaneseq
        %v3164 = vshrl.u32 %v3163, 7
        %v3165 = vsub.s32 %v2026, %v3164
        %v3166 = vrot.slane %v1162, %v3165
        %v3167 = vlaneseq
        %v3168 = vshrl.u32 %v3167, 7
        %v3169 = vsub.s32 %v2031, %v3168
        %v3170 = vrot.slane %v1165, %v3169
        %v3171 = vsel %vm2036, %v3170, %v3166
        %v3172 = vlaneseq
        %v3173 = vshrl.u32 %v3172, 7
        %v3174 = vsub.s32 %v2038, %v3173
        %v3175 = vrot.slane %v1168, %v3174
        %v3176 = vsel %vm2043, %v3175, %v3171
        %v3177 = vlaneseq
        %v3178 = vshrl.u32 %v3177, 7
        %v3179 = vsub.s32 %v2045, %v3178
        %v3180 = vrot.slane %v1171, %v3179
        %v3181 = vsel %vm2050, %v3180, %v3176
        %v3182 = vlaneseq
        %v3183 = vshrl.u32 %v3182, 7
        %v3184 = vsub.s32 %v2052, %v3183
        %v3185 = vrot.slane %v1174, %v3184
        %v3186 = vsel %vm2057, %v3185, %v3181
        %v3187 = vlaneseq
        %v3188 = vshrl.u32 %v3187, 7
        %v3189 = vsub.s32 %v2059, %v3188
        %v3190 = vrot.slane %v1177, %v3189
        %v3191 = vsel %vm2064, %v3190, %v3186
        %v3192 = vlaneseq
        %v3193 = vshrl.u32 %v3192, 7
        %v3194 = vsub.s32 %v2066, %v3193
        %v3195 = vrot.slane %v1180, %v3194
        %v3196 = vsel %vm2071, %v3195, %v3191
        %v3197 = vlaneseq
        %v3198 = vshrl.u32 %v3197, 7
        %v3199 = vsub.s32 %v2073, %v3198
        %v3200 = vrot.slane %v1183, %v3199
        %v3201 = vsel %vm2078, %v3200, %v3196
        %v3202 = vlaneseq
        %v3203 = vshrl.u32 %v3202, 7
        %v3204 = vsub.s32 %v2080, %v3203
        %v3205 = vrot.slane %v1186, %v3204
        %v3206 = vsel %vm2085, %v3205, %v3201
        %v3207 = vlaneseq
        %v3208 = vshrl.u32 %v3207, 7
        %v3209 = vsub.s32 %v2087, %v3208
        %v3210 = vrot.slane %v1189, %v3209
        %v3211 = vsel %vm2092, %v3210, %v3206
        %v3212 = vlaneseq
        %v3213 = vshrl.u32 %v3212, 7
        %v3214 = vsub.s32 %v2094, %v3213
        %v3215 = vrot.slane %v1192, %v3214
        %v3216 = vsel %vm2099, %v3215, %v3211
        %v3217 = vlaneseq
        %v3218 = vshrl.u32 %v3217, 7
        %v3219 = vsub.s32 %v2101, %v3218
        %v3220 = vrot.slane %v1195, %v3219
        %v3221 = vsel %vm2106, %v3220, %v3216
        %v3222 = vlaneseq
        %v3223 = vshrl.u32 %v3222, 7
        %v3224 = vsub.s32 %v2108, %v3223
        %v3225 = vrot.slane %v1198, %v3224
        %v3226 = vsel %vm2113, %v3225, %v3221
        %v3227 = vlaneseq
        %v3228 = vshrl.u32 %v3227, 7
        %v3229 = vsub.s32 %v2115, %v3228
        %v3230 = vrot.slane %v1201, %v3229
        %v3231 = vsel %vm2120, %v3230, %v3226
        %v3232 = vlaneseq
        %v3233 = vshrl.u32 %v3232, 7
        %v3234 = vsub.s32 %v2122, %v3233
        %v3235 = vrot.slane %v1204, %v3234
        %v3236 = vsel %vm2127, %v3235, %v3231
        %v3237 = vlaneseq
        %v3238 = vshrl.u32 %v3237, 7
        %v3239 = vsub.s32 %v2129, %v3238
        %v3240 = vrot.slane %v1207, %v3239
        %v3241 = vsel %vm2134, %v3240, %v3236
        %v3242 = vlaneseq
        %v3243 = vshrl.u32 %v3242, 7
        %v3244 = vsub.s32 %v2026, %v3243
        %v3245 = vrot.slane %v1210, %v3244
        %v3246 = vlaneseq
        %v3247 = vshrl.u32 %v3246, 7
        %v3248 = vsub.s32 %v2031, %v3247
        %v3249 = vrot.slane %v1213, %v3248
        %v3250 = vsel %vm2036, %v3249, %v3245
        %v3251 = vlaneseq
        %v3252 = vshrl.u32 %v3251, 7
        %v3253 = vsub.s32 %v2038, %v3252
        %v3254 = vrot.slane %v1216, %v3253
        %v3255 = vsel %vm2043, %v3254, %v3250
        %v3256 = vlaneseq
        %v3257 = vshrl.u32 %v3256, 7
        %v3258 = vsub.s32 %v2045, %v3257
        %v3259 = vrot.slane %v1219, %v3258
        %v3260 = vsel %vm2050, %v3259, %v3255
        %v3261 = vlaneseq
        %v3262 = vshrl.u32 %v3261, 7
        %v3263 = vsub.s32 %v2052, %v3262
        %v3264 = vrot.slane %v1222, %v3263
        %v3265 = vsel %vm2057, %v3264, %v3260
        %v3266 = vlaneseq
        %v3267 = vshrl.u32 %v3266, 7
        %v3268 = vsub.s32 %v2059, %v3267
        %v3269 = vrot.slane %v1225, %v3268
        %v3270 = vsel %vm2064, %v3269, %v3265
        %v3271 = vlaneseq
        %v3272 = vshrl.u32 %v3271, 7
        %v3273 = vsub.s32 %v2066, %v3272
        %v3274 = vrot.slane %v1228, %v3273
        %v3275 = vsel %vm2071, %v3274, %v3270
        %v3276 = vlaneseq
        %v3277 = vshrl.u32 %v3276, 7
        %v3278 = vsub.s32 %v2073, %v3277
        %v3279 = vrot.slane %v1231, %v3278
        %v3280 = vsel %vm2078, %v3279, %v3275
        %v3281 = vlaneseq
        %v3282 = vshrl.u32 %v3281, 7
        %v3283 = vsub.s32 %v2080, %v3282
        %v3284 = vrot.slane %v1234, %v3283
        %v3285 = vsel %vm2085, %v3284, %v3280
        %v3286 = vlaneseq
        %v3287 = vshrl.u32 %v3286, 7
        %v3288 = vsub.s32 %v2087, %v3287
        %v3289 = vrot.slane %v1237, %v3288
        %v3290 = vsel %vm2092, %v3289, %v3285
        %v3291 = vlaneseq
        %v3292 = vshrl.u32 %v3291, 7
        %v3293 = vsub.s32 %v2094, %v3292
        %v3294 = vrot.slane %v1240, %v3293
        %v3295 = vsel %vm2099, %v3294, %v3290
        %v3296 = vlaneseq
        %v3297 = vshrl.u32 %v3296, 7
        %v3298 = vsub.s32 %v2101, %v3297
        %v3299 = vrot.slane %v1243, %v3298
        %v3300 = vsel %vm2106, %v3299, %v3295
        %v3301 = vlaneseq
        %v3302 = vshrl.u32 %v3301, 7
        %v3303 = vsub.s32 %v2108, %v3302
        %v3304 = vrot.slane %v1246, %v3303
        %v3305 = vsel %vm2113, %v3304, %v3300
        %v3306 = vlaneseq
        %v3307 = vshrl.u32 %v3306, 7
        %v3308 = vsub.s32 %v2115, %v3307
        %v3309 = vrot.slane %v1249, %v3308
        %v3310 = vsel %vm2120, %v3309, %v3305
        %v3311 = vlaneseq
        %v3312 = vshrl.u32 %v3311, 7
        %v3313 = vsub.s32 %v2122, %v3312
        %v3314 = vrot.slane %v1252, %v3313
        %v3315 = vsel %vm2127, %v3314, %v3310
        %v3316 = vlaneseq
        %v3317 = vshrl.u32 %v3316, 7
        %v3318 = vsub.s32 %v2129, %v3317
        %v3319 = vrot.slane %v1255, %v3318
        %v3320 = vsel %vm2134, %v3319, %v3315
        %3337 = vmatprep.subr.mxu0 %v1288
        %3338 = vmatpush1.msra.mxu0 %v1287
        %3339 = vmatprep.subr.mxu0 %v1286
        %3340 = vmatpush1.msra.mxu0 %v1285
        %3341 = vmatprep.subr.mxu0 %v1284
        %3342 = vmatpush1.msra.mxu0 %v1283
        %3343 = vmatprep.subr.mxu0 %v1282
        %3344 = vmatpush1.msra.mxu0 %v1281
        %3345 = vmatprep.subr.mxu0 %v1280
        %3346 = vmatpush1.msra.mxu0 %v1279
        %3347 = vmatprep.subr.mxu0 %v1278
        %3348 = vmatpush1.msra.mxu0 %v1277
        %3349 = vmatprep.subr.mxu0 %v1276
        %3350 = vmatpush1.msra.mxu0 %v1275
        %3351 = vmatprep.subr.mxu0 %v1274
        %3352 = vmatpush1.msra.mxu0 %v1273
        %3353 = vmatprep.subr.mxu0 %v1272
        %3354 = vmatpush1.msra.mxu0 %v1271
        %3355 = vmatprep.subr.mxu0 %v1270
        %3356 = vmatpush1.msra.mxu0 %v1269
        %3357 = vmatprep.subr.mxu0 %v1268
        %3358 = vmatpush1.msra.mxu0 %v1267
        %3359 = vmatprep.subr.mxu0 %v1266
        %3360 = vmatpush1.msra.mxu0 %v1265
        %3361 = vmatprep.subr.mxu0 %v1264
        %3362 = vmatpush1.msra.mxu0 %v1263
        %3363 = vmatprep.subr.mxu0 %v1262
        %3364 = vmatpush1.msra.mxu0 %v1261
        %3365 = vmatprep.subr.mxu0 %v1260
        %3366 = vmatpush1.msra.mxu0 %v1259
        %3367 = vmatprep.subr.mxu0 %v1258
        %3368 = vmatpush1.msra.mxu0 %v1257
        %3369 = vmatprep.subr.mxu0 %v1320
        %3370 = vmatpush2.msra.mxu0 %v1319
        %3371 = vmatprep.subr.mxu0 %v1318
        %3372 = vmatpush2.msra.mxu0 %v1317
        %3373 = vmatprep.subr.mxu0 %v1316
        %3374 = vmatpush2.msra.mxu0 %v1315
        %3375 = vmatprep.subr.mxu0 %v1314
        %3376 = vmatpush2.msra.mxu0 %v1313
        %3377 = vmatprep.subr.mxu0 %v1312
        %3378 = vmatpush2.msra.mxu0 %v1311
        %3379 = vmatprep.subr.mxu0 %v1310
        %3380 = vmatpush2.msra.mxu0 %v1309
        %3381 = vmatprep.subr.mxu0 %v1308
        %3382 = vmatpush2.msra.mxu0 %v1307
        %3383 = vmatprep.subr.mxu0 %v1306
        %3384 = vmatpush2.msra.mxu0 %v1305
        %3385 = vmatprep.subr.mxu0 %v1304
        %3386 = vmatpush2.msra.mxu0 %v1303
        %3387 = vmatprep.subr.mxu0 %v1302
        %3388 = vmatpush2.msra.mxu0 %v1301
        %3389 = vmatprep.subr.mxu0 %v1300
        %3390 = vmatpush2.msra.mxu0 %v1299
        %3391 = vmatprep.subr.mxu0 %v1298
        %3392 = vmatpush2.msra.mxu0 %v1297
        %3393 = vmatprep.subr.mxu0 %v1296
        %3394 = vmatpush2.msra.mxu0 %v1295
        %3395 = vmatprep.subr.mxu0 %v1294
        %3396 = vmatpush2.msra.mxu0 %v1293
        %3397 = vmatprep.subr.mxu0 %v1292
        %3398 = vmatpush2.msra.mxu0 %v1291
        %3399 = vmatprep.subr.mxu0 %v1290
        %3400 = vmatpush2.msra.mxu0 %v1289
        %3401 = vmatprep.mubr.f32.mxu0 %v2214
        %3402 = vmatmul.mubr.f32.gmra.mxu0 %v2135
        %v3403 = vpop.f32.mrf.mxu0
        %v3404 = vadd.f32 0.0, %v3403
        %v3405 = vpop.f32.mrf.mxu0
        %v3406 = vadd.f32 0.0, %v3405
        %3407 = vdwg.mxu0
        %3408 = vmatprep.subr.mxu0 %v1352
        %3409 = vmatpush1.msra.mxu0 %v1351
        %3410 = vmatprep.subr.mxu0 %v1350
        %3411 = vmatpush1.msra.mxu0 %v1349
        %3412 = vmatprep.subr.mxu0 %v1348
        %3413 = vmatpush1.msra.mxu0 %v1347
        %3414 = vmatprep.subr.mxu0 %v1346
        %3415 = vmatpush1.msra.mxu0 %v1345
        %3416 = vmatprep.subr.mxu0 %v1344
        %3417 = vmatpush1.msra.mxu0 %v1343
        %3418 = vmatprep.subr.mxu0 %v1342
        %3419 = vmatpush1.msra.mxu0 %v1341
        %3420 = vmatprep.subr.mxu0 %v1340
        %3421 = vmatpush1.msra.mxu0 %v1339
        %3422 = vmatprep.subr.mxu0 %v1338
        %3423 = vmatpush1.msra.mxu0 %v1337
        %3424 = vmatprep.subr.mxu0 %v1336
        %3425 = vmatpush1.msra.mxu0 %v1335
        %3426 = vmatprep.subr.mxu0 %v1334
        %3427 = vmatpush1.msra.mxu0 %v1333
        %3428 = vmatprep.subr.mxu0 %v1332
        %3429 = vmatpush1.msra.mxu0 %v1331
        %3430 = vmatprep.subr.mxu0 %v1330
        %3431 = vmatpush1.msra.mxu0 %v1329
        %3432 = vmatprep.subr.mxu0 %v1328
        %3433 = vmatpush1.msra.mxu0 %v1327
        %3434 = vmatprep.subr.mxu0 %v1326
        %3435 = vmatpush1.msra.mxu0 %v1325
        %3436 = vmatprep.subr.mxu0 %v1324
        %3437 = vmatpush1.msra.mxu0 %v1323
        %3438 = vmatprep.subr.mxu0 %v1322
        %3439 = vmatpush1.msra.mxu0 %v1321
        %3440 = vmatprep.subr.mxu0 %v1384
        %3441 = vmatpush2.msra.mxu0 %v1383
        %3442 = vmatprep.subr.mxu0 %v1382
        %3443 = vmatpush2.msra.mxu0 %v1381
        %3444 = vmatprep.subr.mxu0 %v1380
        %3445 = vmatpush2.msra.mxu0 %v1379
        %3446 = vmatprep.subr.mxu0 %v1378
        %3447 = vmatpush2.msra.mxu0 %v1377
        %3448 = vmatprep.subr.mxu0 %v1376
        %3449 = vmatpush2.msra.mxu0 %v1375
        %3450 = vmatprep.subr.mxu0 %v1374
        %3451 = vmatpush2.msra.mxu0 %v1373
        %3452 = vmatprep.subr.mxu0 %v1372
        %3453 = vmatpush2.msra.mxu0 %v1371
        %3454 = vmatprep.subr.mxu0 %v1370
        %3455 = vmatpush2.msra.mxu0 %v1369
        %3456 = vmatprep.subr.mxu0 %v1368
        %3457 = vmatpush2.msra.mxu0 %v1367
        %3458 = vmatprep.subr.mxu0 %v1366
        %3459 = vmatpush2.msra.mxu0 %v1365
        %3460 = vmatprep.subr.mxu0 %v1364
        %3461 = vmatpush2.msra.mxu0 %v1363
        %3462 = vmatprep.subr.mxu0 %v1362
        %3463 = vmatpush2.msra.mxu0 %v1361
        %3464 = vmatprep.subr.mxu0 %v1360
        %3465 = vmatpush2.msra.mxu0 %v1359
        %3466 = vmatprep.subr.mxu0 %v1358
        %3467 = vmatpush2.msra.mxu0 %v1357
        %3468 = vmatprep.subr.mxu0 %v1356
        %3469 = vmatpush2.msra.mxu0 %v1355
        %3470 = vmatprep.subr.mxu0 %v1354
        %3471 = vmatpush2.msra.mxu0 %v1353
        %3472 = vmatprep.mubr.f32.mxu0 %v2372
        %3473 = vmatmul.mubr.f32.gmra.mxu0 %v2293
        %v3474 = vpop.f32.mrf.mxu0
        %v3475 = vadd.f32 %v3404, %v3474
        %v3476 = vpop.f32.mrf.mxu0
        %v3477 = vadd.f32 %v3406, %v3476
        %3478 = vdwg.mxu0
        %3479 = vmatprep.subr.mxu0 %v1416
        %3480 = vmatpush1.msra.mxu0 %v1415
        %3481 = vmatprep.subr.mxu0 %v1414
        %3482 = vmatpush1.msra.mxu0 %v1413
        %3483 = vmatprep.subr.mxu0 %v1412
        %3484 = vmatpush1.msra.mxu0 %v1411
        %3485 = vmatprep.subr.mxu0 %v1410
        %3486 = vmatpush1.msra.mxu0 %v1409
        %3487 = vmatprep.subr.mxu0 %v1408
        %3488 = vmatpush1.msra.mxu0 %v1407
        %3489 = vmatprep.subr.mxu0 %v1406
        %3490 = vmatpush1.msra.mxu0 %v1405
        %3491 = vmatprep.subr.mxu0 %v1404
        %3492 = vmatpush1.msra.mxu0 %v1403
        %3493 = vmatprep.subr.mxu0 %v1402
        %3494 = vmatpush1.msra.mxu0 %v1401
        %3495 = vmatprep.subr.mxu0 %v1400
        %3496 = vmatpush1.msra.mxu0 %v1399
        %3497 = vmatprep.subr.mxu0 %v1398
        %3498 = vmatpush1.msra.mxu0 %v1397
        %3499 = vmatprep.subr.mxu0 %v1396
        %3500 = vmatpush1.msra.mxu0 %v1395
        %3501 = vmatprep.subr.mxu0 %v1394
        %3502 = vmatpush1.msra.mxu0 %v1393
        %3503 = vmatprep.subr.mxu0 %v1392
        %3504 = vmatpush1.msra.mxu0 %v1391
        %3505 = vmatprep.subr.mxu0 %v1390
        %3506 = vmatpush1.msra.mxu0 %v1389
        %3507 = vmatprep.subr.mxu0 %v1388
        %3508 = vmatpush1.msra.mxu0 %v1387
        %3509 = vmatprep.subr.mxu0 %v1386
        %3510 = vmatpush1.msra.mxu0 %v1385
        %3511 = vmatprep.subr.mxu0 %v1448
        %3512 = vmatpush2.msra.mxu0 %v1447
        %3513 = vmatprep.subr.mxu0 %v1446
        %3514 = vmatpush2.msra.mxu0 %v1445
        %3515 = vmatprep.subr.mxu0 %v1444
        %3516 = vmatpush2.msra.mxu0 %v1443
        %3517 = vmatprep.subr.mxu0 %v1442
        %3518 = vmatpush2.msra.mxu0 %v1441
        %3519 = vmatprep.subr.mxu0 %v1440
        %3520 = vmatpush2.msra.mxu0 %v1439
        %3521 = vmatprep.subr.mxu0 %v1438
        %3522 = vmatpush2.msra.mxu0 %v1437
        %3523 = vmatprep.subr.mxu0 %v1436
        %3524 = vmatpush2.msra.mxu0 %v1435
        %3525 = vmatprep.subr.mxu0 %v1434
        %3526 = vmatpush2.msra.mxu0 %v1433
        %3527 = vmatprep.subr.mxu0 %v1432
        %3528 = vmatpush2.msra.mxu0 %v1431
        %3529 = vmatprep.subr.mxu0 %v1430
        %3530 = vmatpush2.msra.mxu0 %v1429
        %3531 = vmatprep.subr.mxu0 %v1428
        %3532 = vmatpush2.msra.mxu0 %v1427
        %3533 = vmatprep.subr.mxu0 %v1426
        %3534 = vmatpush2.msra.mxu0 %v1425
        %3535 = vmatprep.subr.mxu0 %v1424
        %3536 = vmatpush2.msra.mxu0 %v1423
        %3537 = vmatprep.subr.mxu0 %v1422
        %3538 = vmatpush2.msra.mxu0 %v1421
        %3539 = vmatprep.subr.mxu0 %v1420
        %3540 = vmatpush2.msra.mxu0 %v1419
        %3541 = vmatprep.subr.mxu0 %v1418
        %3542 = vmatpush2.msra.mxu0 %v1417
        %3543 = vmatprep.mubr.f32.mxu0 %v2530
        %3544 = vmatmul.mubr.f32.gmra.mxu0 %v2451
        %v3545 = vpop.f32.mrf.mxu0
        %v3546 = vadd.f32 %v3475, %v3545
        %v3547 = vpop.f32.mrf.mxu0
        %v3548 = vadd.f32 %v3477, %v3547
        %3549 = vdwg.mxu0
        %3550 = vmatprep.subr.mxu0 %v1480
        %3551 = vmatpush1.msra.mxu0 %v1479
        %3552 = vmatprep.subr.mxu0 %v1478
        %3553 = vmatpush1.msra.mxu0 %v1477
        %3554 = vmatprep.subr.mxu0 %v1476
        %3555 = vmatpush1.msra.mxu0 %v1475
        %3556 = vmatprep.subr.mxu0 %v1474
        %3557 = vmatpush1.msra.mxu0 %v1473
        %3558 = vmatprep.subr.mxu0 %v1472
        %3559 = vmatpush1.msra.mxu0 %v1471
        %3560 = vmatprep.subr.mxu0 %v1470
        %3561 = vmatpush1.msra.mxu0 %v1469
        %3562 = vmatprep.subr.mxu0 %v1468
        %3563 = vmatpush1.msra.mxu0 %v1467
        %3564 = vmatprep.subr.mxu0 %v1466
        %3565 = vmatpush1.msra.mxu0 %v1465
        %3566 = vmatprep.subr.mxu0 %v1464
        %3567 = vmatpush1.msra.mxu0 %v1463
        %3568 = vmatprep.subr.mxu0 %v1462
        %3569 = vmatpush1.msra.mxu0 %v1461
        %3570 = vmatprep.subr.mxu0 %v1460
        %3571 = vmatpush1.msra.mxu0 %v1459
        %3572 = vmatprep.subr.mxu0 %v1458
        %3573 = vmatpush1.msra.mxu0 %v1457
        %3574 = vmatprep.subr.mxu0 %v1456
        %3575 = vmatpush1.msra.mxu0 %v1455
        %3576 = vmatprep.subr.mxu0 %v1454
        %3577 = vmatpush1.msra.mxu0 %v1453
        %3578 = vmatprep.subr.mxu0 %v1452
        %3579 = vmatpush1.msra.mxu0 %v1451
        %3580 = vmatprep.subr.mxu0 %v1450
        %3581 = vmatpush1.msra.mxu0 %v1449
        %3582 = vmatprep.subr.mxu0 %v1512
        %3583 = vmatpush2.msra.mxu0 %v1511
        %3584 = vmatprep.subr.mxu0 %v1510
        %3585 = vmatpush2.msra.mxu0 %v1509
        %3586 = vmatprep.subr.mxu0 %v1508
        %3587 = vmatpush2.msra.mxu0 %v1507
        %3588 = vmatprep.subr.mxu0 %v1506
        %3589 = vmatpush2.msra.mxu0 %v1505
        %3590 = vmatprep.subr.mxu0 %v1504
        %3591 = vmatpush2.msra.mxu0 %v1503
        %3592 = vmatprep.subr.mxu0 %v1502
        %3593 = vmatpush2.msra.mxu0 %v1501
        %3594 = vmatprep.subr.mxu0 %v1500
        %3595 = vmatpush2.msra.mxu0 %v1499
        %3596 = vmatprep.subr.mxu0 %v1498
        %3597 = vmatpush2.msra.mxu0 %v1497
        %3598 = vmatprep.subr.mxu0 %v1496
        %3599 = vmatpush2.msra.mxu0 %v1495
        %3600 = vmatprep.subr.mxu0 %v1494
        %3601 = vmatpush2.msra.mxu0 %v1493
        %3602 = vmatprep.subr.mxu0 %v1492
        %3603 = vmatpush2.msra.mxu0 %v1491
        %3604 = vmatprep.subr.mxu0 %v1490
        %3605 = vmatpush2.msra.mxu0 %v1489
        %3606 = vmatprep.subr.mxu0 %v1488
        %3607 = vmatpush2.msra.mxu0 %v1487
        %3608 = vmatprep.subr.mxu0 %v1486
        %3609 = vmatpush2.msra.mxu0 %v1485
        %3610 = vmatprep.subr.mxu0 %v1484
        %3611 = vmatpush2.msra.mxu0 %v1483
        %3612 = vmatprep.subr.mxu0 %v1482
        %3613 = vmatpush2.msra.mxu0 %v1481
        %3614 = vmatprep.mubr.f32.mxu0 %v2688
        %3615 = vmatmul.mubr.f32.gmra.mxu0 %v2609
        %v3616 = vpop.f32.mrf.mxu0
        %v3617 = vadd.f32 %v3546, %v3616
        %v3618 = vpop.f32.mrf.mxu0
        %v3619 = vadd.f32 %v3548, %v3618
        %3620 = vdwg.mxu0
        %3621 = vmatprep.subr.mxu0 %v1544
        %3622 = vmatpush1.msra.mxu0 %v1543
        %3623 = vmatprep.subr.mxu0 %v1542
        %3624 = vmatpush1.msra.mxu0 %v1541
        %3625 = vmatprep.subr.mxu0 %v1540
        %3626 = vmatpush1.msra.mxu0 %v1539
        %3627 = vmatprep.subr.mxu0 %v1538
        %3628 = vmatpush1.msra.mxu0 %v1537
        %3629 = vmatprep.subr.mxu0 %v1536
        %3630 = vmatpush1.msra.mxu0 %v1535
        %3631 = vmatprep.subr.mxu0 %v1534
        %3632 = vmatpush1.msra.mxu0 %v1533
        %3633 = vmatprep.subr.mxu0 %v1532
        %3634 = vmatpush1.msra.mxu0 %v1531
        %3635 = vmatprep.subr.mxu0 %v1530
        %3636 = vmatpush1.msra.mxu0 %v1529
        %3637 = vmatprep.subr.mxu0 %v1528
        %3638 = vmatpush1.msra.mxu0 %v1527
        %3639 = vmatprep.subr.mxu0 %v1526
        %3640 = vmatpush1.msra.mxu0 %v1525
        %3641 = vmatprep.subr.mxu0 %v1524
        %3642 = vmatpush1.msra.mxu0 %v1523
        %3643 = vmatprep.subr.mxu0 %v1522
        %3644 = vmatpush1.msra.mxu0 %v1521
        %3645 = vmatprep.subr.mxu0 %v1520
        %3646 = vmatpush1.msra.mxu0 %v1519
        %3647 = vmatprep.subr.mxu0 %v1518
        %3648 = vmatpush1.msra.mxu0 %v1517
        %3649 = vmatprep.subr.mxu0 %v1516
        %3650 = vmatpush1.msra.mxu0 %v1515
        %3651 = vmatprep.subr.mxu0 %v1514
        %3652 = vmatpush1.msra.mxu0 %v1513
        %3653 = vmatprep.subr.mxu0 %v1576
        %3654 = vmatpush2.msra.mxu0 %v1575
        %3655 = vmatprep.subr.mxu0 %v1574
        %3656 = vmatpush2.msra.mxu0 %v1573
        %3657 = vmatprep.subr.mxu0 %v1572
        %3658 = vmatpush2.msra.mxu0 %v1571
        %3659 = vmatprep.subr.mxu0 %v1570
        %3660 = vmatpush2.msra.mxu0 %v1569
        %3661 = vmatprep.subr.mxu0 %v1568
        %3662 = vmatpush2.msra.mxu0 %v1567
        %3663 = vmatprep.subr.mxu0 %v1566
        %3664 = vmatpush2.msra.mxu0 %v1565
        %3665 = vmatprep.subr.mxu0 %v1564
        %3666 = vmatpush2.msra.mxu0 %v1563
        %3667 = vmatprep.subr.mxu0 %v1562
        %3668 = vmatpush2.msra.mxu0 %v1561
        %3669 = vmatprep.subr.mxu0 %v1560
        %3670 = vmatpush2.msra.mxu0 %v1559
        %3671 = vmatprep.subr.mxu0 %v1558
        %3672 = vmatpush2.msra.mxu0 %v1557
        %3673 = vmatprep.subr.mxu0 %v1556
        %3674 = vmatpush2.msra.mxu0 %v1555
        %3675 = vmatprep.subr.mxu0 %v1554
        %3676 = vmatpush2.msra.mxu0 %v1553
        %3677 = vmatprep.subr.mxu0 %v1552
        %3678 = vmatpush2.msra.mxu0 %v1551
        %3679 = vmatprep.subr.mxu0 %v1550
        %3680 = vmatpush2.msra.mxu0 %v1549
        %3681 = vmatprep.subr.mxu0 %v1548
        %3682 = vmatpush2.msra.mxu0 %v1547
        %3683 = vmatprep.subr.mxu0 %v1546
        %3684 = vmatpush2.msra.mxu0 %v1545
        %3685 = vmatprep.mubr.f32.mxu0 %v2846
        %3686 = vmatmul.mubr.f32.gmra.mxu0 %v2767
        %v3687 = vpop.f32.mrf.mxu0
        %v3688 = vadd.f32 %v3617, %v3687
        %v3689 = vpop.f32.mrf.mxu0
        %v3690 = vadd.f32 %v3619, %v3689
        %3691 = vdwg.mxu0
        %3692 = vmatprep.subr.mxu0 %v1608
        %3693 = vmatpush1.msra.mxu0 %v1607
        %3694 = vmatprep.subr.mxu0 %v1606
        %3695 = vmatpush1.msra.mxu0 %v1605
        %3696 = vmatprep.subr.mxu0 %v1604
        %3697 = vmatpush1.msra.mxu0 %v1603
        %3698 = vmatprep.subr.mxu0 %v1602
        %3699 = vmatpush1.msra.mxu0 %v1601
        %3700 = vmatprep.subr.mxu0 %v1600
        %3701 = vmatpush1.msra.mxu0 %v1599
        %3702 = vmatprep.subr.mxu0 %v1598
        %3703 = vmatpush1.msra.mxu0 %v1597
        %3704 = vmatprep.subr.mxu0 %v1596
        %3705 = vmatpush1.msra.mxu0 %v1595
        %3706 = vmatprep.subr.mxu0 %v1594
        %3707 = vmatpush1.msra.mxu0 %v1593
        %3708 = vmatprep.subr.mxu0 %v1592
        %3709 = vmatpush1.msra.mxu0 %v1591
        %3710 = vmatprep.subr.mxu0 %v1590
        %3711 = vmatpush1.msra.mxu0 %v1589
        %3712 = vmatprep.subr.mxu0 %v1588
        %3713 = vmatpush1.msra.mxu0 %v1587
        %3714 = vmatprep.subr.mxu0 %v1586
        %3715 = vmatpush1.msra.mxu0 %v1585
        %3716 = vmatprep.subr.mxu0 %v1584
        %3717 = vmatpush1.msra.mxu0 %v1583
        %3718 = vmatprep.subr.mxu0 %v1582
        %3719 = vmatpush1.msra.mxu0 %v1581
        %3720 = vmatprep.subr.mxu0 %v1580
        %3721 = vmatpush1.msra.mxu0 %v1579
        %3722 = vmatprep.subr.mxu0 %v1578
        %3723 = vmatpush1.msra.mxu0 %v1577
        %3724 = vmatprep.subr.mxu0 %v1640
        %3725 = vmatpush2.msra.mxu0 %v1639
        %3726 = vmatprep.subr.mxu0 %v1638
        %3727 = vmatpush2.msra.mxu0 %v1637
        %3728 = vmatprep.subr.mxu0 %v1636
        %3729 = vmatpush2.msra.mxu0 %v1635
        %3730 = vmatprep.subr.mxu0 %v1634
        %3731 = vmatpush2.msra.mxu0 %v1633
        %3732 = vmatprep.subr.mxu0 %v1632
        %3733 = vmatpush2.msra.mxu0 %v1631
        %3734 = vmatprep.subr.mxu0 %v1630
        %3735 = vmatpush2.msra.mxu0 %v1629
        %3736 = vmatprep.subr.mxu0 %v1628
        %3737 = vmatpush2.msra.mxu0 %v1627
        %3738 = vmatprep.subr.mxu0 %v1626
        %3739 = vmatpush2.msra.mxu0 %v1625
        %3740 = vmatprep.subr.mxu0 %v1624
        %3741 = vmatpush2.msra.mxu0 %v1623
        %3742 = vmatprep.subr.mxu0 %v1622
        %3743 = vmatpush2.msra.mxu0 %v1621
        %3744 = vmatprep.subr.mxu0 %v1620
        %3745 = vmatpush2.msra.mxu0 %v1619
        %3746 = vmatprep.subr.mxu0 %v1618
        %3747 = vmatpush2.msra.mxu0 %v1617
        %3748 = vmatprep.subr.mxu0 %v1616
        %3749 = vmatpush2.msra.mxu0 %v1615
        %3750 = vmatprep.subr.mxu0 %v1614
        %3751 = vmatpush2.msra.mxu0 %v1613
        %3752 = vmatprep.subr.mxu0 %v1612
        %3753 = vmatpush2.msra.mxu0 %v1611
        %3754 = vmatprep.subr.mxu0 %v1610
        %3755 = vmatpush2.msra.mxu0 %v1609
        %3756 = vmatprep.mubr.f32.mxu0 %v3004
        %3757 = vmatmul.mubr.f32.gmra.mxu0 %v2925
        %v3758 = vpop.f32.mrf.mxu0
        %v3759 = vadd.f32 %v3688, %v3758
        %v3760 = vpop.f32.mrf.mxu0
        %v3761 = vadd.f32 %v3690, %v3760
        %3762 = vdwg.mxu0
        %3763 = vmatprep.subr.mxu0 %v1672
        %3764 = vmatpush1.msra.mxu0 %v1671
        %3765 = vmatprep.subr.mxu0 %v1670
        %3766 = vmatpush1.msra.mxu0 %v1669
        %3767 = vmatprep.subr.mxu0 %v1668
        %3768 = vmatpush1.msra.mxu0 %v1667
        %3769 = vmatprep.subr.mxu0 %v1666
        %3770 = vmatpush1.msra.mxu0 %v1665
        %3771 = vmatprep.subr.mxu0 %v1664
        %3772 = vmatpush1.msra.mxu0 %v1663
        %3773 = vmatprep.subr.mxu0 %v1662
        %3774 = vmatpush1.msra.mxu0 %v1661
        %3775 = vmatprep.subr.mxu0 %v1660
        %3776 = vmatpush1.msra.mxu0 %v1659
        %3777 = vmatprep.subr.mxu0 %v1658
        %3778 = vmatpush1.msra.mxu0 %v1657
        %3779 = vmatprep.subr.mxu0 %v1656
        %3780 = vmatpush1.msra.mxu0 %v1655
        %3781 = vmatprep.subr.mxu0 %v1654
        %3782 = vmatpush1.msra.mxu0 %v1653
        %3783 = vmatprep.subr.mxu0 %v1652
        %3784 = vmatpush1.msra.mxu0 %v1651
        %3785 = vmatprep.subr.mxu0 %v1650
        %3786 = vmatpush1.msra.mxu0 %v1649
        %3787 = vmatprep.subr.mxu0 %v1648
        %3788 = vmatpush1.msra.mxu0 %v1647
        %3789 = vmatprep.subr.mxu0 %v1646
        %3790 = vmatpush1.msra.mxu0 %v1645
        %3791 = vmatprep.subr.mxu0 %v1644
        %3792 = vmatpush1.msra.mxu0 %v1643
        %3793 = vmatprep.subr.mxu0 %v1642
        %3794 = vmatpush1.msra.mxu0 %v1641
        %3795 = vmatprep.subr.mxu0 %v1704
        %3796 = vmatpush2.msra.mxu0 %v1703
        %3797 = vmatprep.subr.mxu0 %v1702
        %3798 = vmatpush2.msra.mxu0 %v1701
        %3799 = vmatprep.subr.mxu0 %v1700
        %3800 = vmatpush2.msra.mxu0 %v1699
        %3801 = vmatprep.subr.mxu0 %v1698
        %3802 = vmatpush2.msra.mxu0 %v1697
        %3803 = vmatprep.subr.mxu0 %v1696
        %3804 = vmatpush2.msra.mxu0 %v1695
        %3805 = vmatprep.subr.mxu0 %v1694
        %3806 = vmatpush2.msra.mxu0 %v1693
        %3807 = vmatprep.subr.mxu0 %v1692
        %3808 = vmatpush2.msra.mxu0 %v1691
        %3809 = vmatprep.subr.mxu0 %v1690
        %3810 = vmatpush2.msra.mxu0 %v1689
        %3811 = vmatprep.subr.mxu0 %v1688
        %3812 = vmatpush2.msra.mxu0 %v1687
        %3813 = vmatprep.subr.mxu0 %v1686
        %3814 = vmatpush2.msra.mxu0 %v1685
        %3815 = vmatprep.subr.mxu0 %v1684
        %3816 = vmatpush2.msra.mxu0 %v1683
        %3817 = vmatprep.subr.mxu0 %v1682
        %3818 = vmatpush2.msra.mxu0 %v1681
        %3819 = vmatprep.subr.mxu0 %v1680
        %3820 = vmatpush2.msra.mxu0 %v1679
        %3821 = vmatprep.subr.mxu0 %v1678
        %3822 = vmatpush2.msra.mxu0 %v1677
        %3823 = vmatprep.subr.mxu0 %v1676
        %3824 = vmatpush2.msra.mxu0 %v1675
        %3825 = vmatprep.subr.mxu0 %v1674
        %3826 = vmatpush2.msra.mxu0 %v1673
        %3827 = vmatprep.mubr.f32.mxu0 %v3162
        %3828 = vmatmul.mubr.f32.gmra.mxu0 %v3083
        %v3829 = vpop.f32.mrf.mxu0
        %v3830 = vadd.f32 %v3759, %v3829
        %v3831 = vpop.f32.mrf.mxu0
        %v3832 = vadd.f32 %v3761, %v3831
        %3833 = vdwg.mxu0
        %3834 = vmatprep.subr.mxu0 %v1736
        %3835 = vmatpush1.msra.mxu0 %v1735
        %3836 = vmatprep.subr.mxu0 %v1734
        %3837 = vmatpush1.msra.mxu0 %v1733
        %3838 = vmatprep.subr.mxu0 %v1732
        %3839 = vmatpush1.msra.mxu0 %v1731
        %3840 = vmatprep.subr.mxu0 %v1730
        %3841 = vmatpush1.msra.mxu0 %v1729
        %3842 = vmatprep.subr.mxu0 %v1728
        %3843 = vmatpush1.msra.mxu0 %v1727
        %3844 = vmatprep.subr.mxu0 %v1726
        %3845 = vmatpush1.msra.mxu0 %v1725
        %3846 = vmatprep.subr.mxu0 %v1724
        %3847 = vmatpush1.msra.mxu0 %v1723
        %3848 = vmatprep.subr.mxu0 %v1722
        %3849 = vmatpush1.msra.mxu0 %v1721
        %3850 = vmatprep.subr.mxu0 %v1720
        %3851 = vmatpush1.msra.mxu0 %v1719
        %3852 = vmatprep.subr.mxu0 %v1718
        %3853 = vmatpush1.msra.mxu0 %v1717
        %3854 = vmatprep.subr.mxu0 %v1716
        %3855 = vmatpush1.msra.mxu0 %v1715
        %3856 = vmatprep.subr.mxu0 %v1714
        %3857 = vmatpush1.msra.mxu0 %v1713
        %3858 = vmatprep.subr.mxu0 %v1712
        %3859 = vmatpush1.msra.mxu0 %v1711
        %3860 = vmatprep.subr.mxu0 %v1710
        %3861 = vmatpush1.msra.mxu0 %v1709
        %3862 = vmatprep.subr.mxu0 %v1708
        %3863 = vmatpush1.msra.mxu0 %v1707
        %3864 = vmatprep.subr.mxu0 %v1706
        %3865 = vmatpush1.msra.mxu0 %v1705
        %3866 = vmatprep.subr.mxu0 %v1768
        %3867 = vmatpush2.msra.mxu0 %v1767
        %3868 = vmatprep.subr.mxu0 %v1766
        %3869 = vmatpush2.msra.mxu0 %v1765
        %3870 = vmatprep.subr.mxu0 %v1764
        %3871 = vmatpush2.msra.mxu0 %v1763
        %3872 = vmatprep.subr.mxu0 %v1762
        %3873 = vmatpush2.msra.mxu0 %v1761
        %3874 = vmatprep.subr.mxu0 %v1760
        %3875 = vmatpush2.msra.mxu0 %v1759
        %3876 = vmatprep.subr.mxu0 %v1758
        %3877 = vmatpush2.msra.mxu0 %v1757
        %3878 = vmatprep.subr.mxu0 %v1756
        %3879 = vmatpush2.msra.mxu0 %v1755
        %3880 = vmatprep.subr.mxu0 %v1754
        %3881 = vmatpush2.msra.mxu0 %v1753
        %3882 = vmatprep.subr.mxu0 %v1752
        %3883 = vmatpush2.msra.mxu0 %v1751
        %3884 = vmatprep.subr.mxu0 %v1750
        %3885 = vmatpush2.msra.mxu0 %v1749
        %3886 = vmatprep.subr.mxu0 %v1748
        %3887 = vmatpush2.msra.mxu0 %v1747
        %3888 = vmatprep.subr.mxu0 %v1746
        %3889 = vmatpush2.msra.mxu0 %v1745
        %3890 = vmatprep.subr.mxu0 %v1744
        %3891 = vmatpush2.msra.mxu0 %v1743
        %3892 = vmatprep.subr.mxu0 %v1742
        %3893 = vmatpush2.msra.mxu0 %v1741
        %3894 = vmatprep.subr.mxu0 %v1740
        %3895 = vmatpush2.msra.mxu0 %v1739
        %3896 = vmatprep.subr.mxu0 %v1738
        %3897 = vmatpush2.msra.mxu0 %v1737
        %3898 = vmatprep.mubr.f32.mxu0 %v3320
        %3899 = vmatmul.mubr.f32.gmra.mxu0 %v3241
        %v3900 = vpop.f32.mrf.mxu0
        %v3901 = vadd.f32 %v3830, %v3900
        %v3902 = vpop.f32.mrf.mxu0
        %v3903 = vadd.f32 %v3832, %v3902
        %3904 = vdwg.mxu0
        %v3907 = vcombine.low %v3901, %v3903
        %v3909 = vunpack.c.l.s4 1966171168
        %v3910 = vunpack.c.0.s8 %v3909
        %v3911 = vlaneseq
        %v3912 = vshrl.u32 %v3911, 7
        %v3913 = vsub.s32 %v3910, %v3912
        %v3914 = vrot.slane %v3907, %v3913
        %v3916 = vunpack.c.l.s4 1966171168
        %v3917 = vunpack.c.0.s8 %v3916
        %v3918 = vlaneseq
        %v3919 = vshrl.u32 %v3918, 7
        %v3920 = vsub.s32 %v3917, %v3919
        %v3921 = vrot.slane %v3914, %v3920
        %v3923 = vadd.f32 %v1256, %v3921
        %v3924 = vlaneseq
        %vm3925 = vcmp.ge.s32.totalorder %v3924, 0
        %vm3926 = vcmp.lt.s32.totalorder %v3924, 256
        %vm3927 = vmand %vm3925, %vm3926
        %3928 = vst.msk [vmem:[#allocation2] sm:$0x3] %vm3927, %v3923
        // Predicated region
        $region37: #{tpu_custom_call.1} parent=31 // pred_check
          %p3929 = pneg %p222
        $region38: #{tpu_custom_call.1} parent=31 // pred_check_branch
          %3931 = sbr.rel (%p3929) target = $region40
        $region39: #{tpu_custom_call.1} parent=31 // pred_region
          %v3932 = vld [vmem:[#allocation2] sm:$0x3]
          %v3933 = vld [vmem:[%s2] sm:$0x3]
          %v3934 = vadd.f32 %v3932, %v3933
          %3935 = vst.msk [vmem:[%s204] sm:$0x3] %vm3927, %v3934
        $region40: #{tpu_custom_call.1} parent=31 // pred_fallthru
          _
        %s3936 = sand.u32 %s112, 1
        %s3937 = scalar_lea.sflag [#allocation4], %s3936
        %s3938 = sand.u32 %s112, 1
        %s3939 = smul.addr %s3938, 2
        %s3940 = scalar_lea.vmem [#allocation3], %s3939
        // Predicated region
        $region41: #{tpu_custom_call.1} parent=31 // pred_check
          %p3941 = pneg %p122
        $region42: #{tpu_custom_call.1} parent=31 // pred_check_branch
          %3943 = sbr.rel (%p3941) target = $region44
        $region43: #{tpu_custom_call.1} parent=31 // pred_region
          %s3945 = ssub.s32 32, 32
          %3946 = vsyncadd %s3937, %s3945
          %s3947 = smul.addr %s21, 2
          %s3948 = smul.addr %s3947, 16
          %s3949 = scalar_lea.hbm %s3, %s3948
          %s3951 = sshll.u32 %s3940, 4
          %s3952 = int_to_ptr.vmem [resolvable:$true] %s3951
          %3954 = dma.vmem_to_hbm [thread:$0]  %s3952, 32, %s3949, %s3937
        $region44: #{tpu_custom_call.1} parent=31 // pred_fallthru
          _
      $region32: #{tpu_custom_call.1} parent=5 // pred_fallthru
        _
      %p3955 = scmp.le.s32.totalorder 2, %s12
      // Predicated region
      $region45: #{tpu_custom_call.1} parent=5 // pred_check
        %p3956 = pneg %p3955
      $region46: #{tpu_custom_call.1} parent=5 // pred_check_branch
        %3958 = sbr.rel (%p3956) target = $region48
      $region47: #{tpu_custom_call.1} parent=5 // pred_region
        %s3959 = ssub.s32 %s12, 2
        // Predicated region
        $region49: #{tpu_custom_call.1} parent=47 // pred_check
          %p3960 = pneg %p128
        $region50: #{tpu_custom_call.1} parent=47 // pred_check_branch
          %3962 = sbr.rel (%p3960) target = $region52
        $region51: #{tpu_custom_call.1} parent=47 // pred_region
          %s3963 = sand.u32 %s113, 1
          %s3964 = scalar_lea.sflag [#allocation4], %s3963
          %s3965 = sand.u32 %s113, 1
          %s3966 = smul.addr %s3965, 2
          %s3967 = scalar_lea.vmem [#allocation3], %s3966
          %3968 = dma.done %s3964, 32
        $region52: #{tpu_custom_call.1} parent=47 // pred_fallthru
          _
      $region48: #{tpu_custom_call.1} parent=5 // pred_fallthru
        _
    $region6: #{tpu_custom_call.1} parent=1 // loop_footer
      %s16 = sadd.s32 1, %s12
    $region7: #{tpu_custom_call.1} parent=1 // loop_footer_branch
      %11 = sbr.rel target = $region3
    $region8: #{tpu_custom_call.1} parent=1 // loop_exit
      _
    %3969 = vsyncpa [#allocation4], 1
    %s3970 = scalar_lea.sflag [#allocation4], 1
    %3971 = vsyncpa %s3970, 1

</llo_original>
